<compile_context>
chip_gen: v5e
topology: v5e:2x2
jax: 0.10.0
libtpu: 0.0.40
codegen_flags: <defaults>
</compile_context>

<pallas_src>
import functools
import math

import jax
import jax.numpy as jnp
from jax.experimental import pallas as pl
from jax.experimental.pallas import tpu as pltpu


ACT_DTYPE = jnp.bfloat16      # activations between kernels / MXU inputs
WEIGHT_DTYPE = jnp.bfloat16   # matmul weights


def _vmem_limit_bytes():
    """~75% of physical VMEM: ~96 MiB on v5e/v6e, ~48 MiB on v7x."""
    try:
        info = pltpu.get_tpu_info()
        cap = int(getattr(info, "vmem_capacity_bytes"))
        return max(32 * 1024 * 1024, min((cap * 3) // 4, 112 * 1024 * 1024))
    except Exception:
        return 48 * 1024 * 1024


VMEM_LIMIT = _vmem_limit_bytes()


def _pick_tile(dim, preferred, align):
    """Largest multiple of `align` that divides `dim` and is <= `preferred`,
    else the full dim (full dims are exempt from the (8/16,128) constraint)."""
    if dim <= preferred:
        return dim
    best = None
    t = align
    while t <= preferred:
        if dim % t == 0:
            best = t
        t += align
    return best if best is not None else dim


def _pick_tile_k(K, preferred=1024):
    """Contraction-strip size: whole K when it fits, else prefer 256-multiples
    (v6e/v7x MXU depth), falling back to 128-multiples (v5e)."""
    if K <= preferred:
        return K
    if K % 256 == 0:
        return _pick_tile(K, preferred, 256)
    return _pick_tile(K, preferred, 128)


# ----------------------------------------------------------------------------
# elementwise helpers (trace-time, used inside kernels)
# ----------------------------------------------------------------------------
def _erf_approx(x):
    # Abramowitz & Stegun 7.1.26, max abs err ~1.5e-7.  abs + select + one EUP
    # exp + one EUP approx reciprocal; guaranteed to lower in Mosaic.
    p = 0.3275911
    a1, a2, a3, a4, a5 = (0.254829592, -0.284496736, 1.421413741,
                          -1.453152027, 1.061405429)
    ax = jnp.abs(x)
    t = pl.reciprocal(1.0 + p * ax, approx=True)
    poly = ((((a5 * t + a4) * t + a3) * t + a2) * t + a1) * t
    e = 1.0 - poly * jnp.exp(-ax * ax)
    return jnp.where(x < 0.0, -e, e)


def _gelu_exact(x):
    # exact (erf) GELU, matching HF "gelu"
    return 0.5 * x * (1.0 + _erf_approx(x * (1.0 / math.sqrt(2.0))))


# ----------------------------------------------------------------------------
# Pallas kernels
# ----------------------------------------------------------------------------
def _linear_kernel(x_ref, w_ref, b_ref, o_ref, acc_ref, *, apply_gelu):
    # out = [gelu](x @ w + b), K-reduction accumulated in VMEM f32
    @pl.when(pl.program_id(2) == 0)
    def _():
        acc_ref[...] = jnp.zeros_like(acc_ref)

    acc_ref[...] += jnp.dot(x_ref[...], w_ref[...],
                            preferred_element_type=jnp.float32)

    @pl.when(pl.program_id(2) == pl.num_programs(2) - 1)
    def _():
        y = acc_ref[...] + b_ref[...]
        if apply_gelu:
            y = _gelu_exact(y)
        o_ref[...] = y.astype(o_ref.dtype)


def linear(x, w, b, *, gelu=False, out_dtype=None):
    """x: (M, K), w: (K, N) [torch weight transposed], b: (1, N) f32 -> (M, N)."""
    M, K = x.shape
    N = w.shape[1]
    out_dtype = out_dtype or x.dtype
    tm = _pick_tile(M, 1024, 16)
    tn = _pick_tile(N, 1024, 128)
    tk = _pick_tile_k(K)
    kernel = functools.partial(_linear_kernel, apply_gelu=gelu)
    return pl.pallas_call(
        kernel,
        out_shape=jax.ShapeDtypeStruct((M, N), out_dtype),
        grid=(M // tm, N // tn, K // tk),
        in_specs=[
            pl.BlockSpec((tm, tk), lambda i, j, k: (i, k)),
            pl.BlockSpec((tk, tn), lambda i, j, k: (k, j)),
            pl.BlockSpec((1, tn), lambda i, j, k: (0, j)),
        ],
        out_specs=pl.BlockSpec((tm, tn), lambda i, j, k: (i, j)),
        scratch_shapes=[pltpu.VMEM((tm, tn), jnp.float32)],
        compiler_params=pltpu.CompilerParams(
            dimension_semantics=("parallel", "parallel", "arbitrary"),
            vmem_limit_bytes=VMEM_LIMIT),
    )(x, w, b)


def _linear_add_ln_kernel(x_ref, w_ref, b_ref, r_ref, g_ref, beta_ref,
                          o_ref, acc_ref, *, eps):
    # out = LayerNorm(x @ w + b + residual) * gamma + beta, LN over full N rows
    @pl.when(pl.program_id(1) == 0)
    def _():
        acc_ref[...] = jnp.zeros_like(acc_ref)

    acc_ref[...] += jnp.dot(x_ref[...], w_ref[...],
                            preferred_element_type=jnp.float32)

    @pl.when(pl.program_id(1) == pl.num_programs(1) - 1)
    def _():
        y = acc_ref[...] + b_ref[...] + r_ref[...].astype(jnp.float32)
        mean = jnp.mean(y, axis=-1, keepdims=True)
        var = jnp.mean((y - mean) ** 2, axis=-1, keepdims=True)
        inv = jax.lax.rsqrt(var + eps)
        o_ref[...] = ((y - mean) * inv * g_ref[...] + beta_ref[...]
                      ).astype(o_ref.dtype)


def linear_add_ln(x, w, b, residual, gamma, beta, *, eps=1e-12, out_dtype=None):
    """Fused dense + bias + residual add + LayerNorm.  N is kept whole so the
    LayerNorm reduction sees full rows; only M and K are tiled."""
    M, K = x.shape
    N = w.shape[1]
    out_dtype = out_dtype or residual.dtype
    tm = _pick_tile(M, 512, 16)
    tk = _pick_tile_k(K)
    kernel = functools.partial(_linear_add_ln_kernel, eps=eps)
    return pl.pallas_call(
        kernel,
        out_shape=jax.ShapeDtypeStruct((M, N), out_dtype),
        grid=(M // tm, K // tk),
        in_specs=[
            pl.BlockSpec((tm, tk), lambda i, k: (i, k)),
            pl.BlockSpec((tk, N), lambda i, k: (k, 0)),
            pl.BlockSpec((1, N), lambda i, k: (0, 0)),
            pl.BlockSpec((tm, N), lambda i, k: (i, 0)),
            pl.BlockSpec((1, N), lambda i, k: (0, 0)),
            pl.BlockSpec((1, N), lambda i, k: (0, 0)),
        ],
        out_specs=pl.BlockSpec((tm, N), lambda i, k: (i, 0)),
        scratch_shapes=[pltpu.VMEM((tm, N), jnp.float32)],
        compiler_params=pltpu.CompilerParams(
            dimension_semantics=("parallel", "arbitrary"),
            vmem_limit_bytes=VMEM_LIMIT),
    )(x, w, b, residual, gamma, beta)


def _ln_kernel(x_ref, g_ref, b_ref, o_ref, *, eps):
    # plain LayerNorm (no residual) — used for the embedding LN
    y = x_ref[...].astype(jnp.float32)
    mean = jnp.mean(y, axis=-1, keepdims=True)
    var = jnp.mean((y - mean) ** 2, axis=-1, keepdims=True)
    inv = jax.lax.rsqrt(var + eps)
    o_ref[...] = ((y - mean) * inv * g_ref[...] + b_ref[...]).astype(o_ref.dtype)


def layernorm(x, gamma, beta, *, eps=1e-12, out_dtype=None):
    """x: (M, H); gamma/beta: (1, H).  Row-tiled, pipelined, memory-bound."""
    M, H = x.shape
    out_dtype = out_dtype or x.dtype
    tm = _pick_tile(M, 1024, 16)
    kernel = functools.partial(_ln_kernel, eps=eps)
    return pl.pallas_call(
        kernel,
        out_shape=jax.ShapeDtypeStruct((M, H), out_dtype),
        grid=(M // tm,),
        in_specs=[
            pl.BlockSpec((tm, H), lambda i: (i, 0)),
            pl.BlockSpec((1, H), lambda i: (0, 0)),
            pl.BlockSpec((1, H), lambda i: (0, 0)),
        ],
        out_specs=pl.BlockSpec((tm, H), lambda i: (i, 0)),
        compiler_params=pltpu.CompilerParams(
            dimension_semantics=("parallel",),
            vmem_limit_bytes=VMEM_LIMIT),
    )(x, gamma, beta)


def _attn_group_kernel(q_ref, k_ref, v_ref, bias_ref, o_ref, *,
                       heads_in_group, head_dim):
    # One (batch, head-group) per grid step.  q/k/v_ref: (1, S, G*dh) — already
    # lane-aligned slices carved out of the packed QKV slab by the BlockSpecs.
    # 1/sqrt(dh) is folded into the Q weights at init; softmax normalization is
    # deferred to the (S, dh) context.
    bias = bias_ref[0]                      # (1, S) f32, broadcast over queries
    ctxs = []
    for h in range(heads_in_group):
        lo = h * head_dim
        q = q_ref[0, :, lo:lo + head_dim]                        # (S, dh) bf16
        k = k_ref[0, :, lo:lo + head_dim]
        v = v_ref[0, :, lo:lo + head_dim]
        s = jnp.einsum("qd,kd->qk", q, k,
                       preferred_element_type=jnp.float32) + bias  # (S, S) f32
        s = s - jnp.max(s, axis=-1, keepdims=True)
        p = jnp.exp(s)
        denom = jnp.sum(p, axis=-1, keepdims=True)               # (S, 1) f32
        ctx = jnp.dot(p.astype(v.dtype), v,
                      preferred_element_type=jnp.float32)         # (S, dh) f32
        ctxs.append(ctx * pl.reciprocal(denom, approx=True))
    # one lane-dense (S, G*dh) store
    o_ref[0] = jnp.concatenate(ctxs, axis=-1).astype(o_ref.dtype)


def _attn_slab_kernel(qkv_ref, bias_ref, o_ref, *, num_heads, head_dim):
    # Fallback: one batch element per grid step on the whole packed (S, 3H)
    # slab; used only when head_dim cannot be grouped into 128-lane blocks.
    H = num_heads * head_dim
    bias = bias_ref[0]
    ctxs = []
    for h in range(num_heads):
        lo = h * head_dim
        q = qkv_ref[0, :, lo:lo + head_dim]
        k = qkv_ref[0, :, H + lo:H + lo + head_dim]
        v = qkv_ref[0, :, 2 * H + lo:2 * H + lo + head_dim]
        s = jnp.einsum("qd,kd->qk", q, k,
                       preferred_element_type=jnp.float32) + bias
        s = s - jnp.max(s, axis=-1, keepdims=True)
        p = jnp.exp(s)
        denom = jnp.sum(p, axis=-1, keepdims=True)
        ctx = jnp.dot(p.astype(v.dtype), v, preferred_element_type=jnp.float32)
        ctxs.append(ctx * pl.reciprocal(denom, approx=True))
    o_ref[0] = jnp.concatenate(ctxs, axis=-1).astype(o_ref.dtype)


def attention(qkv, bias, num_heads, head_dim):
    """qkv: (B, S, 3H) packed [Q | K | V]; bias: (B, 1, S) f32 -> (B, S, H)."""
    B, S, threeH = qkv.shape
    H = num_heads * head_dim

    # Pick a head-group size G so G*dh is a multiple of 128 lanes.
    group = None
    if head_dim % 128 == 0:
        group = 1
    elif 128 % head_dim == 0 and num_heads % (128 // head_dim) == 0:
        group = 128 // head_dim

    # TODO(synk): for long sequences (S >= 512 on v7x, >= 1024 elsewhere) switch
    # to a flash-style (B, groups, S//tq) grid with online softmax so the (S,S)
    # scores never live in VMEM.
    # TODO(synk): on v5e, fuse the attention-output projection (and
    # residual+LayerNorm) into this kernel's epilogue to avoid the (B,S,H)
    # context HBM round-trip.
    if group is not None:
        gw = group * head_dim
        n_groups = num_heads // group
        k_off = H // gw
        v_off = 2 * k_off
        kernel = functools.partial(_attn_group_kernel,
                                   heads_in_group=group, head_dim=head_dim)
        return pl.pallas_call(
            kernel,
            out_shape=jax.ShapeDtypeStruct((B, S, H), qkv.dtype),
            grid=(B, n_groups),
            in_specs=[
                pl.BlockSpec((1, S, gw), lambda b, g: (b, 0, g)),
                pl.BlockSpec((1, S, gw), lambda b, g: (b, 0, k_off + g)),
                pl.BlockSpec((1, S, gw), lambda b, g: (b, 0, v_off + g)),
                pl.BlockSpec((1, 1, S), lambda b, g: (b, 0, 0)),
            ],
            out_specs=pl.BlockSpec((1, S, gw), lambda b, g: (b, 0, g)),
            compiler_params=pltpu.CompilerParams(
                dimension_semantics=("parallel", "parallel"),
                vmem_limit_bytes=VMEM_LIMIT),
        )(qkv, qkv, qkv, bias)

    kernel = functools.partial(_attn_slab_kernel, num_heads=num_heads,
                               head_dim=head_dim)
    return pl.pallas_call(
        kernel,
        out_shape=jax.ShapeDtypeStruct((B, S, H), qkv.dtype),
        grid=(B,),
        in_specs=[
            pl.BlockSpec((1, S, threeH), lambda b: (b, 0, 0)),
            pl.BlockSpec((1, 1, S), lambda b: (b, 0, 0)),
        ],
        out_specs=pl.BlockSpec((1, S, H), lambda b: (b, 0, 0)),
        compiler_params=pltpu.CompilerParams(
            dimension_semantics=("parallel",),
            vmem_limit_bytes=VMEM_LIMIT),
    )(qkv, bias)


# ----------------------------------------------------------------------------
# Parameter init (deterministic, N(0, 0.02) like HF initializer_range)
# ----------------------------------------------------------------------------
def init_params(key, cfg):
    H = cfg["hidden_size"]
    I = cfg["intermediate_size"]
    dh = H // cfg["num_attention_heads"]
    std = 0.02

    def dense_f32(k, fan_in, fan_out):
        w = jax.random.normal(k, (fan_in, fan_out), jnp.float32) * std
        b = jnp.zeros((1, fan_out), jnp.float32)
        return w, b

    keys = jax.random.split(key, 4 + cfg["num_hidden_layers"])
    params = {
        "word_emb": jax.random.normal(keys[0], (cfg["vocab_size"], H), jnp.float32) * std,
        "pos_emb": jax.random.normal(keys[1], (cfg["max_position_embeddings"], H), jnp.float32) * std,
        "type_emb": jax.random.normal(keys[2], (cfg["type_vocab_size"], H), jnp.float32) * std,
        "emb_ln_g": jnp.ones((1, H), jnp.float32),
        "emb_ln_b": jnp.zeros((1, H), jnp.float32),
    }
    # classifier stays f32 (computed by XLA, not Pallas)
    cw, cb = dense_f32(keys[3], H, 2)
    params["cls_w"], params["cls_b"] = cw, cb

    scale = 1.0 / math.sqrt(dh)   # folded into Q columns (zero runtime cost)
    layers = []
    for li in range(cfg["num_hidden_layers"]):
        lk = jax.random.split(keys[4 + li], 6)
        layer = {}
        qw, qb = dense_f32(lk[0], H, H)
        kw, kb = dense_f32(lk[1], H, H)
        vw, vb = dense_f32(lk[2], H, H)
        qw, qb = qw * scale, qb * scale
        # fused QKV projection: one matmul per layer instead of three
        layer["qkv_w"] = jnp.concatenate([qw, kw, vw], axis=1).astype(WEIGHT_DTYPE)
        layer["qkv_b"] = jnp.concatenate([qb, kb, vb], axis=1)   # (1, 3H) f32
        aw, ab = dense_f32(lk[3], H, H)
        layer["ao_w"], layer["ao_b"] = aw.astype(WEIGHT_DTYPE), ab
        layer["ao_ln_g"] = jnp.ones((1, H), jnp.float32)
        layer["ao_ln_b"] = jnp.zeros((1, H), jnp.float32)
        iw, ib = dense_f32(lk[4], H, I)
        layer["i_w"], layer["i_b"] = iw.astype(WEIGHT_DTYPE), ib
        ow, ob = dense_f32(lk[5], I, H)
        layer["o_w"], layer["o_b"] = ow.astype(WEIGHT_DTYPE), ob
        layer["o_ln_g"] = jnp.ones((1, H), jnp.float32)
        layer["o_ln_b"] = jnp.zeros((1, H), jnp.float32)
        layers.append(layer)
    params["layers"] = layers
    return params


# ----------------------------------------------------------------------------
# Forward pass (BertModel + Linear(hidden, 2) on the CLS token)
# ----------------------------------------------------------------------------
def bert_forward(params, input_ids, attention_mask, cfg):
    B, S = input_ids.shape
    H = cfg["hidden_size"]
    nH = cfg["num_attention_heads"]
    dh = H // nH

    # --- embeddings (gathers are plain-JAX glue; LN is a Pallas kernel) ---
    pos_ids = jnp.arange(S, dtype=jnp.int32)
    tok_type = jnp.zeros((B, S), jnp.int32)
    emb = (
        jnp.take(params["word_emb"], input_ids, axis=0)
        + params["pos_emb"][pos_ids][None, :, :]
        + jnp.take(params["type_emb"], tok_type, axis=0)
    )
    # stream bf16 into the memory-bound LN kernel (math stays f32 inside)
    emb = emb.reshape(B * S, H).astype(ACT_DTYPE)
    x = layernorm(emb, params["emb_ln_g"], params["emb_ln_b"], out_dtype=ACT_DTYPE)

    # --- HF extended attention mask: (1 - mask) * finfo.min, per key position.
    # Kept at (B, 1, S); never repeated per head (the BlockSpec re-serves it).
    neg = jnp.finfo(jnp.float32).min
    bias = ((1.0 - attention_mask.astype(jnp.float32)) * neg).reshape(B, 1, S)

    for layer in params["layers"]:
        # fused QKV projection -> per-(batch, head-group) attention
        qkv = linear(x, layer["qkv_w"], layer["qkv_b"])           # (B*S, 3H) bf16
        ctx = attention(qkv.reshape(B, S, 3 * H), bias, nH, dh)   # (B, S, H)
        ctx = ctx.reshape(B * S, H)
        # attention output dense + bias + residual + LayerNorm, fused
        x = linear_add_ln(ctx, layer["ao_w"], layer["ao_b"], x,
                          layer["ao_ln_g"], layer["ao_ln_b"])
        # FFN: dense + exact GELU fused, then dense + residual + LayerNorm fused
        inter = linear(x, layer["i_w"], layer["i_b"], gelu=True)  # (B*S, I)
        x = linear_add_ln(inter, layer["o_w"], layer["o_b"], x,
                          layer["o_ln_g"], layer["o_ln_b"])

    # --- CLS token -> classifier.  (B,H)@(H,2) is too small/narrow for Pallas
    # (lane width 2 would force masked stores); leave it to XLA in f32.
    last_hidden = x.reshape(B, S, H)
    cls = last_hidden[:, 0, :].astype(jnp.float32)                # (B, H)
    logits = cls @ params["cls_w"] + params["cls_b"]              # (B, 2)
    return logits


# ----------------------------------------------------------------------------
if __name__ == "__main__":
    # Small, forward-consistent config (same structure as
    # BertConfig(vocab_size=30522, hidden_size=768, num_attention_heads=12, ...),
    # scaled down; head_dim=64 like BERT-base so the lane-aligned head-group
    # attention path is exercised).
    cfg = dict(
        vocab_size=100,
        hidden_size=256,
        num_hidden_layers=2,
        num_attention_heads=4,
        intermediate_size=512,
        max_position_embeddings=32,
        type_vocab_size=2,
    )

    key = jax.random.PRNGKey(0)
    pkey, dkey = jax.random.split(key)
    params = init_params(pkey, cfg)

    B, S = 2, 8
    input_ids = jax.random.randint(dkey, (B, S), 0, cfg["vocab_size"], dtype=jnp.int32)
    attention_mask = jnp.array(
        [[1, 1, 1, 1, 1, 1, 0, 0],
         [1, 1, 1, 1, 1, 1, 1, 1]], dtype=jnp.int32)

    fwd = jax.jit(functools.partial(bert_forward, cfg=cfg))
    logits = fwd(params, input_ids, attention_mask)
    jax.block_until_ready(logits)

    assert logits.shape == (B, 2) and logits.dtype == jnp.float32
    assert bool(jnp.all(jnp.isfinite(logits)))
    print("KERNEL_OK")
</pallas_src>

<mosaic_0001>
module attributes {stable_mosaic.version = 11 : i64} {
  func.func @_linear_kernel(%arg0: i32, %arg1: i32, %arg2: i32, %arg3: memref<16x256xbf16, #tpu.memory_space<vmem>>, %arg4: memref<256x768xbf16, #tpu.memory_space<vmem>>, %arg5: memref<1x768xf32, #tpu.memory_space<vmem>>, %arg6: memref<16x768xbf16, #tpu.memory_space<vmem>>, %arg7: memref<16x768xf32, #tpu.memory_space<vmem>>) attributes {dimension_semantics = [#tpu.dimension_semantics<parallel>, #tpu.dimension_semantics<parallel>, #tpu.dimension_semantics<arbitrary>], iteration_bounds = array<i64: 1, 1, 1>, scalar_prefetch = 0 : i64, scratch_operands = 1 : i64, tpu.core_type = #tpu.core_type<tc>, window_params = [{transform_indices = @transform_0, window_bounds = array<i64: 16, 256>}, {transform_indices = @transform_1, window_bounds = array<i64: 256, 768>}, {transform_indices = @transform_2, window_bounds = array<i64: 1, 768>}, {transform_indices = @transform_3, window_bounds = array<i64: 16, 768>}]} {
    %c0_i32 = arith.constant 0 : i32
    %0 = arith.cmpi eq, %arg2, %c0_i32 : i32
    %1 = arith.extui %0 : i1 to i32
    %c0_i32_0 = arith.constant 0 : i32
    %2 = arith.cmpi ne, %1, %c0_i32_0 : i32
    scf.if %2 {
      %cst_10 = arith.constant 0.000000e+00 : f32
      %12 = vector.broadcast %cst_10 : f32 to vector<16x768xf32>
      %c0_11 = arith.constant 0 : index
      %c0_12 = arith.constant 0 : index
      %13 = vector.load %arg7[%c0_11, %c0_12] : memref<16x768xf32, #tpu.memory_space<vmem>>, vector<16x768xf32>
      tpu.vector_store %arg7[%c0_11, %c0_12], %12 {strides = array<i32>} : memref<16x768xf32, #tpu.memory_space<vmem>>, vector<16x768xf32>,
    } else {
    }
    %c0 = arith.constant 0 : index
    %c0_1 = arith.constant 0 : index
    %3 = vector.load %arg7[%c0, %c0_1] : memref<16x768xf32, #tpu.memory_space<vmem>>, vector<16x768xf32>
    %c0_2 = arith.constant 0 : index
    %c0_3 = arith.constant 0 : index
    %4 = vector.load %arg3[%c0_2, %c0_3] : memref<16x256xbf16, #tpu.memory_space<vmem>>, vector<16x256xbf16>
    %c0_4 = arith.constant 0 : index
    %c0_5 = arith.constant 0 : index
    %5 = vector.load %arg4[%c0_4, %c0_5] : memref<256x768xbf16, #tpu.memory_space<vmem>>, vector<256x768xbf16>
    %cst = arith.constant dense<0.000000e+00> : vector<16x768xf32>
    %6 = tpu.matmul %4, %5, %cst {dimension_numbers = #tpu.dot_dimension_numbers<[1], [0], [0], [1], [0, 0, 1, 1], [], []>} : vector<16x256xbf16>, vector<256x768xbf16>, vector<16x768xf32> -> vector<16x768xf32>
    %7 = arith.addf %3, %6 : vector<16x768xf32>
    %c0_6 = arith.constant 0 : index
    %c0_7 = arith.constant 0 : index
    %8 = vector.load %arg7[%c0_6, %c0_7] : memref<16x768xf32, #tpu.memory_space<vmem>>, vector<16x768xf32>
    tpu.vector_store %arg7[%c0_6, %c0_7], %7 {strides = array<i32>} : memref<16x768xf32, #tpu.memory_space<vmem>>, vector<16x768xf32>,
    %c0_i32_8 = arith.constant 0 : i32
    %9 = arith.cmpi eq, %arg2, %c0_i32_8 : i32
    %10 = arith.extui %9 : i1 to i32
    %c0_i32_9 = arith.constant 0 : i32
    %11 = arith.cmpi ne, %10, %c0_i32_9 : i32
    scf.if %11 {
      %c0_10 = arith.constant 0 : index
      %c0_11 = arith.constant 0 : index
      %12 = vector.load %arg7[%c0_10, %c0_11] : memref<16x768xf32, #tpu.memory_space<vmem>>, vector<16x768xf32>
      %c0_12 = arith.constant 0 : index
      %c0_13 = arith.constant 0 : index
      %13 = vector.load %arg5[%c0_12, %c0_13] : memref<1x768xf32, #tpu.memory_space<vmem>>, vector<1x768xf32>
      %14 = vector.broadcast %13 : vector<1x768xf32> to vector<16x768xf32>
      %15 = arith.addf %12, %14 : vector<16x768xf32>
      %16 = arith.truncf %15 : vector<16x768xf32> to vector<16x768xbf16>
      %c0_14 = arith.constant 0 : index
      %c0_15 = arith.constant 0 : index
      %17 = vector.load %arg6[%c0_14, %c0_15] : memref<16x768xbf16, #tpu.memory_space<vmem>>, vector<16x768xbf16>
      tpu.vector_store %arg6[%c0_14, %c0_15], %16 {strides = array<i32>} : memref<16x768xbf16, #tpu.memory_space<vmem>>, vector<16x768xbf16>,
    } else {
    }
    return
  }
  func.func @transform_0(%arg0: i32, %arg1: i32, %arg2: i32) -> (i32, i32) {
    %c0_i32 = arith.constant 0 : i32
    return %arg0, %arg2 : i32, i32
  }
  func.func @transform_1(%arg0: i32, %arg1: i32, %arg2: i32) -> (i32, i32) {
    %c0_i32 = arith.constant 0 : i32
    return %arg2, %arg1 : i32, i32
  }
  func.func @transform_2(%arg0: i32, %arg1: i32, %arg2: i32) -> (i32, i32) {
    %c0_i32 = arith.constant 0 : i32
    %c0_i32_0 = arith.constant 0 : i32
    return %c0_i32, %arg1 : i32, i32
  }
  func.func @transform_3(%arg0: i32, %arg1: i32, %arg2: i32) -> (i32, i32) {
    %c0_i32 = arith.constant 0 : i32
    return %arg0, %arg1 : i32, i32
  }
}

module attributes {stable_mosaic.version = 11 : i64} {
  func.func @_ln_kernel(%arg0: i32, %arg1: memref<16x256xbf16, #tpu.memory_space<vmem>>, %arg2: memref<1x256xf32, #tpu.memory_space<vmem>>, %arg3: memref<1x256xf32, #tpu.memory_space<vmem>>, %arg4: memref<16x256xbf16, #tpu.memory_space<vmem>>) attributes {dimension_semantics = [#tpu.dimension_semantics<parallel>], iteration_bounds = array<i64: 1>, scalar_prefetch = 0 : i64, scratch_operands = 0 : i64, tpu.core_type = #tpu.core_type<tc>, window_params = [{transform_indices = @transform_0, window_bounds = array<i64: 16, 256>}, {pipeline_mode = #tpu.pipeline_mode<synchronous>, transform_indices = @transform_1, window_bounds = array<i64: 1, 256>}, {pipeline_mode = #tpu.pipeline_mode<synchronous>, transform_indices = @transform_2, window_bounds = array<i64: 1, 256>}, {transform_indices = @transform_3, window_bounds = array<i64: 16, 256>}]} {
    %c0 = arith.constant 0 : index
    %c0_0 = arith.constant 0 : index
    %0 = vector.load %arg1[%c0, %c0_0] : memref<16x256xbf16, #tpu.memory_space<vmem>>, vector<16x256xbf16>
    %1 = arith.extf %0 : vector<16x256xbf16> to vector<16x256xf32>
    %cst = arith.constant dense<0.000000e+00> : vector<16xf32>
    %2 = vector.multi_reduction <add>, %1, %cst [1] : vector<16x256xf32> to vector<16xf32>
    %3 = vector.shape_cast %2 : vector<16xf32> to vector<16x1xf32>
    %cst_1 = arith.constant 2.560000e+02 : f32
    %4 = vector.broadcast %cst_1 : f32 to vector<16x1xf32>
    %5 = arith.divf %3, %4 : vector<16x1xf32>
    %6 = vector.broadcast %5 : vector<16x1xf32> to vector<16x256xf32>
    %7 = arith.subf %1, %6 : vector<16x256xf32>
    %8 = arith.mulf %7, %7 : vector<16x256xf32>
    %cst_2 = arith.constant dense<0.000000e+00> : vector<16xf32>
    %9 = vector.multi_reduction <add>, %8, %cst_2 [1] : vector<16x256xf32> to vector<16xf32>
    %10 = vector.shape_cast %9 : vector<16xf32> to vector<16x1xf32>
    %cst_3 = arith.constant 2.560000e+02 : f32
    %11 = vector.broadcast %cst_3 : f32 to vector<16x1xf32>
    %12 = arith.divf %10, %11 : vector<16x1xf32>
    %cst_4 = arith.constant 9.99999996E-13 : f32
    %13 = vector.broadcast %cst_4 : f32 to vector<16x1xf32>
    %14 = arith.addf %12, %13 : vector<16x1xf32>
    %15 = math.rsqrt %14 : vector<16x1xf32>
    %16 = vector.broadcast %5 : vector<16x1xf32> to vector<16x256xf32>
    %17 = arith.subf %1, %16 : vector<16x256xf32>
    %18 = vector.broadcast %15 : vector<16x1xf32> to vector<16x256xf32>
    %19 = arith.mulf %17, %18 : vector<16x256xf32>
    %c0_5 = arith.constant 0 : index
    %c0_6 = arith.constant 0 : index
    %20 = vector.load %arg2[%c0_5, %c0_6] : memref<1x256xf32, #tpu.memory_space<vmem>>, vector<1x256xf32>
    %21 = vector.broadcast %20 : vector<1x256xf32> to vector<16x256xf32>
    %22 = arith.mulf %19, %21 : vector<16x256xf32>
    %c0_7 = arith.constant 0 : index
    %c0_8 = arith.constant 0 : index
    %23 = vector.load %arg3[%c0_7, %c0_8] : memref<1x256xf32, #tpu.memory_space<vmem>>, vector<1x256xf32>
    %24 = vector.broadcast %23 : vector<1x256xf32> to vector<16x256xf32>
    %25 = arith.addf %22, %24 : vector<16x256xf32>
    %26 = arith.truncf %25 : vector<16x256xf32> to vector<16x256xbf16>
    %c0_9 = arith.constant 0 : index
    %c0_10 = arith.constant 0 : index
    %27 = vector.load %arg4[%c0_9, %c0_10] : memref<16x256xbf16, #tpu.memory_space<vmem>>, vector<16x256xbf16>
    tpu.vector_store %arg4[%c0_9, %c0_10], %26 {strides = array<i32>} : memref<16x256xbf16, #tpu.memory_space<vmem>>, vector<16x256xbf16>,
    return
  }
  func.func @transform_0(%arg0: i32) -> (i32, i32) {
    %c0_i32 = arith.constant 0 : i32
    %c0_i32_0 = arith.constant 0 : i32
    return %arg0, %c0_i32 : i32, i32
  }
  func.func @transform_1(%arg0: i32) -> (i32, i32) {
    %c0_i32 = arith.constant 0 : i32
    %c0_i32_0 = arith.constant 0 : i32
    %c0_i32_1 = arith.constant 0 : i32
    return %c0_i32, %c0_i32_0 : i32, i32
  }
  func.func @transform_2(%arg0: i32) -> (i32, i32) {
    %c0_i32 = arith.constant 0 : i32
    %c0_i32_0 = arith.constant 0 : i32
    %c0_i32_1 = arith.constant 0 : i32
    return %c0_i32, %c0_i32_0 : i32, i32
  }
  func.func @transform_3(%arg0: i32) -> (i32, i32) {
    %c0_i32 = arith.constant 0 : i32
    %c0_i32_0 = arith.constant 0 : i32
    return %arg0, %c0_i32 : i32, i32
  }
}

module attributes {stable_mosaic.version = 11 : i64} {
  func.func @_linear_add_ln_kernel(%arg0: i32, %arg1: i32, %arg2: memref<16x256xbf16, #tpu.memory_space<vmem>>, %arg3: memref<256x256xbf16, #tpu.memory_space<vmem>>, %arg4: memref<1x256xf32, #tpu.memory_space<vmem>>, %arg5: memref<16x256xbf16, #tpu.memory_space<vmem>>, %arg6: memref<1x256xf32, #tpu.memory_space<vmem>>, %arg7: memref<1x256xf32, #tpu.memory_space<vmem>>, %arg8: memref<16x256xbf16, #tpu.memory_space<vmem>>, %arg9: memref<16x256xf32, #tpu.memory_space<vmem>>) attributes {dimension_semantics = [#tpu.dimension_semantics<parallel>, #tpu.dimension_semantics<arbitrary>], iteration_bounds = array<i64: 1, 1>, scalar_prefetch = 0 : i64, scratch_operands = 1 : i64, tpu.core_type = #tpu.core_type<tc>, window_params = [{transform_indices = @transform_0, window_bounds = array<i64: 16, 256>}, {transform_indices = @transform_1, window_bounds = array<i64: 256, 256>}, {pipeline_mode = #tpu.pipeline_mode<synchronous>, transform_indices = @transform_2, window_bounds = array<i64: 1, 256>}, {transform_indices = @transform_3, window_bounds = array<i64: 16, 256>}, {pipeline_mode = #tpu.pipeline_mode<synchronous>, transform_indices = @transform_4, window_bounds = array<i64: 1, 256>}, {pipeline_mode = #tpu.pipeline_mode<synchronous>, transform_indices = @transform_5, window_bounds = array<i64: 1, 256>}, {transform_indices = @transform_6, window_bounds = array<i64: 16, 256>}]} {
    %c0_i32 = arith.constant 0 : i32
    %0 = arith.cmpi eq, %arg1, %c0_i32 : i32
    %1 = arith.extui %0 : i1 to i32
    %c0_i32_0 = arith.constant 0 : i32
    %2 = arith.cmpi ne, %1, %c0_i32_0 : i32
    scf.if %2 {
      %cst_10 = arith.constant 0.000000e+00 : f32
      %12 = vector.broadcast %cst_10 : f32 to vector<16x256xf32>
      %c0_11 = arith.constant 0 : index
      %c0_12 = arith.constant 0 : index
      %13 = vector.load %arg9[%c0_11, %c0_12] : memref<16x256xf32, #tpu.memory_space<vmem>>, vector<16x256xf32>
      tpu.vector_store %arg9[%c0_11, %c0_12], %12 {strides = array<i32>} : memref<16x256xf32, #tpu.memory_space<vmem>>, vector<16x256xf32>,
    } else {
    }
    %c0 = arith.constant 0 : index
    %c0_1 = arith.constant 0 : index
    %3 = vector.load %arg9[%c0, %c0_1] : memref<16x256xf32, #tpu.memory_space<vmem>>, vector<16x256xf32>
    %c0_2 = arith.constant 0 : index
    %c0_3 = arith.constant 0 : index
    %4 = vector.load %arg2[%c0_2, %c0_3] : memref<16x256xbf16, #tpu.memory_space<vmem>>, vector<16x256xbf16>
    %c0_4 = arith.constant 0 : index
    %c0_5 = arith.constant 0 : index
    %5 = vector.load %arg3[%c0_4, %c0_5] : memref<256x256xbf16, #tpu.memory_space<vmem>>, vector<256x256xbf16>
    %cst = arith.constant dense<0.000000e+00> : vector<16x256xf32>
    %6 = tpu.matmul %4, %5, %cst {dimension_numbers = #tpu.dot_dimension_numbers<[1], [0], [0], [1], [0, 0, 1, 1], [], []>} : vector<16x256xbf16>, vector<256x256xbf16>, vector<16x256xf32> -> vector<16x256xf32>
    %7 = arith.addf %3, %6 : vector<16x256xf32>
    %c0_6 = arith.constant 0 : index
    %c0_7 = arith.constant 0 : index
    %8 = vector.load %arg9[%c0_6, %c0_7] : memref<16x256xf32, #tpu.memory_space<vmem>>, vector<16x256xf32>
    tpu.vector_store %arg9[%c0_6, %c0_7], %7 {strides = array<i32>} : memref<16x256xf32, #tpu.memory_space<vmem>>, vector<16x256xf32>,
    %c0_i32_8 = arith.constant 0 : i32
    %9 = arith.cmpi eq, %arg1, %c0_i32_8 : i32
    %10 = arith.extui %9 : i1 to i32
    %c0_i32_9 = arith.constant 0 : i32
    %11 = arith.cmpi ne, %10, %c0_i32_9 : i32
    scf.if %11 {
      %c0_10 = arith.constant 0 : index
      %c0_11 = arith.constant 0 : index
      %12 = vector.load %arg9[%c0_10, %c0_11] : memref<16x256xf32, #tpu.memory_space<vmem>>, vector<16x256xf32>
      %c0_12 = arith.constant 0 : index
      %c0_13 = arith.constant 0 : index
      %13 = vector.load %arg4[%c0_12, %c0_13] : memref<1x256xf32, #tpu.memory_space<vmem>>, vector<1x256xf32>
      %14 = vector.broadcast %13 : vector<1x256xf32> to vector<16x256xf32>
      %15 = arith.addf %12, %14 : vector<16x256xf32>
      %c0_14 = arith.constant 0 : index
      %c0_15 = arith.constant 0 : index
      %16 = vector.load %arg5[%c0_14, %c0_15] : memref<16x256xbf16, #tpu.memory_space<vmem>>, vector<16x256xbf16>
      %17 = arith.extf %16 : vector<16x256xbf16> to vector<16x256xf32>
      %18 = arith.addf %15, %17 : vector<16x256xf32>
      %cst_16 = arith.constant dense<0.000000e+00> : vector<16xf32>
      %19 = vector.multi_reduction <add>, %18, %cst_16 [1] : vector<16x256xf32> to vector<16xf32>
      %20 = vector.shape_cast %19 : vector<16xf32> to vector<16x1xf32>
      %cst_17 = arith.constant 2.560000e+02 : f32
      %21 = vector.broadcast %cst_17 : f32 to vector<16x1xf32>
      %22 = arith.divf %20, %21 : vector<16x1xf32>
      %23 = vector.broadcast %22 : vector<16x1xf32> to vector<16x256xf32>
      %24 = arith.subf %18, %23 : vector<16x256xf32>
      %25 = arith.mulf %24, %24 : vector<16x256xf32>
      %cst_18 = arith.constant dense<0.000000e+00> : vector<16xf32>
      %26 = vector.multi_reduction <add>, %25, %cst_18 [1] : vector<16x256xf32> to vector<16xf32>
      %27 = vector.shape_cast %26 : vector<16xf32> to vector<16x1xf32>
      %cst_19 = arith.constant 2.560000e+02 : f32
      %28 = vector.broadcast %cst_19 : f32 to vector<16x1xf32>
      %29 = arith.divf %27, %28 : vector<16x1xf32>
      %cst_20 = arith.constant 9.99999996E-13 : f32
      %30 = vector.broadcast %cst_20 : f32 to vector<16x1xf32>
      %31 = arith.addf %29, %30 : vector<16x1xf32>
      %32 = math.rsqrt %31 : vector<16x1xf32>
      %33 = vector.broadcast %22 : vector<16x1xf32> to vector<16x256xf32>
      %34 = arith.subf %18, %33 : vector<16x256xf32>
      %35 = vector.broadcast %32 : vector<16x1xf32> to vector<16x256xf32>
      %36 = arith.mulf %34, %35 : vector<16x256xf32>
      %c0_21 = arith.constant 0 : index
      %c0_22 = arith.constant 0 : index
      %37 = vector.load %arg6[%c0_21, %c0_22] : memref<1x256xf32, #tpu.memory_space<vmem>>, vector<1x256xf32>
      %38 = vector.broadcast %37 : vector<1x256xf32> to vector<16x256xf32>
      %39 = arith.mulf %36, %38 : vector<16x256xf32>
      %c0_23 = arith.constant 0 : index
      %c0_24 = arith.constant 0 : index
      %40 = vector.load %arg7[%c0_23, %c0_24] : memref<1x256xf32, #tpu.memory_space<vmem>>, vector<1x256xf32>
      %41 = vector.broadcast %40 : vector<1x256xf32> to vector<16x256xf32>
      %42 = arith.addf %39, %41 : vector<16x256xf32>
      %43 = arith.truncf %42 : vector<16x256xf32> to vector<16x256xbf16>
      %c0_25 = arith.constant 0 : index
      %c0_26 = arith.constant 0 : index
      %44 = vector.load %arg8[%c0_25, %c0_26] : memref<16x256xbf16, #tpu.memory_space<vmem>>, vector<16x256xbf16>
      tpu.vector_store %arg8[%c0_25, %c0_26], %43 {strides = array<i32>} : memref<16x256xbf16, #tpu.memory_space<vmem>>, vector<16x256xbf16>,
    } else {
    }
    return
  }
  func.func @transform_0(%arg0: i32, %arg1: i32) -> (i32, i32) {
    %c0_i32 = arith.constant 0 : i32
    return %arg0, %arg1 : i32, i32
  }
  func.func @transform_1(%arg0: i32, %arg1: i32) -> (i32, i32) {
    %c0_i32 = arith.constant 0 : i32
    %c0_i32_0 = arith.constant 0 : i32
    return %arg1, %c0_i32 : i32, i32
  }
  func.func @transform_2(%arg0: i32, %arg1: i32) -> (i32, i32) {
    %c0_i32 = arith.constant 0 : i32
    %c0_i32_0 = arith.constant 0 : i32
    %c0_i32_1 = arith.constant 0 : i32
    return %c0_i32, %c0_i32_0 : i32, i32
  }
  func.func @transform_3(%arg0: i32, %arg1: i32) -> (i32, i32) {
    %c0_i32 = arith.constant 0 : i32
    %c0_i32_0 = arith.constant 0 : i32
    return %arg0, %c0_i32 : i32, i32
  }
  func.func @transform_4(%arg0: i32, %arg1: i32) -> (i32, i32) {
    %c0_i32 = arith.constant 0 : i32
    %c0_i32_0 = arith.constant 0 : i32
    %c0_i32_1 = arith.constant 0 : i32
    return %c0_i32, %c0_i32_0 : i32, i32
  }
  func.func @transform_5(%arg0: i32, %arg1: i32) -> (i32, i32) {
    %c0_i32 = arith.constant 0 : i32
    %c0_i32_0 = arith.constant 0 : i32
    %c0_i32_1 = arith.constant 0 : i32
    return %c0_i32, %c0_i32_0 : i32, i32
  }
  func.func @transform_6(%arg0: i32, %arg1: i32) -> (i32, i32) {
    %c0_i32 = arith.constant 0 : i32
    %c0_i32_0 = arith.constant 0 : i32
    return %arg0, %c0_i32 : i32, i32
  }
}

module attributes {stable_mosaic.version = 11 : i64} {
  func.func @_attn_group_kernel(%arg0: i32, %arg1: i32, %arg2: memref<1x8x128xbf16, #tpu.memory_space<vmem>>, %arg3: memref<1x8x128xbf16, #tpu.memory_space<vmem>>, %arg4: memref<1x8x128xbf16, #tpu.memory_space<vmem>>, %arg5: memref<1x1x8xf32, #tpu.memory_space<vmem>>, %arg6: memref<1x8x128xbf16, #tpu.memory_space<vmem>>) attributes {dimension_semantics = [#tpu.dimension_semantics<parallel>, #tpu.dimension_semantics<parallel>], iteration_bounds = array<i64: 2, 2>, scalar_prefetch = 0 : i64, scratch_operands = 0 : i64, tpu.core_type = #tpu.core_type<tc>, window_params = [{transform_indices = @transform_0, window_bounds = array<i64: 1, 8, 128>}, {transform_indices = @transform_1, window_bounds = array<i64: 1, 8, 128>}, {transform_indices = @transform_2, window_bounds = array<i64: 1, 8, 128>}, {transform_indices = @transform_3, window_bounds = array<i64: 1, 1, 8>}, {transform_indices = @transform_4, window_bounds = array<i64: 1, 8, 128>}]} {
    %c0 = arith.constant 0 : index
    %c0_0 = arith.constant 0 : index
    %c0_1 = arith.constant 0 : index
    %0 = vector.load %arg5[%c0, %c0_0, %c0_1] : memref<1x1x8xf32, #tpu.memory_space<vmem>>, vector<1x1x8xf32>
    %1 = vector.shape_cast %0 : vector<1x1x8xf32> to vector<1x8xf32>
    %c0_2 = arith.constant 0 : index
    %c0_3 = arith.constant 0 : index
    %c0_4 = arith.constant 0 : index
    %2 = vector.load %arg2[%c0_2, %c0_3, %c0_4] : memref<1x8x128xbf16, #tpu.memory_space<vmem>>, vector<1x8x64xbf16>
    %3 = vector.shape_cast %2 : vector<1x8x64xbf16> to vector<8x64xbf16>
    %c0_5 = arith.constant 0 : index
    %c0_6 = arith.constant 0 : index
    %c0_7 = arith.constant 0 : index
    %4 = vector.load %arg3[%c0_5, %c0_6, %c0_7] : memref<1x8x128xbf16, #tpu.memory_space<vmem>>, vector<1x8x64xbf16>
    %5 = vector.shape_cast %4 : vector<1x8x64xbf16> to vector<8x64xbf16>
    %c0_8 = arith.constant 0 : index
    %c0_9 = arith.constant 0 : index
    %c0_10 = arith.constant 0 : index
    %6 = vector.load %arg4[%c0_8, %c0_9, %c0_10] : memref<1x8x128xbf16, #tpu.memory_space<vmem>>, vector<1x8x64xbf16>
    %7 = vector.shape_cast %6 : vector<1x8x64xbf16> to vector<8x64xbf16>
    "tpu.trace_start"() <{level = 10 : i32, message = "qd,kd->qk"}> : () -> ()
    %cst = arith.constant dense<0.000000e+00> : vector<8x8xf32>
    %8 = tpu.matmul %3, %5, %cst {dimension_numbers = #tpu.dot_dimension_numbers<[1], [1], [0], [0], [0, 0, 1, 0], [], []>} : vector<8x64xbf16>, vector<8x64xbf16>, vector<8x8xf32> -> vector<8x8xf32>
    "tpu.trace_stop"() : () -> ()
    %9 = vector.broadcast %1 : vector<1x8xf32> to vector<8x8xf32>
    %10 = arith.addf %8, %9 : vector<8x8xf32>
    %cst_11 = arith.constant dense<0xFF800000> : vector<8xf32>
    %11 = vector.multi_reduction <maximumf>, %10, %cst_11 [1] : vector<8x8xf32> to vector<8xf32>
    %12 = vector.shape_cast %11 : vector<8xf32> to vector<8x1xf32>
    %13 = vector.broadcast %12 : vector<8x1xf32> to vector<8x8xf32>
    %14 = arith.subf %10, %13 : vector<8x8xf32>
    %15 = math.exp %14 : vector<8x8xf32>
    %cst_12 = arith.constant dense<0.000000e+00> : vector<8xf32>
    %16 = vector.multi_reduction <add>, %15, %cst_12 [1] : vector<8x8xf32> to vector<8xf32>
    %17 = vector.shape_cast %16 : vector<8xf32> to vector<8x1xf32>
    %18 = arith.truncf %15 : vector<8x8xf32> to vector<8x8xbf16>
    %cst_13 = arith.constant dense<0.000000e+00> : vector<8x64xf32>
    %19 = tpu.matmul %18, %7, %cst_13 {dimension_numbers = #tpu.dot_dimension_numbers<[1], [0], [0], [1], [0, 0, 1, 1], [], []>} : vector<8x8xbf16>, vector<8x64xbf16>, vector<8x64xf32> -> vector<8x64xf32>
    %20 = tpu.reciprocal %17 {approx = true} : vector<8x1xf32> -> vector<8x1xf32>
    %21 = vector.broadcast %20 : vector<8x1xf32> to vector<8x64xf32>
    %22 = arith.mulf %19, %21 : vector<8x64xf32>
    %c0_14 = arith.constant 0 : index
    %c0_15 = arith.constant 0 : index
    %c64 = arith.constant 64 : index
    %23 = vector.load %arg2[%c0_14, %c0_15, %c64] : memref<1x8x128xbf16, #tpu.memory_space<vmem>>, vector<1x8x64xbf16>
    %24 = vector.shape_cast %23 : vector<1x8x64xbf16> to vector<8x64xbf16>
    %c0_16 = arith.constant 0 : index
    %c0_17 = arith.constant 0 : index
    %c64_18 = arith.constant 64 : index
    %25 = vector.load %arg3[%c0_16, %c0_17, %c64_18] : memref<1x8x128xbf16, #tpu.memory_space<vmem>>, vector<1x8x64xbf16>
    %26 = vector.shape_cast %25 : vector<1x8x64xbf16> to vector<8x64xbf16>
    %c0_19 = arith.constant 0 : index
    %c0_20 = arith.constant 0 : index
    %c64_21 = arith.constant 64 : index
    %27 = vector.load %arg4[%c0_19, %c0_20, %c64_21] : memref<1x8x128xbf16, #tpu.memory_space<vmem>>, vector<1x8x64xbf16>
    %28 = vector.shape_cast %27 : vector<1x8x64xbf16> to vector<8x64xbf16>
    "tpu.trace_start"() <{level = 10 : i32, message = "qd,kd->qk"}> : () -> ()
    %cst_22 = arith.constant dense<0.000000e+00> : vector<8x8xf32>
    %29 = tpu.matmul %24, %26, %cst_22 {dimension_numbers = #tpu.dot_dimension_numbers<[1], [1], [0], [0], [0, 0, 1, 0], [], []>} : vector<8x64xbf16>, vector<8x64xbf16>, vector<8x8xf32> -> vector<8x8xf32>
    "tpu.trace_stop"() : () -> ()
    %30 = vector.broadcast %1 : vector<1x8xf32> to vector<8x8xf32>
    %31 = arith.addf %29, %30 : vector<8x8xf32>
    %cst_23 = arith.constant dense<0xFF800000> : vector<8xf32>
    %32 = vector.multi_reduction <maximumf>, %31, %cst_23 [1] : vector<8x8xf32> to vector<8xf32>
    %33 = vector.shape_cast %32 : vector<8xf32> to vector<8x1xf32>
    %34 = vector.broadcast %33 : vector<8x1xf32> to vector<8x8xf32>
    %35 = arith.subf %31, %34 : vector<8x8xf32>
    %36 = math.exp %35 : vector<8x8xf32>
    %cst_24 = arith.constant dense<0.000000e+00> : vector<8xf32>
    %37 = vector.multi_reduction <add>, %36, %cst_24 [1] : vector<8x8xf32> to vector<8xf32>
    %38 = vector.shape_cast %37 : vector<8xf32> to vector<8x1xf32>
    %39 = arith.truncf %36 : vector<8x8xf32> to vector<8x8xbf16>
    %cst_25 = arith.constant dense<0.000000e+00> : vector<8x64xf32>
    %40 = tpu.matmul %39, %28, %cst_25 {dimension_numbers = #tpu.dot_dimension_numbers<[1], [0], [0], [1], [0, 0, 1, 1], [], []>} : vector<8x8xbf16>, vector<8x64xbf16>, vector<8x64xf32> -> vector<8x64xf32>
    %41 = tpu.reciprocal %38 {approx = true} : vector<8x1xf32> -> vector<8x1xf32>
    %42 = vector.broadcast %41 : vector<8x1xf32> to vector<8x64xf32>
    %43 = arith.mulf %40, %42 : vector<8x64xf32>
    %44 = tpu.concatenate %22, %43 in 1 : vector<8x64xf32>, vector<8x64xf32> -> vector<8x128xf32>
    %45 = arith.truncf %44 : vector<8x128xf32> to vector<8x128xbf16>
    %c0_26 = arith.constant 0 : index
    %c0_27 = arith.constant 0 : index
    %c0_28 = arith.constant 0 : index
    %46 = vector.load %arg6[%c0_26, %c0_27, %c0_28] : memref<1x8x128xbf16, #tpu.memory_space<vmem>>, vector<1x8x128xbf16>
    %47 = vector.shape_cast %46 : vector<1x8x128xbf16> to vector<8x128xbf16>
    %48 = vector.shape_cast %45 : vector<8x128xbf16> to vector<1x8x128xbf16>
    tpu.vector_store %arg6[%c0_26, %c0_27, %c0_28], %48 {strides = array<i32>} : memref<1x8x128xbf16, #tpu.memory_space<vmem>>, vector<1x8x128xbf16>,
    return
  }
  func.func @transform_0(%arg0: i32, %arg1: i32) -> (i32, i32, i32) {
    %c0_i32 = arith.constant 0 : i32
    %c0_i32_0 = arith.constant 0 : i32
    return %arg0, %c0_i32, %arg1 : i32, i32, i32
  }
  func.func @transform_1(%arg0: i32, %arg1: i32) -> (i32, i32, i32) {
    %c2_i32 = arith.constant 2 : i32
    %0 = arith.addi %c2_i32, %arg1 : i32
    %c0_i32 = arith.constant 0 : i32
    %c0_i32_0 = arith.constant 0 : i32
    return %arg0, %c0_i32, %0 : i32, i32, i32
  }
  func.func @transform_2(%arg0: i32, %arg1: i32) -> (i32, i32, i32) {
    %c4_i32 = arith.constant 4 : i32
    %0 = arith.addi %c4_i32, %arg1 : i32
    %c0_i32 = arith.constant 0 : i32
    %c0_i32_0 = arith.constant 0 : i32
    return %arg0, %c0_i32, %0 : i32, i32, i32
  }
  func.func @transform_3(%arg0: i32, %arg1: i32) -> (i32, i32, i32) {
    %c0_i32 = arith.constant 0 : i32
    %c0_i32_0 = arith.constant 0 : i32
    %c0_i32_1 = arith.constant 0 : i32
    return %arg0, %c0_i32, %c0_i32_0 : i32, i32, i32
  }
  func.func @transform_4(%arg0: i32, %arg1: i32) -> (i32, i32, i32) {
    %c0_i32 = arith.constant 0 : i32
    %c0_i32_0 = arith.constant 0 : i32
    return %arg0, %c0_i32, %arg1 : i32, i32, i32
  }
}

module attributes {stable_mosaic.version = 11 : i64} {
  func.func @_linear_kernel(%arg0: i32, %arg1: i32, %arg2: i32, %arg3: memref<16x256xbf16, #tpu.memory_space<vmem>>, %arg4: memref<256x512xbf16, #tpu.memory_space<vmem>>, %arg5: memref<1x512xf32, #tpu.memory_space<vmem>>, %arg6: memref<16x512xbf16, #tpu.memory_space<vmem>>, %arg7: memref<16x512xf32, #tpu.memory_space<vmem>>) attributes {dimension_semantics = [#tpu.dimension_semantics<parallel>, #tpu.dimension_semantics<parallel>, #tpu.dimension_semantics<arbitrary>], iteration_bounds = array<i64: 1, 1, 1>, scalar_prefetch = 0 : i64, scratch_operands = 1 : i64, tpu.core_type = #tpu.core_type<tc>, window_params = [{transform_indices = @transform_0, window_bounds = array<i64: 16, 256>}, {transform_indices = @transform_1, window_bounds = array<i64: 256, 512>}, {transform_indices = @transform_2, window_bounds = array<i64: 1, 512>}, {transform_indices = @transform_3, window_bounds = array<i64: 16, 512>}]} {
    %c0_i32 = arith.constant 0 : i32
    %0 = arith.cmpi eq, %arg2, %c0_i32 : i32
    %1 = arith.extui %0 : i1 to i32
    %c0_i32_0 = arith.constant 0 : i32
    %2 = arith.cmpi ne, %1, %c0_i32_0 : i32
    scf.if %2 {
      %cst_10 = arith.constant 0.000000e+00 : f32
      %12 = vector.broadcast %cst_10 : f32 to vector<16x512xf32>
      %c0_11 = arith.constant 0 : index
      %c0_12 = arith.constant 0 : index
      %13 = vector.load %arg7[%c0_11, %c0_12] : memref<16x512xf32, #tpu.memory_space<vmem>>, vector<16x512xf32>
      tpu.vector_store %arg7[%c0_11, %c0_12], %12 {strides = array<i32>} : memref<16x512xf32, #tpu.memory_space<vmem>>, vector<16x512xf32>,
    } else {
    }
    %c0 = arith.constant 0 : index
    %c0_1 = arith.constant 0 : index
    %3 = vector.load %arg7[%c0, %c0_1] : memref<16x512xf32, #tpu.memory_space<vmem>>, vector<16x512xf32>
    %c0_2 = arith.constant 0 : index
    %c0_3 = arith.constant 0 : index
    %4 = vector.load %arg3[%c0_2, %c0_3] : memref<16x256xbf16, #tpu.memory_space<vmem>>, vector<16x256xbf16>
    %c0_4 = arith.constant 0 : index
    %c0_5 = arith.constant 0 : index
    %5 = vector.load %arg4[%c0_4, %c0_5] : memref<256x512xbf16, #tpu.memory_space<vmem>>, vector<256x512xbf16>
    %cst = arith.constant dense<0.000000e+00> : vector<16x512xf32>
    %6 = tpu.matmul %4, %5, %cst {dimension_numbers = #tpu.dot_dimension_numbers<[1], [0], [0], [1], [0, 0, 1, 1], [], []>} : vector<16x256xbf16>, vector<256x512xbf16>, vector<16x512xf32> -> vector<16x512xf32>
    %7 = arith.addf %3, %6 : vector<16x512xf32>
    %c0_6 = arith.constant 0 : index
    %c0_7 = arith.constant 0 : index
    %8 = vector.load %arg7[%c0_6, %c0_7] : memref<16x512xf32, #tpu.memory_space<vmem>>, vector<16x512xf32>
    tpu.vector_store %arg7[%c0_6, %c0_7], %7 {strides = array<i32>} : memref<16x512xf32, #tpu.memory_space<vmem>>, vector<16x512xf32>,
    %c0_i32_8 = arith.constant 0 : i32
    %9 = arith.cmpi eq, %arg2, %c0_i32_8 : i32
    %10 = arith.extui %9 : i1 to i32
    %c0_i32_9 = arith.constant 0 : i32
    %11 = arith.cmpi ne, %10, %c0_i32_9 : i32
    scf.if %11 {
      %c0_10 = arith.constant 0 : index
      %c0_11 = arith.constant 0 : index
      %12 = vector.load %arg7[%c0_10, %c0_11] : memref<16x512xf32, #tpu.memory_space<vmem>>, vector<16x512xf32>
      %c0_12 = arith.constant 0 : index
      %c0_13 = arith.constant 0 : index
      %13 = vector.load %arg5[%c0_12, %c0_13] : memref<1x512xf32, #tpu.memory_space<vmem>>, vector<1x512xf32>
      %14 = vector.broadcast %13 : vector<1x512xf32> to vector<16x512xf32>
      %15 = arith.addf %12, %14 : vector<16x512xf32>
      %cst_14 = arith.constant 5.000000e-01 : f32
      %16 = vector.broadcast %cst_14 : f32 to vector<16x512xf32>
      %17 = arith.mulf %16, %15 : vector<16x512xf32>
      %cst_15 = arith.constant 0.707106769 : f32
      %18 = vector.broadcast %cst_15 : f32 to vector<16x512xf32>
      %19 = arith.mulf %15, %18 : vector<16x512xf32>
      %20 = math.absf %19 : vector<16x512xf32>
      %cst_16 = arith.constant 0.327591091 : f32
      %21 = vector.broadcast %cst_16 : f32 to vector<16x512xf32>
      %22 = arith.mulf %21, %20 : vector<16x512xf32>
      %cst_17 = arith.constant 1.000000e+00 : f32
      %23 = vector.broadcast %cst_17 : f32 to vector<16x512xf32>
      %24 = arith.addf %23, %22 : vector<16x512xf32>
      %25 = tpu.reciprocal %24 {approx = true} : vector<16x512xf32> -> vector<16x512xf32>
      %cst_18 = arith.constant 1.06140542 : f32
      %26 = vector.broadcast %cst_18 : f32 to vector<16x512xf32>
      %27 = arith.mulf %26, %25 : vector<16x512xf32>
      %cst_19 = arith.constant -1.45315206 : f32
      %28 = vector.broadcast %cst_19 : f32 to vector<16x512xf32>
      %29 = arith.addf %27, %28 : vector<16x512xf32>
      %30 = arith.mulf %29, %25 : vector<16x512xf32>
      %cst_20 = arith.constant 1.42141378 : f32
      %31 = vector.broadcast %cst_20 : f32 to vector<16x512xf32>
      %32 = arith.addf %30, %31 : vector<16x512xf32>
      %33 = arith.mulf %32, %25 : vector<16x512xf32>
      %cst_21 = arith.constant -0.284496725 : f32
      %34 = vector.broadcast %cst_21 : f32 to vector<16x512xf32>
      %35 = arith.addf %33, %34 : vector<16x512xf32>
      %36 = arith.mulf %35, %25 : vector<16x512xf32>
      %cst_22 = arith.constant 0.254829586 : f32
      %37 = vector.broadcast %cst_22 : f32 to vector<16x512xf32>
      %38 = arith.addf %36, %37 : vector<16x512xf32>
      %39 = arith.mulf %38, %25 : vector<16x512xf32>
      %cst_23 = arith.constant 0.000000e+00 : f32
      %40 = vector.broadcast %cst_23 : f32 to vector<16x512xf32>
      %41 = arith.subf %40, %20 : vector<16x512xf32>
      %42 = arith.mulf %41, %20 : vector<16x512xf32>
      %43 = math.exp %42 : vector<16x512xf32>
      %44 = arith.mulf %39, %43 : vector<16x512xf32>
      %cst_24 = arith.constant 1.000000e+00 : f32
      %45 = vector.broadcast %cst_24 : f32 to vector<16x512xf32>
      %46 = arith.subf %45, %44 : vector<16x512xf32>
      %cst_25 = arith.constant 0.000000e+00 : f32
      %47 = vector.broadcast %cst_25 : f32 to vector<16x512xf32>
      %48 = arith.cmpf olt, %19, %47 : vector<16x512xf32>
      %cst_26 = arith.constant 0.000000e+00 : f32
      %49 = vector.broadcast %cst_26 : f32 to vector<16x512xf32>
      %50 = arith.subf %49, %46 : vector<16x512xf32>
      %51 = arith.select %48, %50, %46 : vector<16x512xi1>, vector<16x512xf32>
      %cst_27 = arith.constant 1.000000e+00 : f32
      %52 = vector.broadcast %cst_27 : f32 to vector<16x512xf32>
      %53 = arith.addf %52, %51 : vector<16x512xf32>
      %54 = arith.mulf %17, %53 : vector<16x512xf32>
      %55 = arith.truncf %54 : vector<16x512xf32> to vector<16x512xbf16>
      %c0_28 = arith.constant 0 : index
      %c0_29 = arith.constant 0 : index
      %56 = vector.load %arg6[%c0_28, %c0_29] : memref<16x512xbf16, #tpu.memory_space<vmem>>, vector<16x512xbf16>
      tpu.vector_store %arg6[%c0_28, %c0_29], %55 {strides = array<i32>} : memref<16x512xbf16, #tpu.memory_space<vmem>>, vector<16x512xbf16>,
    } else {
    }
    return
  }
  func.func @transform_0(%arg0: i32, %arg1: i32, %arg2: i32) -> (i32, i32) {
    %c0_i32 = arith.constant 0 : i32
    return %arg0, %arg2 : i32, i32
  }
  func.func @transform_1(%arg0: i32, %arg1: i32, %arg2: i32) -> (i32, i32) {
    %c0_i32 = arith.constant 0 : i32
    return %arg2, %arg1 : i32, i32
  }
  func.func @transform_2(%arg0: i32, %arg1: i32, %arg2: i32) -> (i32, i32) {
    %c0_i32 = arith.constant 0 : i32
    %c0_i32_0 = arith.constant 0 : i32
    return %c0_i32, %arg1 : i32, i32
  }
  func.func @transform_3(%arg0: i32, %arg1: i32, %arg2: i32) -> (i32, i32) {
    %c0_i32 = arith.constant 0 : i32
    return %arg0, %arg1 : i32, i32
  }
}

module attributes {stable_mosaic.version = 11 : i64} {
  func.func @_linear_add_ln_kernel(%arg0: i32, %arg1: i32, %arg2: memref<16x512xbf16, #tpu.memory_space<vmem>>, %arg3: memref<512x256xbf16, #tpu.memory_space<vmem>>, %arg4: memref<1x256xf32, #tpu.memory_space<vmem>>, %arg5: memref<16x256xbf16, #tpu.memory_space<vmem>>, %arg6: memref<1x256xf32, #tpu.memory_space<vmem>>, %arg7: memref<1x256xf32, #tpu.memory_space<vmem>>, %arg8: memref<16x256xbf16, #tpu.memory_space<vmem>>, %arg9: memref<16x256xf32, #tpu.memory_space<vmem>>) attributes {dimension_semantics = [#tpu.dimension_semantics<parallel>, #tpu.dimension_semantics<arbitrary>], iteration_bounds = array<i64: 1, 1>, scalar_prefetch = 0 : i64, scratch_operands = 1 : i64, tpu.core_type = #tpu.core_type<tc>, window_params = [{transform_indices = @transform_0, window_bounds = array<i64: 16, 512>}, {transform_indices = @transform_1, window_bounds = array<i64: 512, 256>}, {pipeline_mode = #tpu.pipeline_mode<synchronous>, transform_indices = @transform_2, window_bounds = array<i64: 1, 256>}, {transform_indices = @transform_3, window_bounds = array<i64: 16, 256>}, {pipeline_mode = #tpu.pipeline_mode<synchronous>, transform_indices = @transform_4, window_bounds = array<i64: 1, 256>}, {pipeline_mode = #tpu.pipeline_mode<synchronous>, transform_indices = @transform_5, window_bounds = array<i64: 1, 256>}, {transform_indices = @transform_6, window_bounds = array<i64: 16, 256>}]} {
    %c0_i32 = arith.constant 0 : i32
    %0 = arith.cmpi eq, %arg1, %c0_i32 : i32
    %1 = arith.extui %0 : i1 to i32
    %c0_i32_0 = arith.constant 0 : i32
    %2 = arith.cmpi ne, %1, %c0_i32_0 : i32
    scf.if %2 {
      %cst_10 = arith.constant 0.000000e+00 : f32
      %12 = vector.broadcast %cst_10 : f32 to vector<16x256xf32>
      %c0_11 = arith.constant 0 : index
      %c0_12 = arith.constant 0 : index
      %13 = vector.load %arg9[%c0_11, %c0_12] : memref<16x256xf32, #tpu.memory_space<vmem>>, vector<16x256xf32>
      tpu.vector_store %arg9[%c0_11, %c0_12], %12 {strides = array<i32>} : memref<16x256xf32, #tpu.memory_space<vmem>>, vector<16x256xf32>,
    } else {
    }
    %c0 = arith.constant 0 : index
    %c0_1 = arith.constant 0 : index
    %3 = vector.load %arg9[%c0, %c0_1] : memref<16x256xf32, #tpu.memory_space<vmem>>, vector<16x256xf32>
    %c0_2 = arith.constant 0 : index
    %c0_3 = arith.constant 0 : index
    %4 = vector.load %arg2[%c0_2, %c0_3] : memref<16x512xbf16, #tpu.memory_space<vmem>>, vector<16x512xbf16>
    %c0_4 = arith.constant 0 : index
    %c0_5 = arith.constant 0 : index
    %5 = vector.load %arg3[%c0_4, %c0_5] : memref<512x256xbf16, #tpu.memory_space<vmem>>, vector<512x256xbf16>
    %cst = arith.constant dense<0.000000e+00> : vector<16x256xf32>
    %6 = tpu.matmul %4, %5, %cst {dimension_numbers = #tpu.dot_dimension_numbers<[1], [0], [0], [1], [0, 0, 1, 1], [], []>} : vector<16x512xbf16>, vector<512x256xbf16>, vector<16x256xf32> -> vector<16x256xf32>
    %7 = arith.addf %3, %6 : vector<16x256xf32>
    %c0_6 = arith.constant 0 : index
    %c0_7 = arith.constant 0 : index
    %8 = vector.load %arg9[%c0_6, %c0_7] : memref<16x256xf32, #tpu.memory_space<vmem>>, vector<16x256xf32>
    tpu.vector_store %arg9[%c0_6, %c0_7], %7 {strides = array<i32>} : memref<16x256xf32, #tpu.memory_space<vmem>>, vector<16x256xf32>,
    %c0_i32_8 = arith.constant 0 : i32
    %9 = arith.cmpi eq, %arg1, %c0_i32_8 : i32
    %10 = arith.extui %9 : i1 to i32
    %c0_i32_9 = arith.constant 0 : i32
    %11 = arith.cmpi ne, %10, %c0_i32_9 : i32
    scf.if %11 {
      %c0_10 = arith.constant 0 : index
      %c0_11 = arith.constant 0 : index
      %12 = vector.load %arg9[%c0_10, %c0_11] : memref<16x256xf32, #tpu.memory_space<vmem>>, vector<16x256xf32>
      %c0_12 = arith.constant 0 : index
      %c0_13 = arith.constant 0 : index
      %13 = vector.load %arg4[%c0_12, %c0_13] : memref<1x256xf32, #tpu.memory_space<vmem>>, vector<1x256xf32>
      %14 = vector.broadcast %13 : vector<1x256xf32> to vector<16x256xf32>
      %15 = arith.addf %12, %14 : vector<16x256xf32>
      %c0_14 = arith.constant 0 : index
      %c0_15 = arith.constant 0 : index
      %16 = vector.load %arg5[%c0_14, %c0_15] : memref<16x256xbf16, #tpu.memory_space<vmem>>, vector<16x256xbf16>
      %17 = arith.extf %16 : vector<16x256xbf16> to vector<16x256xf32>
      %18 = arith.addf %15, %17 : vector<16x256xf32>
      %cst_16 = arith.constant dense<0.000000e+00> : vector<16xf32>
      %19 = vector.multi_reduction <add>, %18, %cst_16 [1] : vector<16x256xf32> to vector<16xf32>
      %20 = vector.shape_cast %19 : vector<16xf32> to vector<16x1xf32>
      %cst_17 = arith.constant 2.560000e+02 : f32
      %21 = vector.broadcast %cst_17 : f32 to vector<16x1xf32>
      %22 = arith.divf %20, %21 : vector<16x1xf32>
      %23 = vector.broadcast %22 : vector<16x1xf32> to vector<16x256xf32>
      %24 = arith.subf %18, %23 : vector<16x256xf32>
      %25 = arith.mulf %24, %24 : vector<16x256xf32>
      %cst_18 = arith.constant dense<0.000000e+00> : vector<16xf32>
      %26 = vector.multi_reduction <add>, %25, %cst_18 [1] : vector<16x256xf32> to vector<16xf32>
      %27 = vector.shape_cast %26 : vector<16xf32> to vector<16x1xf32>
      %cst_19 = arith.constant 2.560000e+02 : f32
      %28 = vector.broadcast %cst_19 : f32 to vector<16x1xf32>
      %29 = arith.divf %27, %28 : vector<16x1xf32>
      %cst_20 = arith.constant 9.99999996E-13 : f32
      %30 = vector.broadcast %cst_20 : f32 to vector<16x1xf32>
      %31 = arith.addf %29, %30 : vector<16x1xf32>
      %32 = math.rsqrt %31 : vector<16x1xf32>
      %33 = vector.broadcast %22 : vector<16x1xf32> to vector<16x256xf32>
      %34 = arith.subf %18, %33 : vector<16x256xf32>
      %35 = vector.broadcast %32 : vector<16x1xf32> to vector<16x256xf32>
      %36 = arith.mulf %34, %35 : vector<16x256xf32>
      %c0_21 = arith.constant 0 : index
      %c0_22 = arith.constant 0 : index
      %37 = vector.load %arg6[%c0_21, %c0_22] : memref<1x256xf32, #tpu.memory_space<vmem>>, vector<1x256xf32>
      %38 = vector.broadcast %37 : vector<1x256xf32> to vector<16x256xf32>
      %39 = arith.mulf %36, %38 : vector<16x256xf32>
      %c0_23 = arith.constant 0 : index
      %c0_24 = arith.constant 0 : index
      %40 = vector.load %arg7[%c0_23, %c0_24] : memref<1x256xf32, #tpu.memory_space<vmem>>, vector<1x256xf32>
      %41 = vector.broadcast %40 : vector<1x256xf32> to vector<16x256xf32>
      %42 = arith.addf %39, %41 : vector<16x256xf32>
      %43 = arith.truncf %42 : vector<16x256xf32> to vector<16x256xbf16>
      %c0_25 = arith.constant 0 : index
      %c0_26 = arith.constant 0 : index
      %44 = vector.load %arg8[%c0_25, %c0_26] : memref<16x256xbf16, #tpu.memory_space<vmem>>, vector<16x256xbf16>
      tpu.vector_store %arg8[%c0_25, %c0_26], %43 {strides = array<i32>} : memref<16x256xbf16, #tpu.memory_space<vmem>>, vector<16x256xbf16>,
    } else {
    }
    return
  }
  func.func @transform_0(%arg0: i32, %arg1: i32) -> (i32, i32) {
    %c0_i32 = arith.constant 0 : i32
    return %arg0, %arg1 : i32, i32
  }
  func.func @transform_1(%arg0: i32, %arg1: i32) -> (i32, i32) {
    %c0_i32 = arith.constant 0 : i32
    %c0_i32_0 = arith.constant 0 : i32
    return %arg1, %c0_i32 : i32, i32
  }
  func.func @transform_2(%arg0: i32, %arg1: i32) -> (i32, i32) {
    %c0_i32 = arith.constant 0 : i32
    %c0_i32_0 = arith.constant 0 : i32
    %c0_i32_1 = arith.constant 0 : i32
    return %c0_i32, %c0_i32_0 : i32, i32
  }
  func.func @transform_3(%arg0: i32, %arg1: i32) -> (i32, i32) {
    %c0_i32 = arith.constant 0 : i32
    %c0_i32_0 = arith.constant 0 : i32
    return %arg0, %c0_i32 : i32, i32
  }
  func.func @transform_4(%arg0: i32, %arg1: i32) -> (i32, i32) {
    %c0_i32 = arith.constant 0 : i32
    %c0_i32_0 = arith.constant 0 : i32
    %c0_i32_1 = arith.constant 0 : i32
    return %c0_i32, %c0_i32_0 : i32, i32
  }
  func.func @transform_5(%arg0: i32, %arg1: i32) -> (i32, i32) {
    %c0_i32 = arith.constant 0 : i32
    %c0_i32_0 = arith.constant 0 : i32
    %c0_i32_1 = arith.constant 0 : i32
    return %c0_i32, %c0_i32_0 : i32, i32
  }
  func.func @transform_6(%arg0: i32, %arg1: i32) -> (i32, i32) {
    %c0_i32 = arith.constant 0 : i32
    %c0_i32_0 = arith.constant 0 : i32
    return %arg0, %c0_i32 : i32, i32
  }
}

</mosaic_0001>

<llo_original>
// kernel: bert_forward.11
$region0: #{bert_forward.11}
  #allocation0 [shape = 'u32[]', space=smem, size = 0x4, offset = 0x4, fixed_abs, tag = 'smem constant byte address 0x4 - core index']
  #allocation1 [shape = 'u32[72,128]{1,0:T(1,128)}', space=vmem, size = 0x9000, scoped, tag = 'internal scratch']
  %s0 = inlined_call_operand.vmem [shape: bf16[16,256], index: 0, kind: input, shape index: {}]
  %s1 = inlined_call_operand.vmem [shape: f32[1,256], index: 1, kind: input, shape index: {}]
  %s2 = inlined_call_operand.vmem [shape: f32[1,256], index: 2, kind: input, shape index: {}]
  %s3 = inlined_call_operand.vmem [shape: bf16[16,256], index: 3, kind: output, shape index: {}]
  %s4 = sld [smem:[#allocation0]]
  $region22: #{bert_forward.11} parent=0
    _
  %s6 = ssub.s32 1, %s4
  %s7 = scalar_select 0, %s6, %s4
  // Predicated region
  $region2: #{bert_forward.11} parent=0 // pred_check
    _
  $region3: #{bert_forward.11} parent=0 // pred_check_branch
    %9 = sbr.rel (0) target = $region5
  $region4: #{bert_forward.11} parent=0 // pred_region
    _
  $region5: #{bert_forward.11} parent=0 // pred_fallthru
    _
  // Predicated region
  $region6: #{bert_forward.11} parent=0 // pred_check
    _
  $region7: #{bert_forward.11} parent=0 // pred_check_branch
    %11 = sbr.rel (0) target = $region9
  $region8: #{bert_forward.11} parent=0 // pred_region
    _
  $region9: #{bert_forward.11} parent=0 // pred_fallthru
    _
  // Predicated region
  $region10: #{bert_forward.11} parent=0 // pred_check
    _
  $region11: #{bert_forward.11} parent=0 // pred_check_branch
    %13 = sbr.rel (0) target = $region13
  $region12: #{bert_forward.11} parent=0 // pred_region
    _
  $region13: #{bert_forward.11} parent=0 // pred_fallthru
    _
  %v14 = vld [vmem:[%s0] sm:$0xff]
  %v15 = vld [vmem:[%s0 + $0x8] sm:$0xff]
  %v16 = vunpack.c.l.bf16 %v14
  %v17 = vunpack.c.h.bf16 %v14
  %v18 = vunpack.c.l.bf16 %v15
  %v19 = vunpack.c.h.bf16 %v15
  %v20 = vadd.f32 %v16, %v17
  %21 = vadd.xlane.f32.xlu0 %v20
  %v22 = vpop.xlane.xlu0 %21
  %v23 = vadd.f32 %v18, %v19
  %24 = vadd.xlane.f32.xlu0 %v23
  %v25 = vpop.xlane.xlu0 %24
  %v26 = vrcp.pop 256.0
  %v27 = vmul.f32 256.0, %v26
  %v28 = vsub.f32 1.0, %v27
  %v29 = vmul.f32 %v26, %v28
  %v30 = vadd.f32 %v26, %v29
  %vm31 = vweird.f32 %v26
  %v32 = vsel %vm31, %v26, %v30
  %v33 = vmul.f32 %v22, %v32
  %v34 = vmul.f32 %v25, %v32
  %v35 = vsub.f32 %v16, %v33
  %v36 = vsub.f32 %v17, %v33
  %v37 = vsub.f32 %v18, %v34
  %v38 = vsub.f32 %v19, %v34
  %v39 = vmul.f32 %v35, %v35
  %v40 = vmul.f32 %v36, %v36
  %v41 = vmul.f32 %v37, %v37
  %v42 = vmul.f32 %v38, %v38
  %v43 = vadd.f32 %v39, %v40
  %44 = vadd.xlane.f32.xlu0 %v43
  %v45 = vpop.xlane.xlu0 %44
  %v46 = vadd.f32 %v41, %v42
  %47 = vadd.xlane.f32.xlu0 %v46
  %v48 = vpop.xlane.xlu0 %47
  %v49 = vmul.f32 %v45, %v32
  %v50 = vmul.f32 %v48, %v32
  %v51 = vadd.f32 %v49, 1e-12
  %v52 = vadd.f32 %v50, 1e-12
  %v53 = vrsqrt.pop %v51
  %v54 = vmul.f32 %v53, %v51
  %v55 = vmul.f32 %v54, %v53
  %v56 = vmul.f32 0.5, %v55
  %v57 = vsub.f32 1.5, %v56
  %v58 = vmul.f32 %v53, %v57
  %vm59 = vweird.f32 %v51
  %vm60 = vweird.f32 %v53
  %vm61 = vmor %vm59, %vm60
  %v62 = vsel %vm61, %v53, %v58
  %v63 = vrsqrt.pop %v52
  %v64 = vmul.f32 %v63, %v52
  %v65 = vmul.f32 %v64, %v63
  %v66 = vmul.f32 0.5, %v65
  %v67 = vsub.f32 1.5, %v66
  %v68 = vmul.f32 %v63, %v67
  %vm69 = vweird.f32 %v52
  %vm70 = vweird.f32 %v63
  %vm71 = vmor %vm69, %vm70
  %v72 = vsel %vm71, %v63, %v68
  %v73 = vmul.f32 %v35, %v62
  %v74 = vmul.f32 %v36, %v62
  %v75 = vmul.f32 %v37, %v72
  %v76 = vmul.f32 %v38, %v72
  %v77 = vld [vmem:[%s1] sm:$0x3]
  %v79 = vperm.slane %v77, 0
  %v80 = vperm.slane %v77, 1
  %v83 = vmul.f32 %v73, %v79
  %v84 = vmul.f32 %v74, %v80
  %v85 = vmul.f32 %v75, %v79
  %v86 = vmul.f32 %v76, %v80
  %v87 = vld [vmem:[%s2] sm:$0x3]
  %v89 = vperm.slane %v87, 0
  %v90 = vperm.slane %v87, 1
  %v93 = vadd.f32 %v83, %v89
  %v94 = vadd.f32 %v84, %v90
  %v95 = vadd.f32 %v85, %v89
  %v96 = vadd.f32 %v86, %v90
  %v97 = vpack.c.bf16 %v94, %v93
  %v98 = vpack.c.bf16 %v96, %v95
  %99 = vst [vmem:[%s3] sm:$0xff] %v97
  %100 = vst [vmem:[%s3 + $0x8] sm:$0xff] %v98
  // Predicated region
  $region14: #{bert_forward.11} parent=0 // pred_check
    _
  $region15: #{bert_forward.11} parent=0 // pred_check_branch
    %102 = sbr.rel (0) target = $region17
  $region16: #{bert_forward.11} parent=0 // pred_region
    _
  $region17: #{bert_forward.11} parent=0 // pred_fallthru
    _
  // Predicated region
  $region18: #{bert_forward.11} parent=0 // pred_check
    _
  $region19: #{bert_forward.11} parent=0 // pred_check_branch
    %104 = sbr.rel (0) target = $region21
  $region20: #{bert_forward.11} parent=0 // pred_region
    _
  $region21: #{bert_forward.11} parent=0 // pred_fallthru
    _

// kernel: bert_forward.12
$region0: #{bert_forward.12}
  #allocation0 [shape = 'u32[]', space=smem, size = 0x4, offset = 0x4, fixed_abs, tag = 'smem constant byte address 0x4 - core index']
  #allocation1 [shape = 'u32[72,128]{1,0:T(1,128)}', space=vmem, size = 0x9000, scoped, tag = 'internal scratch']
  #allocation2 [shape = 'f32[16,768]{1,0:T(8,128)}', space=vmem, size = 0xc000, scoped, tag = 'scratch operand']
  %s0 = inlined_call_operand.vmem [shape: bf16[16,256], index: 0, kind: input, shape index: {}]
  %s1 = inlined_call_operand.hbm [shape: bf16[256,768], index: 1, kind: input, shape index: {}]
  %s2 = inlined_call_operand.vmem [shape: f32[1,768], index: 2, kind: input, shape index: {}]
  %s3 = inlined_call_operand.vmem [shape: bf16[16,768], index: 3, kind: output, shape index: {}]
  %s4 = sld [smem:[#allocation0]]
  $region34: #{bert_forward.12} parent=0
    _
  %s6 = ssub.s32 1, %s4
  %s7 = scalar_select 0, %s6, %s4
  $region1: #{bert_forward.12} parent=0
    #allocation3 [shape = 'u8[393216]{0}', space=vmem, size = 0x60000, scoped, tag = 'input window, operand 1, single buffered']
    #allocation4 [shape = 's32[1]{0}', space=sflag, size = 0x4, scoped, tag = 'scoped memory for bert_forward.12']
    %8 = vsyncpa [#allocation4], 0
    // Predicated region
    $region2: #{bert_forward.12} parent=1 // pred_check
      _
    $region3: #{bert_forward.12} parent=1 // pred_check_branch
      %10 = sbr.rel (0) target = $region5
    $region4: #{bert_forward.12} parent=1 // pred_region
      _
    $region5: #{bert_forward.12} parent=1 // pred_fallthru
      _
    // Predicated region
    $region6: #{bert_forward.12} parent=1 // pred_check
      _
    $region7: #{bert_forward.12} parent=1 // pred_check_branch
      %12 = sbr.rel (0) target = $region9
    $region8: #{bert_forward.12} parent=1 // pred_region
      %14 = vsyncadd [#allocation4], 0
      %s15 = sshll.u32 %s1, 4
      %s16 = int_to_ptr.hbm [resolvable:$true] %s15
      %s17 = sshll.u32 [#allocation3], 4
      %s18 = int_to_ptr.vmem [resolvable:$true] %s17
      %23 = dma.hbm_to_vmem [thread:$0]  %s16, 12288, %s18, [#allocation4], 384, 384, 24
    $region9: #{bert_forward.12} parent=1 // pred_fallthru
      _
    // Predicated region
    $region10: #{bert_forward.12} parent=1 // pred_check
      _
    $region11: #{bert_forward.12} parent=1 // pred_check_branch
      %25 = sbr.rel (0) target = $region13
    $region12: #{bert_forward.12} parent=1 // pred_region
      _
    $region13: #{bert_forward.12} parent=1 // pred_fallthru
      _
    // Predicated region
    $region14: #{bert_forward.12} parent=1 // pred_check
      _
    $region15: #{bert_forward.12} parent=1 // pred_check_branch
      %27 = sbr.rel (0) target = $region17
    $region16: #{bert_forward.12} parent=1 // pred_region
      %29 = dma.done [#allocation4], 12288
    $region17: #{bert_forward.12} parent=1 // pred_fallthru
      _
    %p30 = scmp.eq.s32.totalorder 0, 0
    // Predicated region
    $region18: #{bert_forward.12} parent=1 // pred_check
      %p31 = pneg %p30
    $region19: #{bert_forward.12} parent=1 // pred_check_branch
      %33 = sbr.rel (%p31) target = $region21
    $region20: #{bert_forward.12} parent=1 // pred_region
      %34 = vst [vmem:[#allocation2] sm:$0xff] 0.0
      %35 = vst [vmem:[#allocation2 + $0x8] sm:$0xff] 0.0
      %36 = vst [vmem:[#allocation2 + $0x10] sm:$0xff] 0.0
      %37 = vst [vmem:[#allocation2 + $0x18] sm:$0xff] 0.0
      %38 = vst [vmem:[#allocation2 + $0x20] sm:$0xff] 0.0
      %39 = vst [vmem:[#allocation2 + $0x28] sm:$0xff] 0.0
      %40 = vst [vmem:[#allocation2 + $0x30] sm:$0xff] 0.0
      %41 = vst [vmem:[#allocation2 + $0x38] sm:$0xff] 0.0
      %42 = vst [vmem:[#allocation2 + $0x40] sm:$0xff] 0.0
      %43 = vst [vmem:[#allocation2 + $0x48] sm:$0xff] 0.0
      %44 = vst [vmem:[#allocation2 + $0x50] sm:$0xff] 0.0
      %45 = vst [vmem:[#allocation2 + $0x58] sm:$0xff] 0.0
    $region21: #{bert_forward.12} parent=1 // pred_fallthru
      _
    %v46 = vld [vmem:[#allocation2] sm:$0xff]
    %v47 = vld [vmem:[#allocation2 + $0x8] sm:$0xff]
    %v48 = vld [vmem:[#allocation2 + $0x10] sm:$0xff]
    %v49 = vld [vmem:[#allocation2 + $0x18] sm:$0xff]
    %v50 = vld [vmem:[#allocation2 + $0x20] sm:$0xff]
    %v51 = vld [vmem:[#allocation2 + $0x28] sm:$0xff]
    %v52 = vld [vmem:[#allocation2 + $0x30] sm:$0xff]
    %v53 = vld [vmem:[#allocation2 + $0x38] sm:$0xff]
    %v54 = vld [vmem:[#allocation2 + $0x40] sm:$0xff]
    %v55 = vld [vmem:[#allocation2 + $0x48] sm:$0xff]
    %v56 = vld [vmem:[#allocation2 + $0x50] sm:$0xff]
    %v57 = vld [vmem:[#allocation2 + $0x58] sm:$0xff]
    %v58 = vld [vmem:[%s0] sm:$0xff]
    %v59 = vld [vmem:[%s0 + $0x8] sm:$0xff]
    %v60 = vld [vmem:[#allocation3] sm:$0xff]
    %v61 = vld [vmem:[#allocation3 + $0x8] sm:$0xff]
    %v62 = vld [vmem:[#allocation3 + $0x10] sm:$0xff]
    %v63 = vld [vmem:[#allocation3 + $0x18] sm:$0xff]
    %v64 = vld [vmem:[#allocation3 + $0x20] sm:$0xff]
    %v65 = vld [vmem:[#allocation3 + $0x28] sm:$0xff]
    %v66 = vld [vmem:[#allocation3 + $0x30] sm:$0xff]
    %v67 = vld [vmem:[#allocation3 + $0x38] sm:$0xff]
    %v68 = vld [vmem:[#allocation3 + $0x40] sm:$0xff]
    %v69 = vld [vmem:[#allocation3 + $0x48] sm:$0xff]
    %v70 = vld [vmem:[#allocation3 + $0x50] sm:$0xff]
    %v71 = vld [vmem:[#allocation3 + $0x58] sm:$0xff]
    %v72 = vld [vmem:[#allocation3 + $0x60] sm:$0xff]
    %v73 = vld [vmem:[#allocation3 + $0x68] sm:$0xff]
    %v74 = vld [vmem:[#allocation3 + $0x70] sm:$0xff]
    %v75 = vld [vmem:[#allocation3 + $0x78] sm:$0xff]
    %v76 = vld [vmem:[#allocation3 + $0x80] sm:$0xff]
    %v77 = vld [vmem:[#allocation3 + $0x88] sm:$0xff]
    %v78 = vld [vmem:[#allocation3 + $0x90] sm:$0xff]
    %v79 = vld [vmem:[#allocation3 + $0x98] sm:$0xff]
    %v80 = vld [vmem:[#allocation3 + $0xa0] sm:$0xff]
    %v81 = vld [vmem:[#allocation3 + $0xa8] sm:$0xff]
    %v82 = vld [vmem:[#allocation3 + $0xb0] sm:$0xff]
    %v83 = vld [vmem:[#allocation3 + $0xb8] sm:$0xff]
    %v84 = vld [vmem:[#allocation3 + $0xc0] sm:$0xff]
    %v85 = vld [vmem:[#allocation3 + $0xc8] sm:$0xff]
    %v86 = vld [vmem:[#allocation3 + $0xd0] sm:$0xff]
    %v87 = vld [vmem:[#allocation3 + $0xd8] sm:$0xff]
    %v88 = vld [vmem:[#allocation3 + $0xe0] sm:$0xff]
    %v89 = vld [vmem:[#allocation3 + $0xe8] sm:$0xff]
    %v90 = vld [vmem:[#allocation3 + $0xf0] sm:$0xff]
    %v91 = vld [vmem:[#allocation3 + $0xf8] sm:$0xff]
    %v92 = vld [vmem:[#allocation3 + $0x100] sm:$0xff]
    %v93 = vld [vmem:[#allocation3 + $0x108] sm:$0xff]
    %v94 = vld [vmem:[#allocation3 + $0x110] sm:$0xff]
    %v95 = vld [vmem:[#allocation3 + $0x118] sm:$0xff]
    %v96 = vld [vmem:[#allocation3 + $0x120] sm:$0xff]
    %v97 = vld [vmem:[#allocation3 + $0x128] sm:$0xff]
    %v98 = vld [vmem:[#allocation3 + $0x130] sm:$0xff]
    %v99 = vld [vmem:[#allocation3 + $0x138] sm:$0xff]
    %v100 = vld [vmem:[#allocation3 + $0x140] sm:$0xff]
    %v101 = vld [vmem:[#allocation3 + $0x148] sm:$0xff]
    %v102 = vld [vmem:[#allocation3 + $0x150] sm:$0xff]
    %v103 = vld [vmem:[#allocation3 + $0x158] sm:$0xff]
    %v104 = vld [vmem:[#allocation3 + $0x160] sm:$0xff]
    %v105 = vld [vmem:[#allocation3 + $0x168] sm:$0xff]
    %v106 = vld [vmem:[#allocation3 + $0x170] sm:$0xff]
    %v107 = vld [vmem:[#allocation3 + $0x178] sm:$0xff]
    %v108 = vld [vmem:[#allocation3 + $0x180] sm:$0xff]
    %v109 = vld [vmem:[#allocation3 + $0x188] sm:$0xff]
    %v110 = vld [vmem:[#allocation3 + $0x190] sm:$0xff]
    %v111 = vld [vmem:[#allocation3 + $0x198] sm:$0xff]
    %v112 = vld [vmem:[#allocation3 + $0x1a0] sm:$0xff]
    %v113 = vld [vmem:[#allocation3 + $0x1a8] sm:$0xff]
    %v114 = vld [vmem:[#allocation3 + $0x1b0] sm:$0xff]
    %v115 = vld [vmem:[#allocation3 + $0x1b8] sm:$0xff]
    %v116 = vld [vmem:[#allocation3 + $0x1c0] sm:$0xff]
    %v117 = vld [vmem:[#allocation3 + $0x1c8] sm:$0xff]
    %v118 = vld [vmem:[#allocation3 + $0x1d0] sm:$0xff]
    %v119 = vld [vmem:[#allocation3 + $0x1d8] sm:$0xff]
    %v120 = vld [vmem:[#allocation3 + $0x1e0] sm:$0xff]
    %v121 = vld [vmem:[#allocation3 + $0x1e8] sm:$0xff]
    %v122 = vld [vmem:[#allocation3 + $0x1f0] sm:$0xff]
    %v123 = vld [vmem:[#allocation3 + $0x1f8] sm:$0xff]
    %v124 = vld [vmem:[#allocation3 + $0x200] sm:$0xff]
    %v125 = vld [vmem:[#allocation3 + $0x208] sm:$0xff]
    %v126 = vld [vmem:[#allocation3 + $0x210] sm:$0xff]
    %v127 = vld [vmem:[#allocation3 + $0x218] sm:$0xff]
    %v128 = vld [vmem:[#allocation3 + $0x220] sm:$0xff]
    %v129 = vld [vmem:[#allocation3 + $0x228] sm:$0xff]
    %v130 = vld [vmem:[#allocation3 + $0x230] sm:$0xff]
    %v131 = vld [vmem:[#allocation3 + $0x238] sm:$0xff]
    %v132 = vld [vmem:[#allocation3 + $0x240] sm:$0xff]
    %v133 = vld [vmem:[#allocation3 + $0x248] sm:$0xff]
    %v134 = vld [vmem:[#allocation3 + $0x250] sm:$0xff]
    %v135 = vld [vmem:[#allocation3 + $0x258] sm:$0xff]
    %v136 = vld [vmem:[#allocation3 + $0x260] sm:$0xff]
    %v137 = vld [vmem:[#allocation3 + $0x268] sm:$0xff]
    %v138 = vld [vmem:[#allocation3 + $0x270] sm:$0xff]
    %v139 = vld [vmem:[#allocation3 + $0x278] sm:$0xff]
    %v140 = vld [vmem:[#allocation3 + $0x280] sm:$0xff]
    %v141 = vld [vmem:[#allocation3 + $0x288] sm:$0xff]
    %v142 = vld [vmem:[#allocation3 + $0x290] sm:$0xff]
    %v143 = vld [vmem:[#allocation3 + $0x298] sm:$0xff]
    %v144 = vld [vmem:[#allocation3 + $0x2a0] sm:$0xff]
    %v145 = vld [vmem:[#allocation3 + $0x2a8] sm:$0xff]
    %v146 = vld [vmem:[#allocation3 + $0x2b0] sm:$0xff]
    %v147 = vld [vmem:[#allocation3 + $0x2b8] sm:$0xff]
    %v148 = vld [vmem:[#allocation3 + $0x2c0] sm:$0xff]
    %v149 = vld [vmem:[#allocation3 + $0x2c8] sm:$0xff]
    %v150 = vld [vmem:[#allocation3 + $0x2d0] sm:$0xff]
    %v151 = vld [vmem:[#allocation3 + $0x2d8] sm:$0xff]
    %v152 = vld [vmem:[#allocation3 + $0x2e0] sm:$0xff]
    %v153 = vld [vmem:[#allocation3 + $0x2e8] sm:$0xff]
    %v154 = vld [vmem:[#allocation3 + $0x2f0] sm:$0xff]
    %v155 = vld [vmem:[#allocation3 + $0x2f8] sm:$0xff]
    %v158 = vunpack.c.l.b16 %v58
    %v159 = vunpack.c.h.b16 %v58
    %v160 = vunpack.c.l.b16 %v59
    %v161 = vunpack.c.h.b16 %v59
    %v162 = vpack.c.b16 %v160, %v158
    %v163 = vpack.c.b16 %v161, %v159
    %v262 = vunpack.c.l.b16 %v60
    %v263 = vunpack.c.h.b16 %v60
    %v264 = vunpack.c.l.b16 %v61
    %v265 = vunpack.c.h.b16 %v61
    %v266 = vunpack.c.l.b16 %v62
    %v267 = vunpack.c.h.b16 %v62
    %v268 = vunpack.c.l.b16 %v63
    %v269 = vunpack.c.h.b16 %v63
    %v270 = vunpack.c.l.b16 %v64
    %v271 = vunpack.c.h.b16 %v64
    %v272 = vunpack.c.l.b16 %v65
    %v273 = vunpack.c.h.b16 %v65
    %v274 = vunpack.c.l.b16 %v66
    %v275 = vunpack.c.h.b16 %v66
    %v276 = vunpack.c.l.b16 %v67
    %v277 = vunpack.c.h.b16 %v67
    %v278 = vunpack.c.l.b16 %v68
    %v279 = vunpack.c.h.b16 %v68
    %v280 = vunpack.c.l.b16 %v69
    %v281 = vunpack.c.h.b16 %v69
    %v282 = vunpack.c.l.b16 %v70
    %v283 = vunpack.c.h.b16 %v70
    %v284 = vunpack.c.l.b16 %v71
    %v285 = vunpack.c.h.b16 %v71
    %v286 = vunpack.c.l.b16 %v72
    %v287 = vunpack.c.h.b16 %v72
    %v288 = vunpack.c.l.b16 %v73
    %v289 = vunpack.c.h.b16 %v73
    %v290 = vunpack.c.l.b16 %v74
    %v291 = vunpack.c.h.b16 %v74
    %v292 = vunpack.c.l.b16 %v75
    %v293 = vunpack.c.h.b16 %v75
    %v294 = vunpack.c.l.b16 %v76
    %v295 = vunpack.c.h.b16 %v76
    %v296 = vunpack.c.l.b16 %v77
    %v297 = vunpack.c.h.b16 %v77
    %v298 = vunpack.c.l.b16 %v78
    %v299 = vunpack.c.h.b16 %v78
    %v300 = vunpack.c.l.b16 %v79
    %v301 = vunpack.c.h.b16 %v79
    %v302 = vunpack.c.l.b16 %v80
    %v303 = vunpack.c.h.b16 %v80
    %v304 = vunpack.c.l.b16 %v81
    %v305 = vunpack.c.h.b16 %v81
    %v306 = vunpack.c.l.b16 %v82
    %v307 = vunpack.c.h.b16 %v82
    %v308 = vunpack.c.l.b16 %v83
    %v309 = vunpack.c.h.b16 %v83
    %v310 = vunpack.c.l.b16 %v84
    %v311 = vunpack.c.h.b16 %v84
    %v312 = vunpack.c.l.b16 %v85
    %v313 = vunpack.c.h.b16 %v85
    %v314 = vunpack.c.l.b16 %v86
    %v315 = vunpack.c.h.b16 %v86
    %v316 = vunpack.c.l.b16 %v87
    %v317 = vunpack.c.h.b16 %v87
    %v318 = vunpack.c.l.b16 %v88
    %v319 = vunpack.c.h.b16 %v88
    %v320 = vunpack.c.l.b16 %v89
    %v321 = vunpack.c.h.b16 %v89
    %v322 = vunpack.c.l.b16 %v90
    %v323 = vunpack.c.h.b16 %v90
    %v324 = vunpack.c.l.b16 %v91
    %v325 = vunpack.c.h.b16 %v91
    %v326 = vunpack.c.l.b16 %v92
    %v327 = vunpack.c.h.b16 %v92
    %v328 = vunpack.c.l.b16 %v93
    %v329 = vunpack.c.h.b16 %v93
    %v330 = vunpack.c.l.b16 %v94
    %v331 = vunpack.c.h.b16 %v94
    %v332 = vunpack.c.l.b16 %v95
    %v333 = vunpack.c.h.b16 %v95
    %v334 = vunpack.c.l.b16 %v96
    %v335 = vunpack.c.h.b16 %v96
    %v336 = vunpack.c.l.b16 %v97
    %v337 = vunpack.c.h.b16 %v97
    %v338 = vunpack.c.l.b16 %v98
    %v339 = vunpack.c.h.b16 %v98
    %v340 = vunpack.c.l.b16 %v99
    %v341 = vunpack.c.h.b16 %v99
    %v342 = vunpack.c.l.b16 %v100
    %v343 = vunpack.c.h.b16 %v100
    %v344 = vunpack.c.l.b16 %v101
    %v345 = vunpack.c.h.b16 %v101
    %v346 = vunpack.c.l.b16 %v102
    %v347 = vunpack.c.h.b16 %v102
    %v348 = vunpack.c.l.b16 %v103
    %v349 = vunpack.c.h.b16 %v103
    %v350 = vunpack.c.l.b16 %v104
    %v351 = vunpack.c.h.b16 %v104
    %v352 = vunpack.c.l.b16 %v105
    %v353 = vunpack.c.h.b16 %v105
    %v354 = vunpack.c.l.b16 %v106
    %v355 = vunpack.c.h.b16 %v106
    %v356 = vunpack.c.l.b16 %v107
    %v357 = vunpack.c.h.b16 %v107
    %v358 = vunpack.c.l.b16 %v108
    %v359 = vunpack.c.h.b16 %v108
    %v360 = vunpack.c.l.b16 %v109
    %v361 = vunpack.c.h.b16 %v109
    %v362 = vunpack.c.l.b16 %v110
    %v363 = vunpack.c.h.b16 %v110
    %v364 = vunpack.c.l.b16 %v111
    %v365 = vunpack.c.h.b16 %v111
    %v366 = vunpack.c.l.b16 %v112
    %v367 = vunpack.c.h.b16 %v112
    %v368 = vunpack.c.l.b16 %v113
    %v369 = vunpack.c.h.b16 %v113
    %v370 = vunpack.c.l.b16 %v114
    %v371 = vunpack.c.h.b16 %v114
    %v372 = vunpack.c.l.b16 %v115
    %v373 = vunpack.c.h.b16 %v115
    %v374 = vunpack.c.l.b16 %v116
    %v375 = vunpack.c.h.b16 %v116
    %v376 = vunpack.c.l.b16 %v117
    %v377 = vunpack.c.h.b16 %v117
    %v378 = vunpack.c.l.b16 %v118
    %v379 = vunpack.c.h.b16 %v118
    %v380 = vunpack.c.l.b16 %v119
    %v381 = vunpack.c.h.b16 %v119
    %v382 = vunpack.c.l.b16 %v120
    %v383 = vunpack.c.h.b16 %v120
    %v384 = vunpack.c.l.b16 %v121
    %v385 = vunpack.c.h.b16 %v121
    %v386 = vunpack.c.l.b16 %v122
    %v387 = vunpack.c.h.b16 %v122
    %v388 = vunpack.c.l.b16 %v123
    %v389 = vunpack.c.h.b16 %v123
    %v390 = vunpack.c.l.b16 %v124
    %v391 = vunpack.c.h.b16 %v124
    %v392 = vunpack.c.l.b16 %v125
    %v393 = vunpack.c.h.b16 %v125
    %v394 = vunpack.c.l.b16 %v126
    %v395 = vunpack.c.h.b16 %v126
    %v396 = vunpack.c.l.b16 %v127
    %v397 = vunpack.c.h.b16 %v127
    %v398 = vunpack.c.l.b16 %v128
    %v399 = vunpack.c.h.b16 %v128
    %v400 = vunpack.c.l.b16 %v129
    %v401 = vunpack.c.h.b16 %v129
    %v402 = vunpack.c.l.b16 %v130
    %v403 = vunpack.c.h.b16 %v130
    %v404 = vunpack.c.l.b16 %v131
    %v405 = vunpack.c.h.b16 %v131
    %v406 = vunpack.c.l.b16 %v132
    %v407 = vunpack.c.h.b16 %v132
    %v408 = vunpack.c.l.b16 %v133
    %v409 = vunpack.c.h.b16 %v133
    %v410 = vunpack.c.l.b16 %v134
    %v411 = vunpack.c.h.b16 %v134
    %v412 = vunpack.c.l.b16 %v135
    %v413 = vunpack.c.h.b16 %v135
    %v414 = vunpack.c.l.b16 %v136
    %v415 = vunpack.c.h.b16 %v136
    %v416 = vunpack.c.l.b16 %v137
    %v417 = vunpack.c.h.b16 %v137
    %v418 = vunpack.c.l.b16 %v138
    %v419 = vunpack.c.h.b16 %v138
    %v420 = vunpack.c.l.b16 %v139
    %v421 = vunpack.c.h.b16 %v139
    %v422 = vunpack.c.l.b16 %v140
    %v423 = vunpack.c.h.b16 %v140
    %v424 = vunpack.c.l.b16 %v141
    %v425 = vunpack.c.h.b16 %v141
    %v426 = vunpack.c.l.b16 %v142
    %v427 = vunpack.c.h.b16 %v142
    %v428 = vunpack.c.l.b16 %v143
    %v429 = vunpack.c.h.b16 %v143
    %v430 = vunpack.c.l.b16 %v144
    %v431 = vunpack.c.h.b16 %v144
    %v432 = vunpack.c.l.b16 %v145
    %v433 = vunpack.c.h.b16 %v145
    %v434 = vunpack.c.l.b16 %v146
    %v435 = vunpack.c.h.b16 %v146
    %v436 = vunpack.c.l.b16 %v147
    %v437 = vunpack.c.h.b16 %v147
    %v438 = vunpack.c.l.b16 %v148
    %v439 = vunpack.c.h.b16 %v148
    %v440 = vunpack.c.l.b16 %v149
    %v441 = vunpack.c.h.b16 %v149
    %v442 = vunpack.c.l.b16 %v150
    %v443 = vunpack.c.h.b16 %v150
    %v444 = vunpack.c.l.b16 %v151
    %v445 = vunpack.c.h.b16 %v151
    %v446 = vunpack.c.l.b16 %v152
    %v447 = vunpack.c.h.b16 %v152
    %v448 = vunpack.c.l.b16 %v153
    %v449 = vunpack.c.h.b16 %v153
    %v450 = vunpack.c.l.b16 %v154
    %v451 = vunpack.c.h.b16 %v154
    %v452 = vunpack.c.l.b16 %v155
    %v453 = vunpack.c.h.b16 %v155
    %v454 = vpack.c.b16 %v268, %v262
    %v455 = vpack.c.b16 %v269, %v263
    %v456 = vpack.c.b16 %v270, %v264
    %v457 = vpack.c.b16 %v271, %v265
    %v458 = vpack.c.b16 %v272, %v266
    %v459 = vpack.c.b16 %v273, %v267
    %v460 = vpack.c.b16 %v280, %v274
    %v461 = vpack.c.b16 %v281, %v275
    %v462 = vpack.c.b16 %v282, %v276
    %v463 = vpack.c.b16 %v283, %v277
    %v464 = vpack.c.b16 %v284, %v278
    %v465 = vpack.c.b16 %v285, %v279
    %v466 = vpack.c.b16 %v292, %v286
    %v467 = vpack.c.b16 %v293, %v287
    %v468 = vpack.c.b16 %v294, %v288
    %v469 = vpack.c.b16 %v295, %v289
    %v470 = vpack.c.b16 %v296, %v290
    %v471 = vpack.c.b16 %v297, %v291
    %v472 = vpack.c.b16 %v304, %v298
    %v473 = vpack.c.b16 %v305, %v299
    %v474 = vpack.c.b16 %v306, %v300
    %v475 = vpack.c.b16 %v307, %v301
    %v476 = vpack.c.b16 %v308, %v302
    %v477 = vpack.c.b16 %v309, %v303
    %v478 = vpack.c.b16 %v316, %v310
    %v479 = vpack.c.b16 %v317, %v311
    %v480 = vpack.c.b16 %v318, %v312
    %v481 = vpack.c.b16 %v319, %v313
    %v482 = vpack.c.b16 %v320, %v314
    %v483 = vpack.c.b16 %v321, %v315
    %v484 = vpack.c.b16 %v328, %v322
    %v485 = vpack.c.b16 %v329, %v323
    %v486 = vpack.c.b16 %v330, %v324
    %v487 = vpack.c.b16 %v331, %v325
    %v488 = vpack.c.b16 %v332, %v326
    %v489 = vpack.c.b16 %v333, %v327
    %v490 = vpack.c.b16 %v340, %v334
    %v491 = vpack.c.b16 %v341, %v335
    %v492 = vpack.c.b16 %v342, %v336
    %v493 = vpack.c.b16 %v343, %v337
    %v494 = vpack.c.b16 %v344, %v338
    %v495 = vpack.c.b16 %v345, %v339
    %v496 = vpack.c.b16 %v352, %v346
    %v497 = vpack.c.b16 %v353, %v347
    %v498 = vpack.c.b16 %v354, %v348
    %v499 = vpack.c.b16 %v355, %v349
    %v500 = vpack.c.b16 %v356, %v350
    %v501 = vpack.c.b16 %v357, %v351
    %v502 = vpack.c.b16 %v364, %v358
    %v503 = vpack.c.b16 %v365, %v359
    %v504 = vpack.c.b16 %v366, %v360
    %v505 = vpack.c.b16 %v367, %v361
    %v506 = vpack.c.b16 %v368, %v362
    %v507 = vpack.c.b16 %v369, %v363
    %v508 = vpack.c.b16 %v376, %v370
    %v509 = vpack.c.b16 %v377, %v371
    %v510 = vpack.c.b16 %v378, %v372
    %v511 = vpack.c.b16 %v379, %v373
    %v512 = vpack.c.b16 %v380, %v374
    %v513 = vpack.c.b16 %v381, %v375
    %v514 = vpack.c.b16 %v388, %v382
    %v515 = vpack.c.b16 %v389, %v383
    %v516 = vpack.c.b16 %v390, %v384
    %v517 = vpack.c.b16 %v391, %v385
    %v518 = vpack.c.b16 %v392, %v386
    %v519 = vpack.c.b16 %v393, %v387
    %v520 = vpack.c.b16 %v400, %v394
    %v521 = vpack.c.b16 %v401, %v395
    %v522 = vpack.c.b16 %v402, %v396
    %v523 = vpack.c.b16 %v403, %v397
    %v524 = vpack.c.b16 %v404, %v398
    %v525 = vpack.c.b16 %v405, %v399
    %v526 = vpack.c.b16 %v412, %v406
    %v527 = vpack.c.b16 %v413, %v407
    %v528 = vpack.c.b16 %v414, %v408
    %v529 = vpack.c.b16 %v415, %v409
    %v530 = vpack.c.b16 %v416, %v410
    %v531 = vpack.c.b16 %v417, %v411
    %v532 = vpack.c.b16 %v424, %v418
    %v533 = vpack.c.b16 %v425, %v419
    %v534 = vpack.c.b16 %v426, %v420
    %v535 = vpack.c.b16 %v427, %v421
    %v536 = vpack.c.b16 %v428, %v422
    %v537 = vpack.c.b16 %v429, %v423
    %v538 = vpack.c.b16 %v436, %v430
    %v539 = vpack.c.b16 %v437, %v431
    %v540 = vpack.c.b16 %v438, %v432
    %v541 = vpack.c.b16 %v439, %v433
    %v542 = vpack.c.b16 %v440, %v434
    %v543 = vpack.c.b16 %v441, %v435
    %v544 = vpack.c.b16 %v448, %v442
    %v545 = vpack.c.b16 %v449, %v443
    %v546 = vpack.c.b16 %v450, %v444
    %v547 = vpack.c.b16 %v451, %v445
    %v548 = vpack.c.b16 %v452, %v446
    %v549 = vpack.c.b16 %v453, %v447
    %646 = vmatpush.bf16.msra.mxu0 %v496
    %647 = vmatpush.bf16.msra.mxu0 %v490
    %648 = vmatpush.bf16.msra.mxu0 %v484
    %649 = vmatpush.bf16.msra.mxu0 %v478
    %650 = vmatpush.bf16.msra.mxu0 %v472
    %651 = vmatpush.bf16.msra.mxu0 %v466
    %652 = vmatpush.bf16.msra.mxu0 %v460
    %653 = vmatpush.bf16.msra.mxu0 %v454
    %654 = vmatmul.bf16.gmra.mxu0 %v162
    %v655 = vpop.f32.mrf.mxu0
    %v656 = vadd.f32 0.0, %v655
    %v657 = vpop.f32.mrf.mxu0
    %v658 = vadd.f32 0.0, %v657
    %659 = vdwg.mxu0
    %660 = vmatpush.bf16.msra.mxu0 %v544
    %661 = vmatpush.bf16.msra.mxu0 %v538
    %662 = vmatpush.bf16.msra.mxu0 %v532
    %663 = vmatpush.bf16.msra.mxu0 %v526
    %664 = vmatpush.bf16.msra.mxu0 %v520
    %665 = vmatpush.bf16.msra.mxu0 %v514
    %666 = vmatpush.bf16.msra.mxu0 %v508
    %667 = vmatpush.bf16.msra.mxu0 %v502
    %668 = vmatmul.bf16.gmra.mxu0 %v163
    %v669 = vpop.f32.mrf.mxu0
    %v670 = vadd.f32 %v656, %v669
    %v671 = vpop.f32.mrf.mxu0
    %v672 = vadd.f32 %v658, %v671
    %673 = vdwg.mxu0
    %674 = vmatpush.bf16.msra.mxu0 %v497
    %675 = vmatpush.bf16.msra.mxu0 %v491
    %676 = vmatpush.bf16.msra.mxu0 %v485
    %677 = vmatpush.bf16.msra.mxu0 %v479
    %678 = vmatpush.bf16.msra.mxu0 %v473
    %679 = vmatpush.bf16.msra.mxu0 %v467
    %680 = vmatpush.bf16.msra.mxu0 %v461
    %681 = vmatpush.bf16.msra.mxu0 %v455
    %682 = vmatmul.bf16.gmra.mxu0 %v162
    %v683 = vpop.f32.mrf.mxu0
    %v684 = vadd.f32 0.0, %v683
    %v685 = vpop.f32.mrf.mxu0
    %v686 = vadd.f32 0.0, %v685
    %687 = vdwg.mxu0
    %688 = vmatpush.bf16.msra.mxu0 %v545
    %689 = vmatpush.bf16.msra.mxu0 %v539
    %690 = vmatpush.bf16.msra.mxu0 %v533
    %691 = vmatpush.bf16.msra.mxu0 %v527
    %692 = vmatpush.bf16.msra.mxu0 %v521
    %693 = vmatpush.bf16.msra.mxu0 %v515
    %694 = vmatpush.bf16.msra.mxu0 %v509
    %695 = vmatpush.bf16.msra.mxu0 %v503
    %696 = vmatmul.bf16.gmra.mxu0 %v163
    %v697 = vpop.f32.mrf.mxu0
    %v698 = vadd.f32 %v684, %v697
    %v699 = vpop.f32.mrf.mxu0
    %v700 = vadd.f32 %v686, %v699
    %701 = vdwg.mxu0
    %702 = vmatpush.bf16.msra.mxu0 %v498
    %703 = vmatpush.bf16.msra.mxu0 %v492
    %704 = vmatpush.bf16.msra.mxu0 %v486
    %705 = vmatpush.bf16.msra.mxu0 %v480
    %706 = vmatpush.bf16.msra.mxu0 %v474
    %707 = vmatpush.bf16.msra.mxu0 %v468
    %708 = vmatpush.bf16.msra.mxu0 %v462
    %709 = vmatpush.bf16.msra.mxu0 %v456
    %710 = vmatmul.bf16.gmra.mxu0 %v162
    %v711 = vpop.f32.mrf.mxu0
    %v712 = vadd.f32 0.0, %v711
    %v713 = vpop.f32.mrf.mxu0
    %v714 = vadd.f32 0.0, %v713
    %715 = vdwg.mxu0
    %716 = vmatpush.bf16.msra.mxu0 %v546
    %717 = vmatpush.bf16.msra.mxu0 %v540
    %718 = vmatpush.bf16.msra.mxu0 %v534
    %719 = vmatpush.bf16.msra.mxu0 %v528
    %720 = vmatpush.bf16.msra.mxu0 %v522
    %721 = vmatpush.bf16.msra.mxu0 %v516
    %722 = vmatpush.bf16.msra.mxu0 %v510
    %723 = vmatpush.bf16.msra.mxu0 %v504
    %724 = vmatmul.bf16.gmra.mxu0 %v163
    %v725 = vpop.f32.mrf.mxu0
    %v726 = vadd.f32 %v712, %v725
    %v727 = vpop.f32.mrf.mxu0
    %v728 = vadd.f32 %v714, %v727
    %729 = vdwg.mxu0
    %730 = vmatpush.bf16.msra.mxu0 %v499
    %731 = vmatpush.bf16.msra.mxu0 %v493
    %732 = vmatpush.bf16.msra.mxu0 %v487
    %733 = vmatpush.bf16.msra.mxu0 %v481
    %734 = vmatpush.bf16.msra.mxu0 %v475
    %735 = vmatpush.bf16.msra.mxu0 %v469
    %736 = vmatpush.bf16.msra.mxu0 %v463
    %737 = vmatpush.bf16.msra.mxu0 %v457
    %738 = vmatmul.bf16.gmra.mxu0 %v162
    %v739 = vpop.f32.mrf.mxu0
    %v740 = vadd.f32 0.0, %v739
    %v741 = vpop.f32.mrf.mxu0
    %v742 = vadd.f32 0.0, %v741
    %743 = vdwg.mxu0
    %744 = vmatpush.bf16.msra.mxu0 %v547
    %745 = vmatpush.bf16.msra.mxu0 %v541
    %746 = vmatpush.bf16.msra.mxu0 %v535
    %747 = vmatpush.bf16.msra.mxu0 %v529
    %748 = vmatpush.bf16.msra.mxu0 %v523
    %749 = vmatpush.bf16.msra.mxu0 %v517
    %750 = vmatpush.bf16.msra.mxu0 %v511
    %751 = vmatpush.bf16.msra.mxu0 %v505
    %752 = vmatmul.bf16.gmra.mxu0 %v163
    %v753 = vpop.f32.mrf.mxu0
    %v754 = vadd.f32 %v740, %v753
    %v755 = vpop.f32.mrf.mxu0
    %v756 = vadd.f32 %v742, %v755
    %757 = vdwg.mxu0
    %758 = vmatpush.bf16.msra.mxu0 %v500
    %759 = vmatpush.bf16.msra.mxu0 %v494
    %760 = vmatpush.bf16.msra.mxu0 %v488
    %761 = vmatpush.bf16.msra.mxu0 %v482
    %762 = vmatpush.bf16.msra.mxu0 %v476
    %763 = vmatpush.bf16.msra.mxu0 %v470
    %764 = vmatpush.bf16.msra.mxu0 %v464
    %765 = vmatpush.bf16.msra.mxu0 %v458
    %766 = vmatmul.bf16.gmra.mxu0 %v162
    %v767 = vpop.f32.mrf.mxu0
    %v768 = vadd.f32 0.0, %v767
    %v769 = vpop.f32.mrf.mxu0
    %v770 = vadd.f32 0.0, %v769
    %771 = vdwg.mxu0
    %772 = vmatpush.bf16.msra.mxu0 %v548
    %773 = vmatpush.bf16.msra.mxu0 %v542
    %774 = vmatpush.bf16.msra.mxu0 %v536
    %775 = vmatpush.bf16.msra.mxu0 %v530
    %776 = vmatpush.bf16.msra.mxu0 %v524
    %777 = vmatpush.bf16.msra.mxu0 %v518
    %778 = vmatpush.bf16.msra.mxu0 %v512
    %779 = vmatpush.bf16.msra.mxu0 %v506
    %780 = vmatmul.bf16.gmra.mxu0 %v163
    %v781 = vpop.f32.mrf.mxu0
    %v782 = vadd.f32 %v768, %v781
    %v783 = vpop.f32.mrf.mxu0
    %v784 = vadd.f32 %v770, %v783
    %785 = vdwg.mxu0
    %786 = vmatpush.bf16.msra.mxu0 %v501
    %787 = vmatpush.bf16.msra.mxu0 %v495
    %788 = vmatpush.bf16.msra.mxu0 %v489
    %789 = vmatpush.bf16.msra.mxu0 %v483
    %790 = vmatpush.bf16.msra.mxu0 %v477
    %791 = vmatpush.bf16.msra.mxu0 %v471
    %792 = vmatpush.bf16.msra.mxu0 %v465
    %793 = vmatpush.bf16.msra.mxu0 %v459
    %794 = vmatmul.bf16.gmra.mxu0 %v162
    %v795 = vpop.f32.mrf.mxu0
    %v796 = vadd.f32 0.0, %v795
    %v797 = vpop.f32.mrf.mxu0
    %v798 = vadd.f32 0.0, %v797
    %799 = vdwg.mxu0
    %800 = vmatpush.bf16.msra.mxu0 %v549
    %801 = vmatpush.bf16.msra.mxu0 %v543
    %802 = vmatpush.bf16.msra.mxu0 %v537
    %803 = vmatpush.bf16.msra.mxu0 %v531
    %804 = vmatpush.bf16.msra.mxu0 %v525
    %805 = vmatpush.bf16.msra.mxu0 %v519
    %806 = vmatpush.bf16.msra.mxu0 %v513
    %807 = vmatpush.bf16.msra.mxu0 %v507
    %808 = vmatmul.bf16.gmra.mxu0 %v163
    %v809 = vpop.f32.mrf.mxu0
    %v810 = vadd.f32 %v796, %v809
    %v811 = vpop.f32.mrf.mxu0
    %v812 = vadd.f32 %v798, %v811
    %813 = vdwg.mxu0
    %v814 = vadd.f32 %v46, %v670
    %v815 = vadd.f32 %v47, %v698
    %v816 = vadd.f32 %v48, %v726
    %v817 = vadd.f32 %v49, %v754
    %v818 = vadd.f32 %v50, %v782
    %v819 = vadd.f32 %v51, %v810
    %v820 = vadd.f32 %v52, %v672
    %v821 = vadd.f32 %v53, %v700
    %v822 = vadd.f32 %v54, %v728
    %v823 = vadd.f32 %v55, %v756
    %v824 = vadd.f32 %v56, %v784
    %v825 = vadd.f32 %v57, %v812
    %826 = vst [vmem:[#allocation2] sm:$0xff] %v814
    %827 = vst [vmem:[#allocation2 + $0x8] sm:$0xff] %v815
    %828 = vst [vmem:[#allocation2 + $0x10] sm:$0xff] %v816
    %829 = vst [vmem:[#allocation2 + $0x18] sm:$0xff] %v817
    %830 = vst [vmem:[#allocation2 + $0x20] sm:$0xff] %v818
    %831 = vst [vmem:[#allocation2 + $0x28] sm:$0xff] %v819
    %832 = vst [vmem:[#allocation2 + $0x30] sm:$0xff] %v820
    %833 = vst [vmem:[#allocation2 + $0x38] sm:$0xff] %v821
    %834 = vst [vmem:[#allocation2 + $0x40] sm:$0xff] %v822
    %835 = vst [vmem:[#allocation2 + $0x48] sm:$0xff] %v823
    %836 = vst [vmem:[#allocation2 + $0x50] sm:$0xff] %v824
    %837 = vst [vmem:[#allocation2 + $0x58] sm:$0xff] %v825
    // Predicated region
    $region22: #{bert_forward.12} parent=1 // pred_check
      %p838 = pneg %p30
    $region23: #{bert_forward.12} parent=1 // pred_check_branch
      %840 = sbr.rel (%p838) target = $region25
    $region24: #{bert_forward.12} parent=1 // pred_region
      %v841 = vld [vmem:[#allocation2] sm:$0xff]
      %v842 = vld [vmem:[#allocation2 + $0x8] sm:$0xff]
      %v843 = vld [vmem:[#allocation2 + $0x10] sm:$0xff]
      %v844 = vld [vmem:[#allocation2 + $0x18] sm:$0xff]
      %v845 = vld [vmem:[#allocation2 + $0x20] sm:$0xff]
      %v846 = vld [vmem:[#allocation2 + $0x28] sm:$0xff]
      %v847 = vld [vmem:[#allocation2 + $0x30] sm:$0xff]
      %v848 = vld [vmem:[#allocation2 + $0x38] sm:$0xff]
      %v849 = vld [vmem:[#allocation2 + $0x40] sm:$0xff]
      %v850 = vld [vmem:[#allocation2 + $0x48] sm:$0xff]
      %v851 = vld [vmem:[#allocation2 + $0x50] sm:$0xff]
      %v852 = vld [vmem:[#allocation2 + $0x58] sm:$0xff]
      %v853 = vld [vmem:[%s2] sm:$0x3f]
      %v855 = vperm.slane %v853, 0
      %v856 = vperm.slane %v853, 1
      %v857 = vperm.slane %v853, 2
      %v858 = vperm.slane %v853, 3
      %v859 = vperm.slane %v853, 4
      %v860 = vperm.slane %v853, 5
      %v867 = vadd.f32 %v841, %v855
      %v868 = vadd.f32 %v842, %v856
      %v869 = vadd.f32 %v843, %v857
      %v870 = vadd.f32 %v844, %v858
      %v871 = vadd.f32 %v845, %v859
      %v872 = vadd.f32 %v846, %v860
      %v873 = vadd.f32 %v847, %v855
      %v874 = vadd.f32 %v848, %v856
      %v875 = vadd.f32 %v849, %v857
      %v876 = vadd.f32 %v850, %v858
      %v877 = vadd.f32 %v851, %v859
      %v878 = vadd.f32 %v852, %v860
      %v879 = vpack.c.bf16 %v868, %v867
      %v880 = vpack.c.bf16 %v870, %v869
      %v881 = vpack.c.bf16 %v872, %v871
      %v882 = vpack.c.bf16 %v874, %v873
      %v883 = vpack.c.bf16 %v876, %v875
      %v884 = vpack.c.bf16 %v878, %v877
      %885 = vst [vmem:[%s3] sm:$0xff] %v879
      %886 = vst [vmem:[%s3 + $0x8] sm:$0xff] %v880
      %887 = vst [vmem:[%s3 + $0x10] sm:$0xff] %v881
      %888 = vst [vmem:[%s3 + $0x18] sm:$0xff] %v882
      %889 = vst [vmem:[%s3 + $0x20] sm:$0xff] %v883
      %890 = vst [vmem:[%s3 + $0x28] sm:$0xff] %v884
    $region25: #{bert_forward.12} parent=1 // pred_fallthru
      _
    // Predicated region
    $region26: #{bert_forward.12} parent=1 // pred_check
      _
    $region27: #{bert_forward.12} parent=1 // pred_check_branch
      %892 = sbr.rel (0) target = $region29
    $region28: #{bert_forward.12} parent=1 // pred_region
      _
    $region29: #{bert_forward.12} parent=1 // pred_fallthru
      _
    // Predicated region
    $region30: #{bert_forward.12} parent=1 // pred_check
      _
    $region31: #{bert_forward.12} parent=1 // pred_check_branch
      %894 = sbr.rel (0) target = $region33
    $region32: #{bert_forward.12} parent=1 // pred_region
      _
    $region33: #{bert_forward.12} parent=1 // pred_fallthru
      _
    %895 = vsyncpa [#allocation4], 1

// kernel: bert_forward.13
$region0: #{bert_forward.13}
  #allocation0 [shape = 'u32[]', space=smem, size = 0x4, offset = 0x4, fixed_abs, tag = 'smem constant byte address 0x4 - core index']
  #allocation1 [shape = 'u32[72,128]{1,0:T(1,128)}', space=vmem, size = 0x9000, scoped, tag = 'internal scratch']
  %s0 = inlined_call_operand.vmem [shape: bf16[2,8,768], index: 0, kind: input, shape index: {}, may-alias: {0,1,2}]
  %s1 = inlined_call_operand.vmem [shape: bf16[2,8,768], index: 1, kind: input, shape index: {}, may-alias: {0,1,2}]
  %s2 = inlined_call_operand.vmem [shape: bf16[2,8,768], index: 2, kind: input, shape index: {}, may-alias: {0,1,2}]
  %s3 = inlined_call_operand.vmem [shape: f32[2,1,8], index: 3, kind: input, shape index: {}]
  %s4 = inlined_call_operand.vmem [shape: bf16[2,8,256], index: 4, kind: output, shape index: {}]
  %s5 = sld [smem:[#allocation0]]
  $region49: #{bert_forward.13} parent=0
    _
  %s7 = ssub.s32 1, %s5
  %s8 = scalar_select 0, %s7, %s5
  loop: start=0, step=1, limit=6
  $region2: #{bert_forward.13} parent=0 // loop_pre_header
    _
  $region3: #{bert_forward.13} parent=0 // loop_header
    %s10 = sphi 0, %s14
    %p11 = scmp.ge.s32.totalorder %s10, 6
    %s17 = sphi 0, %s29
    %s18 = sphi 0, %s25
    %s19 = sphi 0, %s17
    %s20 = sphi 0, %s18
    %s21 = sphi 0, %s19
    %s22 = sphi 0, %s20
    %s34 = sphi 0, %s36
    %s37 = sphi 0, %s34
    %s38 = sphi 0, %s37
    %s54 = sphi 0, %s38
    %s64 = sphi 0, %s66
    %s67 = sphi 0, %s64
    %s68 = sphi 0, %s67
    %s84 = sphi 0, %s68
    %s94 = sphi 0, %s96
    %s97 = sphi 0, %s94
    %s98 = sphi 0, %s97
    %s114 = sphi 0, %s98
    %s120 = sphi 0, %s122
    %s123 = sphi 0, %s120
    %s124 = sphi 0, %s123
    %s140 = sphi 0, %s124
    %s148 = sphi 0, %s150
    %s151 = sphi 0, %s148
    %s152 = sphi 0, %s151
    %s168 = sphi 0, %s152
  $region4: #{bert_forward.13} parent=0 // loop_header_branch
    %13 = sbr.rel (%p11) target = $region8
  $region5: #{bert_forward.13} parent=0 // loop_body
    %s15 = ssub.s32 %s10, 1
    %s16 = ssub.s32 %s10, 2
    %s23 = sadd.s32 1, %s18
    %p24 = scmp.ge.s32.totalorder %s23, 2
    %s25 = scalar_select %p24, 0, %s23
    %s26 = sadd.s32 1, %s17
    %s27 = scalar_select %p24, %s26, %s17
    %p28 = scmp.ge.s32.totalorder %s27, 2
    %s29 = scalar_select %p28, 0, %s27
    %s30 = ssub.s32 %s17, %s29
    %s31 = ssub.s32 %s18, %s25
    %s32 = sor.u32 %s30, %s31
    %p33 = scmp.eq.s32.totalorder %s32, 0
    %s35 = sadd.s32 %s34, 1
    %s36 = scalar_select %p33, %s34, %s35
    %p39 = pneg %p33
    %p40 = scmp.eq.s32.totalorder %s10, 3
    %p41 = por %p39, %p40
    %p42 = scmp.ne.s32.totalorder %s34, %s37
    %p43 = scmp.eq.s32.totalorder %s10, 0
    %p44 = por %p42, %p43
    %p45 = scmp.ne.s32.totalorder %s34, %s37
    %p46 = scmp.eq.s32.totalorder %s15, 3
    %p47 = por %p45, %p46
    %p48 = scmp.ne.s32.totalorder %s37, %s38
    %p49 = scmp.eq.s32.totalorder %s15, 0
    %p50 = por %p48, %p49
    %p51 = scmp.ne.s32.totalorder %s37, %s38
    %p52 = scmp.eq.s32.totalorder %s16, 3
    %p53 = por %p51, %p52
    %p55 = scmp.ne.s32.totalorder %s38, %s54
    %p56 = scmp.eq.s32.totalorder %s16, 0
    %p57 = por %p55, %p56
    %s58 = sadd.s32 %s18, 2
    %s59 = sadd.s32 %s25, 2
    %s60 = ssub.s32 %s17, %s29
    %s61 = ssub.s32 %s58, %s59
    %s62 = sor.u32 %s60, %s61
    %p63 = scmp.eq.s32.totalorder %s62, 0
    %s65 = sadd.s32 %s64, 1
    %s66 = scalar_select %p63, %s64, %s65
    %p69 = pneg %p63
    %p70 = scmp.eq.s32.totalorder %s10, 3
    %p71 = por %p69, %p70
    %p72 = scmp.ne.s32.totalorder %s64, %s67
    %p73 = scmp.eq.s32.totalorder %s10, 0
    %p74 = por %p72, %p73
    %p75 = scmp.ne.s32.totalorder %s64, %s67
    %p76 = scmp.eq.s32.totalorder %s15, 3
    %p77 = por %p75, %p76
    %p78 = scmp.ne.s32.totalorder %s67, %s68
    %p79 = scmp.eq.s32.totalorder %s15, 0
    %p80 = por %p78, %p79
    %p81 = scmp.ne.s32.totalorder %s67, %s68
    %p82 = scmp.eq.s32.totalorder %s16, 3
    %p83 = por %p81, %p82
    %p85 = scmp.ne.s32.totalorder %s68, %s84
    %p86 = scmp.eq.s32.totalorder %s16, 0
    %p87 = por %p85, %p86
    %s88 = sadd.s32 %s18, 4
    %s89 = sadd.s32 %s25, 4
    %s90 = ssub.s32 %s17, %s29
    %s91 = ssub.s32 %s88, %s89
    %s92 = sor.u32 %s90, %s91
    %p93 = scmp.eq.s32.totalorder %s92, 0
    %s95 = sadd.s32 %s94, 1
    %s96 = scalar_select %p93, %s94, %s95
    %p99 = pneg %p93
    %p100 = scmp.eq.s32.totalorder %s10, 3
    %p101 = por %p99, %p100
    %p102 = scmp.ne.s32.totalorder %s94, %s97
    %p103 = scmp.eq.s32.totalorder %s10, 0
    %p104 = por %p102, %p103
    %p105 = scmp.ne.s32.totalorder %s94, %s97
    %p106 = scmp.eq.s32.totalorder %s15, 3
    %p107 = por %p105, %p106
    %p108 = scmp.ne.s32.totalorder %s97, %s98
    %p109 = scmp.eq.s32.totalorder %s15, 0
    %p110 = por %p108, %p109
    %p111 = scmp.ne.s32.totalorder %s97, %s98
    %p112 = scmp.eq.s32.totalorder %s16, 3
    %p113 = por %p111, %p112
    %p115 = scmp.ne.s32.totalorder %s98, %s114
    %p116 = scmp.eq.s32.totalorder %s16, 0
    %p117 = por %p115, %p116
    %s118 = ssub.s32 %s17, %s29
    %p119 = scmp.eq.s32.totalorder %s118, 0
    %s121 = sadd.s32 %s120, 1
    %s122 = scalar_select %p119, %s120, %s121
    %p125 = pneg %p119
    %p126 = scmp.eq.s32.totalorder %s10, 3
    %p127 = por %p125, %p126
    %p128 = scmp.ne.s32.totalorder %s120, %s123
    %p129 = scmp.eq.s32.totalorder %s10, 0
    %p130 = por %p128, %p129
    %p131 = scmp.ne.s32.totalorder %s120, %s123
    %p132 = scmp.eq.s32.totalorder %s15, 3
    %p133 = por %p131, %p132
    %p134 = scmp.ne.s32.totalorder %s123, %s124
    %p135 = scmp.eq.s32.totalorder %s15, 0
    %p136 = por %p134, %p135
    %p137 = scmp.ne.s32.totalorder %s123, %s124
    %p138 = scmp.eq.s32.totalorder %s16, 3
    %p139 = por %p137, %p138
    %p141 = scmp.ne.s32.totalorder %s124, %s140
    %p142 = scmp.eq.s32.totalorder %s16, 0
    %p143 = por %p141, %p142
    %s144 = ssub.s32 %s17, %s29
    %s145 = ssub.s32 %s18, %s25
    %s146 = sor.u32 %s144, %s145
    %p147 = scmp.eq.s32.totalorder %s146, 0
    %s149 = sadd.s32 %s148, 1
    %s150 = scalar_select %p147, %s148, %s149
    %p153 = pneg %p147
    %p154 = scmp.eq.s32.totalorder %s10, 3
    %p155 = por %p153, %p154
    %p156 = scmp.ne.s32.totalorder %s148, %s151
    %p157 = scmp.eq.s32.totalorder %s10, 0
    %p158 = por %p156, %p157
    %p159 = scmp.ne.s32.totalorder %s148, %s151
    %p160 = scmp.eq.s32.totalorder %s15, 3
    %p161 = por %p159, %p160
    %p162 = scmp.ne.s32.totalorder %s151, %s152
    %p163 = scmp.eq.s32.totalorder %s15, 0
    %p164 = por %p162, %p163
    %p165 = scmp.ne.s32.totalorder %s151, %s152
    %p166 = scmp.eq.s32.totalorder %s16, 3
    %p167 = por %p165, %p166
    %p169 = scmp.ne.s32.totalorder %s152, %s168
    %p170 = scmp.eq.s32.totalorder %s16, 0
    %p171 = por %p169, %p170
    %p172 = scmp.le.s32.totalorder 1, %s10
    %p173 = scmp.lt.s32.totalorder %s10, 5
    %p174 = pnand %p172, %p173
    %p175 = pneg %p174
    // Predicated region
    $region9: #{bert_forward.13} parent=5 // pred_check
      _
    $region10: #{bert_forward.13} parent=5 // pred_check_branch
      %177 = sbr.rel (%p174) target = $region12
    $region11: #{bert_forward.13} parent=5 // pred_region
      %s178 = ssub.s32 %s10, 1
    $region12: #{bert_forward.13} parent=5 // pred_fallthru
      _
    %p179 = scmp.lt.s32.totalorder %s10, 4
    // Predicated region
    $region13: #{bert_forward.13} parent=5 // pred_check
      %p180 = pneg %p179
    $region14: #{bert_forward.13} parent=5 // pred_check_branch
      %182 = sbr.rel (%p180) target = $region16
    $region15: #{bert_forward.13} parent=5 // pred_region
      // Predicated region
      $region17: #{bert_forward.13} parent=15 // pred_check
        %p183 = pneg %p44
      $region18: #{bert_forward.13} parent=15 // pred_check_branch
        %185 = sbr.rel (%p183) target = $region20
      $region19: #{bert_forward.13} parent=15 // pred_region
        %p186 = scmp.lt.s32.totalorder %s17, 1
        %s187 = scalar_select %p186, %s17, 1
        %p188 = scmp.lt.s32.totalorder %s18, 5
        %s189 = scalar_select %p188, %s18, 5
        %s190 = smul.addr %s187, 6
        %s191 = sadd.s32 %s189, %s190
        %s192 = smul.addr %s191, 4
        %s193 = scalar_lea.vmem %s0, %s192
      $region20: #{bert_forward.13} parent=15 // pred_fallthru
        _
      // Predicated region
      $region21: #{bert_forward.13} parent=15 // pred_check
        %p194 = pneg %p74
      $region22: #{bert_forward.13} parent=15 // pred_check_branch
        %196 = sbr.rel (%p194) target = $region24
      $region23: #{bert_forward.13} parent=15 // pred_region
        %s197 = sadd.s32 %s18, 2
        %p198 = scmp.lt.s32.totalorder %s17, 1
        %s199 = scalar_select %p198, %s17, 1
        %p200 = scmp.lt.s32.totalorder %s197, 5
        %s201 = scalar_select %p200, %s197, 5
        %s202 = smul.addr %s199, 6
        %s203 = sadd.s32 %s201, %s202
        %s204 = smul.addr %s203, 4
        %s205 = scalar_lea.vmem %s1, %s204
        %s206 = sadd.s32 %s18, 2
      $region24: #{bert_forward.13} parent=15 // pred_fallthru
        _
      // Predicated region
      $region25: #{bert_forward.13} parent=15 // pred_check
        %p207 = pneg %p104
      $region26: #{bert_forward.13} parent=15 // pred_check_branch
        %209 = sbr.rel (%p207) target = $region28
      $region27: #{bert_forward.13} parent=15 // pred_region
        %s210 = sadd.s32 %s18, 4
        %p211 = scmp.lt.s32.totalorder %s17, 1
        %s212 = scalar_select %p211, %s17, 1
        %p213 = scmp.lt.s32.totalorder %s210, 5
        %s214 = scalar_select %p213, %s210, 5
        %s215 = smul.addr %s212, 6
        %s216 = sadd.s32 %s214, %s215
        %s217 = smul.addr %s216, 4
        %s218 = scalar_lea.vmem %s2, %s217
        %s219 = sadd.s32 %s18, 4
      $region28: #{bert_forward.13} parent=15 // pred_fallthru
        _
      // Predicated region
      $region29: #{bert_forward.13} parent=15 // pred_check
        %p220 = pneg %p130
      $region30: #{bert_forward.13} parent=15 // pred_check_branch
        %222 = sbr.rel (%p220) target = $region32
      $region31: #{bert_forward.13} parent=15 // pred_region
        %p223 = scmp.lt.s32.totalorder %s17, 1
        %s224 = scalar_select %p223, %s17, 1
        %s225 = scalar_lea.vmem %s3, %s224
      $region32: #{bert_forward.13} parent=15 // pred_fallthru
        _
    $region16: #{bert_forward.13} parent=5 // pred_fallthru
      _
    %p226 = scmp.le.s32.totalorder 1, %s10
    %p227 = scmp.lt.s32.totalorder %s10, 5
    %p228 = pnand %p226, %p227
    %p229 = pneg %p228
    // Predicated region
    $region33: #{bert_forward.13} parent=5 // pred_check
      _
    $region34: #{bert_forward.13} parent=5 // pred_check_branch
      %231 = sbr.rel (%p228) target = $region36
    $region35: #{bert_forward.13} parent=5 // pred_region
      %s232 = ssub.s32 %s10, 1
      %p233 = scmp.lt.s32.totalorder %s19, 1
      %s234 = scalar_select %p233, %s19, 1
      %p235 = scmp.lt.s32.totalorder %s20, 5
      %s236 = scalar_select %p235, %s20, 5
      %s237 = smul.addr %s234, 6
      %s238 = sadd.s32 %s236, %s237
      %s239 = smul.addr %s238, 4
      %s240 = scalar_lea.vmem %s0, %s239
      %p241 = pneg %p50
      %p242 = pneg %p47
      %s243 = sadd.s32 %s20, 2
      %p244 = scmp.lt.s32.totalorder %s19, 1
      %s245 = scalar_select %p244, %s19, 1
      %p246 = scmp.lt.s32.totalorder %s243, 5
      %s247 = scalar_select %p246, %s243, 5
      %s248 = smul.addr %s245, 6
      %s249 = sadd.s32 %s247, %s248
      %s250 = smul.addr %s249, 4
      %s251 = scalar_lea.vmem %s1, %s250
      %p252 = pneg %p80
      %p253 = pneg %p77
      %s254 = sadd.s32 %s20, 4
      %p255 = scmp.lt.s32.totalorder %s19, 1
      %s256 = scalar_select %p255, %s19, 1
      %p257 = scmp.lt.s32.totalorder %s254, 5
      %s258 = scalar_select %p257, %s254, 5
      %s259 = smul.addr %s256, 6
      %s260 = sadd.s32 %s258, %s259
      %s261 = smul.addr %s260, 4
      %s262 = scalar_lea.vmem %s2, %s261
      %p263 = pneg %p110
      %p264 = pneg %p107
      %p265 = scmp.lt.s32.totalorder %s19, 1
      %s266 = scalar_select %p265, %s19, 1
      %s267 = scalar_lea.vmem %s3, %s266
      %p268 = pneg %p136
      %p269 = pneg %p133
      %p270 = pneg %p164
      %p271 = pneg %p161
      %p272 = scmp.lt.s32.totalorder %s19, 1
      %s273 = scalar_select %p272, %s19, 1
      %p274 = scmp.lt.s32.totalorder %s20, 1
      %s275 = scalar_select %p274, %s20, 1
      %s276 = smul.addr %s273, 2
      %s277 = sadd.s32 %s275, %s276
      %s278 = smul.addr %s277, 4
      %s279 = scalar_lea.vmem %s4, %s278
      %p280 = scmp.lt.s32.totalorder %s19, 1
      %s281 = scalar_select %p280, %s19, 1
      %p282 = scmp.lt.s32.totalorder %s20, 5
      %s283 = scalar_select %p282, %s20, 5
      %s284 = smul.addr %s281, 6
      %s285 = sadd.s32 %s283, %s284
      %s286 = smul.addr %s285, 4
      %s287 = scalar_lea.vmem %s0, %s286
      %s288 = sadd.s32 %s20, 2
      %p289 = scmp.lt.s32.totalorder %s19, 1
      %s290 = scalar_select %p289, %s19, 1
      %p291 = scmp.lt.s32.totalorder %s288, 5
      %s292 = scalar_select %p291, %s288, 5
      %s293 = smul.addr %s290, 6
      %s294 = sadd.s32 %s292, %s293
      %s295 = smul.addr %s294, 4
      %s296 = scalar_lea.vmem %s1, %s295
      %s297 = sadd.s32 %s20, 2
      %s298 = sadd.s32 %s20, 4
      %p299 = scmp.lt.s32.totalorder %s19, 1
      %s300 = scalar_select %p299, %s19, 1
      %p301 = scmp.lt.s32.totalorder %s298, 5
      %s302 = scalar_select %p301, %s298, 5
      %s303 = smul.addr %s300, 6
      %s304 = sadd.s32 %s302, %s303
      %s305 = smul.addr %s304, 4
      %s306 = scalar_lea.vmem %s2, %s305
      %s307 = sadd.s32 %s20, 4
      %p308 = scmp.lt.s32.totalorder %s19, 1
      %s309 = scalar_select %p308, %s19, 1
      %s310 = scalar_lea.vmem %s3, %s309
      %p311 = scmp.lt.s32.totalorder %s19, 1
      %s312 = scalar_select %p311, %s19, 1
      %p313 = scmp.lt.s32.totalorder %s20, 1
      %s314 = scalar_select %p313, %s20, 1
      %s315 = smul.addr %s312, 2
      %s316 = sadd.s32 %s314, %s315
      %s317 = smul.addr %s316, 4
      %s318 = scalar_lea.vmem %s4, %s317
      %v320 = vld [vmem:[%s310] sm:$0x1]
      %v321 = vld [vmem:[%s287] sm:$0xf]
      %v322 = vld [vmem:[%s296] sm:$0xf]
      %v323 = vld [vmem:[%s306] sm:$0xf]
      %v325 = vperm.slane %v320, 0
      %vm327 = vcmask 523264
      %v329 = vsel %vm327, %v321, 0
      %v332 = vsel %vm327, %v322, 0
      %334 = vmatpush.bf16.xpose.msra.mxu0 0
      %335 = vmatpush.bf16.xpose.msra.mxu0 0
      %336 = vmatpush.bf16.xpose.msra.mxu0 0
      %337 = vmatpush.bf16.xpose.msra.mxu0 0
      %338 = vmatpush.bf16.xpose.msra.mxu0 0
      %339 = vmatpush.bf16.xpose.msra.mxu0 0
      %340 = vmatpush.bf16.xpose.msra.mxu0 0
      %341 = vmatpush.bf16.xpose.msra.mxu0 %v332
      %342 = vmatmul.bf16.gmra.mxu0 %v329
      %v343 = vpop.f32.mrf.mxu0
      %v344 = vadd.f32 %v325, %v343
      %v345 = vpop.f32.mrf.mxu0
      %346 = vdwg.mxu0
      %vm347 = vcmask 64512
      %v348 = vsel %vm347, %v344, -inf
      %349 = vmax.xlane.f32.xlu0 %v348
      %v350 = vpop.xlane.xlu0 %349
      %v351 = vsub.f32 %v344, %v350
      %v352 = vmul.f32 %v351, 1.442695
      %v353 = vpow.pop %v352
      %v354 = vsel %vm347, %v353, 0.0
      %355 = vadd.xlane.f32.xlu0 %v354
      %v356 = vpop.xlane.xlu0 %355
      %v357 = vpack.c.bf16 %v353, %v353
      %v359 = vsel %vm347, %v357, 0
      %vm361 = vcmask 1043456
      %v363 = vsel %vm361, %v323, 0
      %365 = vmatpush.bf16.msra.mxu0 0
      %366 = vmatpush.bf16.msra.mxu0 0
      %367 = vmatpush.bf16.msra.mxu0 0
      %368 = vmatpush.bf16.msra.mxu0 0
      %369 = vmatpush.bf16.msra.mxu0 0
      %370 = vmatpush.bf16.msra.mxu0 0
      %371 = vmatpush.bf16.msra.mxu0 0
      %372 = vmatpush.bf16.msra.mxu0 %v363
      %373 = vmatmul.bf16.gmra.mxu0 %v359
      %v374 = vpop.f32.mrf.mxu0
      %v375 = vadd.f32 0.0, %v374
      %v376 = vpop.f32.mrf.mxu0
      %377 = vdwg.mxu0
      %v378 = vrcp.pop %v356
      %v379 = vmul.f32 %v375, %v378
      %v380 = vld [vmem:[%s287] sm:$0xf]
      %v381 = vld [vmem:[%s296] sm:$0xf]
      %v382 = vld [vmem:[%s306] sm:$0xf]
      %v384 = vunpack.c.l.b16 %v380
      %v385 = vpack.c.b16 %v384, %v384
      %386 = vrot.lane.b32.xlu0 %v385, 64
      %v387 = vpop.permute.xlu0 %386
      %v389 = vunpack.c.l.b16 %v381
      %v390 = vpack.c.b16 %v389, %v389
      %391 = vrot.lane.b32.xlu0 %v390, 64
      %v392 = vpop.permute.xlu0 %391
      %v394 = vsel %vm327, %v387, 0
      %v397 = vsel %vm327, %v392, 0
      %399 = vmatpush.bf16.xpose.msra.mxu0 0
      %400 = vmatpush.bf16.xpose.msra.mxu0 0
      %401 = vmatpush.bf16.xpose.msra.mxu0 0
      %402 = vmatpush.bf16.xpose.msra.mxu0 0
      %403 = vmatpush.bf16.xpose.msra.mxu0 0
      %404 = vmatpush.bf16.xpose.msra.mxu0 0
      %405 = vmatpush.bf16.xpose.msra.mxu0 0
      %406 = vmatpush.bf16.xpose.msra.mxu0 %v397
      %407 = vmatmul.bf16.gmra.mxu0 %v394
      %v408 = vpop.f32.mrf.mxu0
      %v409 = vadd.f32 %v325, %v408
      %v410 = vpop.f32.mrf.mxu0
      %411 = vdwg.mxu0
      %v412 = vsel %vm347, %v409, -inf
      %413 = vmax.xlane.f32.xlu0 %v412
      %v414 = vpop.xlane.xlu0 %413
      %v415 = vsub.f32 %v409, %v414
      %v416 = vmul.f32 %v415, 1.442695
      %v417 = vpow.pop %v416
      %v418 = vsel %vm347, %v417, 0.0
      %419 = vadd.xlane.f32.xlu0 %v418
      %v420 = vpop.xlane.xlu0 %419
      %v421 = vpack.c.bf16 %v417, %v417
      %v423 = vunpack.c.l.b16 %v382
      %v424 = vpack.c.b16 %v423, %v423
      %425 = vrot.lane.b32.xlu0 %v424, 64
      %v426 = vpop.permute.xlu0 %425
      %v428 = vsel %vm347, %v421, 0
      %v431 = vsel %vm361, %v426, 0
      %433 = vmatpush.bf16.msra.mxu0 0
      %434 = vmatpush.bf16.msra.mxu0 0
      %435 = vmatpush.bf16.msra.mxu0 0
      %436 = vmatpush.bf16.msra.mxu0 0
      %437 = vmatpush.bf16.msra.mxu0 0
      %438 = vmatpush.bf16.msra.mxu0 0
      %439 = vmatpush.bf16.msra.mxu0 0
      %440 = vmatpush.bf16.msra.mxu0 %v431
      %441 = vmatmul.bf16.gmra.mxu0 %v428
      %v442 = vpop.f32.mrf.mxu0
      %v443 = vadd.f32 0.0, %v442
      %v444 = vpop.f32.mrf.mxu0
      %445 = vdwg.mxu0
      %v446 = vrcp.pop %v420
      %v447 = vmul.f32 %v443, %v446
      %449 = vrot.lane.b32.xlu0 %v447, 64
      %v450 = vpop.permute.xlu0 %449
      %v452 = vsel %vm327, %v379, %v450
      %v453 = vpack.c.bf16 %v452, %v452
      %454 = vst [vmem:[%s318] sm:$0xf] %v453
      %p455 = scmp.lt.s32.totalorder %s19, 1
      %s456 = scalar_select %p455, %s19, 1
      %p457 = scmp.lt.s32.totalorder %s20, 1
      %s458 = scalar_select %p457, %s20, 1
      %s459 = smul.addr %s456, 2
      %s460 = sadd.s32 %s458, %s459
      %s461 = smul.addr %s460, 4
      %s462 = scalar_lea.vmem %s4, %s461
      // Predicated region
      $region37: #{bert_forward.13} parent=35 // pred_check
        %p463 = pneg %p161
      $region38: #{bert_forward.13} parent=35 // pred_check_branch
        %465 = sbr.rel (%p463) target = $region40
      $region39: #{bert_forward.13} parent=35 // pred_region
        _
      $region40: #{bert_forward.13} parent=35 // pred_fallthru
        _
    $region36: #{bert_forward.13} parent=5 // pred_fallthru
      _
    %p466 = scmp.le.s32.totalorder 2, %s10
    // Predicated region
    $region41: #{bert_forward.13} parent=5 // pred_check
      %p467 = pneg %p466
    $region42: #{bert_forward.13} parent=5 // pred_check_branch
      %469 = sbr.rel (%p467) target = $region44
    $region43: #{bert_forward.13} parent=5 // pred_region
      %s470 = ssub.s32 %s10, 2
      // Predicated region
      $region45: #{bert_forward.13} parent=43 // pred_check
        %p471 = pneg %p167
      $region46: #{bert_forward.13} parent=43 // pred_check_branch
        %473 = sbr.rel (%p471) target = $region48
      $region47: #{bert_forward.13} parent=43 // pred_region
        %p474 = scmp.lt.s32.totalorder %s21, 1
        %s475 = scalar_select %p474, %s21, 1
        %p476 = scmp.lt.s32.totalorder %s22, 1
        %s477 = scalar_select %p476, %s22, 1
        %s478 = smul.addr %s475, 2
        %s479 = sadd.s32 %s477, %s478
        %s480 = smul.addr %s479, 4
        %s481 = scalar_lea.vmem %s4, %s480
      $region48: #{bert_forward.13} parent=43 // pred_fallthru
        _
    $region44: #{bert_forward.13} parent=5 // pred_fallthru
      _
  $region6: #{bert_forward.13} parent=0 // loop_footer
    %s14 = sadd.s32 1, %s10
  $region7: #{bert_forward.13} parent=0 // loop_footer_branch
    %9 = sbr.rel target = $region3
  $region8: #{bert_forward.13} parent=0 // loop_exit
    _

// kernel: bert_forward.14
$region0: #{bert_forward.14}
  #allocation0 [shape = 'u32[]', space=smem, size = 0x4, offset = 0x4, fixed_abs, tag = 'smem constant byte address 0x4 - core index']
  #allocation1 [shape = 'u32[72,128]{1,0:T(1,128)}', space=vmem, size = 0x9000, scoped, tag = 'internal scratch']
  #allocation2 [shape = 'f32[16,256]{1,0:T(8,128)}', space=vmem, size = 0x4000, scoped, tag = 'scratch operand']
  %s0 = inlined_call_operand.vmem [shape: bf16[16,256], index: 0, kind: input, shape index: {}]
  %s1 = inlined_call_operand.vmem [shape: bf16[256,256], index: 1, kind: input, shape index: {}]
  %s2 = inlined_call_operand.vmem [shape: f32[1,256], index: 2, kind: input, shape index: {}]
  %s3 = inlined_call_operand.vmem [shape: bf16[16,256], index: 3, kind: input, shape index: {}]
  %s4 = inlined_call_operand.vmem [shape: f32[1,256], index: 4, kind: input, shape index: {}]
  %s5 = inlined_call_operand.vmem [shape: f32[1,256], index: 5, kind: input, shape index: {}]
  %s6 = inlined_call_operand.vmem [shape: bf16[16,256], index: 6, kind: output, shape index: {}]
  %s7 = sld [smem:[#allocation0]]
  $region42: #{bert_forward.14} parent=0
    _
  %s9 = ssub.s32 1, %s7
  %s10 = scalar_select 0, %s9, %s7
  // Predicated region
  $region2: #{bert_forward.14} parent=0 // pred_check
    _
  $region3: #{bert_forward.14} parent=0 // pred_check_branch
    %12 = sbr.rel (0) target = $region5
  $region4: #{bert_forward.14} parent=0 // pred_region
    _
  $region5: #{bert_forward.14} parent=0 // pred_fallthru
    _
  // Predicated region
  $region6: #{bert_forward.14} parent=0 // pred_check
    _
  $region7: #{bert_forward.14} parent=0 // pred_check_branch
    %14 = sbr.rel (0) target = $region9
  $region8: #{bert_forward.14} parent=0 // pred_region
    _
  $region9: #{bert_forward.14} parent=0 // pred_fallthru
    _
  // Predicated region
  $region10: #{bert_forward.14} parent=0 // pred_check
    _
  $region11: #{bert_forward.14} parent=0 // pred_check_branch
    %16 = sbr.rel (0) target = $region13
  $region12: #{bert_forward.14} parent=0 // pred_region
    _
  $region13: #{bert_forward.14} parent=0 // pred_fallthru
    _
  // Predicated region
  $region14: #{bert_forward.14} parent=0 // pred_check
    _
  $region15: #{bert_forward.14} parent=0 // pred_check_branch
    %18 = sbr.rel (0) target = $region17
  $region16: #{bert_forward.14} parent=0 // pred_region
    _
  $region17: #{bert_forward.14} parent=0 // pred_fallthru
    _
  // Predicated region
  $region18: #{bert_forward.14} parent=0 // pred_check
    _
  $region19: #{bert_forward.14} parent=0 // pred_check_branch
    %20 = sbr.rel (0) target = $region21
  $region20: #{bert_forward.14} parent=0 // pred_region
    _
  $region21: #{bert_forward.14} parent=0 // pred_fallthru
    _
  // Predicated region
  $region22: #{bert_forward.14} parent=0 // pred_check
    _
  $region23: #{bert_forward.14} parent=0 // pred_check_branch
    %22 = sbr.rel (0) target = $region25
  $region24: #{bert_forward.14} parent=0 // pred_region
    _
  $region25: #{bert_forward.14} parent=0 // pred_fallthru
    _
  %p23 = scmp.eq.s32.totalorder 0, 0
  // Predicated region
  $region26: #{bert_forward.14} parent=0 // pred_check
    %p24 = pneg %p23
  $region27: #{bert_forward.14} parent=0 // pred_check_branch
    %26 = sbr.rel (%p24) target = $region29
  $region28: #{bert_forward.14} parent=0 // pred_region
    %27 = vst [vmem:[#allocation2] sm:$0xff] 0.0
    %28 = vst [vmem:[#allocation2 + $0x8] sm:$0xff] 0.0
    %29 = vst [vmem:[#allocation2 + $0x10] sm:$0xff] 0.0
    %30 = vst [vmem:[#allocation2 + $0x18] sm:$0xff] 0.0
  $region29: #{bert_forward.14} parent=0 // pred_fallthru
    _
  %v31 = vld [vmem:[#allocation2] sm:$0xff]
  %v32 = vld [vmem:[#allocation2 + $0x8] sm:$0xff]
  %v33 = vld [vmem:[#allocation2 + $0x10] sm:$0xff]
  %v34 = vld [vmem:[#allocation2 + $0x18] sm:$0xff]
  %v35 = vld [vmem:[%s0] sm:$0xff]
  %v36 = vld [vmem:[%s0 + $0x8] sm:$0xff]
  %v37 = vld [vmem:[%s1] sm:$0xff]
  %v38 = vld [vmem:[%s1 + $0x8] sm:$0xff]
  %v39 = vld [vmem:[%s1 + $0x10] sm:$0xff]
  %v40 = vld [vmem:[%s1 + $0x18] sm:$0xff]
  %v41 = vld [vmem:[%s1 + $0x20] sm:$0xff]
  %v42 = vld [vmem:[%s1 + $0x28] sm:$0xff]
  %v43 = vld [vmem:[%s1 + $0x30] sm:$0xff]
  %v44 = vld [vmem:[%s1 + $0x38] sm:$0xff]
  %v45 = vld [vmem:[%s1 + $0x40] sm:$0xff]
  %v46 = vld [vmem:[%s1 + $0x48] sm:$0xff]
  %v47 = vld [vmem:[%s1 + $0x50] sm:$0xff]
  %v48 = vld [vmem:[%s1 + $0x58] sm:$0xff]
  %v49 = vld [vmem:[%s1 + $0x60] sm:$0xff]
  %v50 = vld [vmem:[%s1 + $0x68] sm:$0xff]
  %v51 = vld [vmem:[%s1 + $0x70] sm:$0xff]
  %v52 = vld [vmem:[%s1 + $0x78] sm:$0xff]
  %v53 = vld [vmem:[%s1 + $0x80] sm:$0xff]
  %v54 = vld [vmem:[%s1 + $0x88] sm:$0xff]
  %v55 = vld [vmem:[%s1 + $0x90] sm:$0xff]
  %v56 = vld [vmem:[%s1 + $0x98] sm:$0xff]
  %v57 = vld [vmem:[%s1 + $0xa0] sm:$0xff]
  %v58 = vld [vmem:[%s1 + $0xa8] sm:$0xff]
  %v59 = vld [vmem:[%s1 + $0xb0] sm:$0xff]
  %v60 = vld [vmem:[%s1 + $0xb8] sm:$0xff]
  %v61 = vld [vmem:[%s1 + $0xc0] sm:$0xff]
  %v62 = vld [vmem:[%s1 + $0xc8] sm:$0xff]
  %v63 = vld [vmem:[%s1 + $0xd0] sm:$0xff]
  %v64 = vld [vmem:[%s1 + $0xd8] sm:$0xff]
  %v65 = vld [vmem:[%s1 + $0xe0] sm:$0xff]
  %v66 = vld [vmem:[%s1 + $0xe8] sm:$0xff]
  %v67 = vld [vmem:[%s1 + $0xf0] sm:$0xff]
  %v68 = vld [vmem:[%s1 + $0xf8] sm:$0xff]
  %v71 = vunpack.c.l.b16 %v35
  %v72 = vunpack.c.h.b16 %v35
  %v73 = vunpack.c.l.b16 %v36
  %v74 = vunpack.c.h.b16 %v36
  %v75 = vpack.c.b16 %v73, %v71
  %v76 = vpack.c.b16 %v74, %v72
  %v111 = vunpack.c.l.b16 %v37
  %v112 = vunpack.c.h.b16 %v37
  %v113 = vunpack.c.l.b16 %v38
  %v114 = vunpack.c.h.b16 %v38
  %v115 = vunpack.c.l.b16 %v39
  %v116 = vunpack.c.h.b16 %v39
  %v117 = vunpack.c.l.b16 %v40
  %v118 = vunpack.c.h.b16 %v40
  %v119 = vunpack.c.l.b16 %v41
  %v120 = vunpack.c.h.b16 %v41
  %v121 = vunpack.c.l.b16 %v42
  %v122 = vunpack.c.h.b16 %v42
  %v123 = vunpack.c.l.b16 %v43
  %v124 = vunpack.c.h.b16 %v43
  %v125 = vunpack.c.l.b16 %v44
  %v126 = vunpack.c.h.b16 %v44
  %v127 = vunpack.c.l.b16 %v45
  %v128 = vunpack.c.h.b16 %v45
  %v129 = vunpack.c.l.b16 %v46
  %v130 = vunpack.c.h.b16 %v46
  %v131 = vunpack.c.l.b16 %v47
  %v132 = vunpack.c.h.b16 %v47
  %v133 = vunpack.c.l.b16 %v48
  %v134 = vunpack.c.h.b16 %v48
  %v135 = vunpack.c.l.b16 %v49
  %v136 = vunpack.c.h.b16 %v49
  %v137 = vunpack.c.l.b16 %v50
  %v138 = vunpack.c.h.b16 %v50
  %v139 = vunpack.c.l.b16 %v51
  %v140 = vunpack.c.h.b16 %v51
  %v141 = vunpack.c.l.b16 %v52
  %v142 = vunpack.c.h.b16 %v52
  %v143 = vunpack.c.l.b16 %v53
  %v144 = vunpack.c.h.b16 %v53
  %v145 = vunpack.c.l.b16 %v54
  %v146 = vunpack.c.h.b16 %v54
  %v147 = vunpack.c.l.b16 %v55
  %v148 = vunpack.c.h.b16 %v55
  %v149 = vunpack.c.l.b16 %v56
  %v150 = vunpack.c.h.b16 %v56
  %v151 = vunpack.c.l.b16 %v57
  %v152 = vunpack.c.h.b16 %v57
  %v153 = vunpack.c.l.b16 %v58
  %v154 = vunpack.c.h.b16 %v58
  %v155 = vunpack.c.l.b16 %v59
  %v156 = vunpack.c.h.b16 %v59
  %v157 = vunpack.c.l.b16 %v60
  %v158 = vunpack.c.h.b16 %v60
  %v159 = vunpack.c.l.b16 %v61
  %v160 = vunpack.c.h.b16 %v61
  %v161 = vunpack.c.l.b16 %v62
  %v162 = vunpack.c.h.b16 %v62
  %v163 = vunpack.c.l.b16 %v63
  %v164 = vunpack.c.h.b16 %v63
  %v165 = vunpack.c.l.b16 %v64
  %v166 = vunpack.c.h.b16 %v64
  %v167 = vunpack.c.l.b16 %v65
  %v168 = vunpack.c.h.b16 %v65
  %v169 = vunpack.c.l.b16 %v66
  %v170 = vunpack.c.h.b16 %v66
  %v171 = vunpack.c.l.b16 %v67
  %v172 = vunpack.c.h.b16 %v67
  %v173 = vunpack.c.l.b16 %v68
  %v174 = vunpack.c.h.b16 %v68
  %v175 = vpack.c.b16 %v113, %v111
  %v176 = vpack.c.b16 %v114, %v112
  %v177 = vpack.c.b16 %v117, %v115
  %v178 = vpack.c.b16 %v118, %v116
  %v179 = vpack.c.b16 %v121, %v119
  %v180 = vpack.c.b16 %v122, %v120
  %v181 = vpack.c.b16 %v125, %v123
  %v182 = vpack.c.b16 %v126, %v124
  %v183 = vpack.c.b16 %v129, %v127
  %v184 = vpack.c.b16 %v130, %v128
  %v185 = vpack.c.b16 %v133, %v131
  %v186 = vpack.c.b16 %v134, %v132
  %v187 = vpack.c.b16 %v137, %v135
  %v188 = vpack.c.b16 %v138, %v136
  %v189 = vpack.c.b16 %v141, %v139
  %v190 = vpack.c.b16 %v142, %v140
  %v191 = vpack.c.b16 %v145, %v143
  %v192 = vpack.c.b16 %v146, %v144
  %v193 = vpack.c.b16 %v149, %v147
  %v194 = vpack.c.b16 %v150, %v148
  %v195 = vpack.c.b16 %v153, %v151
  %v196 = vpack.c.b16 %v154, %v152
  %v197 = vpack.c.b16 %v157, %v155
  %v198 = vpack.c.b16 %v158, %v156
  %v199 = vpack.c.b16 %v161, %v159
  %v200 = vpack.c.b16 %v162, %v160
  %v201 = vpack.c.b16 %v165, %v163
  %v202 = vpack.c.b16 %v166, %v164
  %v203 = vpack.c.b16 %v169, %v167
  %v204 = vpack.c.b16 %v170, %v168
  %v205 = vpack.c.b16 %v173, %v171
  %v206 = vpack.c.b16 %v174, %v172
  %239 = vmatpush.bf16.msra.mxu0 %v189
  %240 = vmatpush.bf16.msra.mxu0 %v187
  %241 = vmatpush.bf16.msra.mxu0 %v185
  %242 = vmatpush.bf16.msra.mxu0 %v183
  %243 = vmatpush.bf16.msra.mxu0 %v181
  %244 = vmatpush.bf16.msra.mxu0 %v179
  %245 = vmatpush.bf16.msra.mxu0 %v177
  %246 = vmatpush.bf16.msra.mxu0 %v175
  %247 = vmatmul.bf16.gmra.mxu0 %v75
  %v248 = vpop.f32.mrf.mxu0
  %v249 = vadd.f32 0.0, %v248
  %v250 = vpop.f32.mrf.mxu0
  %v251 = vadd.f32 0.0, %v250
  %252 = vdwg.mxu0
  %253 = vmatpush.bf16.msra.mxu0 %v205
  %254 = vmatpush.bf16.msra.mxu0 %v203
  %255 = vmatpush.bf16.msra.mxu0 %v201
  %256 = vmatpush.bf16.msra.mxu0 %v199
  %257 = vmatpush.bf16.msra.mxu0 %v197
  %258 = vmatpush.bf16.msra.mxu0 %v195
  %259 = vmatpush.bf16.msra.mxu0 %v193
  %260 = vmatpush.bf16.msra.mxu0 %v191
  %261 = vmatmul.bf16.gmra.mxu0 %v76
  %v262 = vpop.f32.mrf.mxu0
  %v263 = vadd.f32 %v249, %v262
  %v264 = vpop.f32.mrf.mxu0
  %v265 = vadd.f32 %v251, %v264
  %266 = vdwg.mxu0
  %267 = vmatpush.bf16.msra.mxu0 %v190
  %268 = vmatpush.bf16.msra.mxu0 %v188
  %269 = vmatpush.bf16.msra.mxu0 %v186
  %270 = vmatpush.bf16.msra.mxu0 %v184
  %271 = vmatpush.bf16.msra.mxu0 %v182
  %272 = vmatpush.bf16.msra.mxu0 %v180
  %273 = vmatpush.bf16.msra.mxu0 %v178
  %274 = vmatpush.bf16.msra.mxu0 %v176
  %275 = vmatmul.bf16.gmra.mxu0 %v75
  %v276 = vpop.f32.mrf.mxu0
  %v277 = vadd.f32 0.0, %v276
  %v278 = vpop.f32.mrf.mxu0
  %v279 = vadd.f32 0.0, %v278
  %280 = vdwg.mxu0
  %281 = vmatpush.bf16.msra.mxu0 %v206
  %282 = vmatpush.bf16.msra.mxu0 %v204
  %283 = vmatpush.bf16.msra.mxu0 %v202
  %284 = vmatpush.bf16.msra.mxu0 %v200
  %285 = vmatpush.bf16.msra.mxu0 %v198
  %286 = vmatpush.bf16.msra.mxu0 %v196
  %287 = vmatpush.bf16.msra.mxu0 %v194
  %288 = vmatpush.bf16.msra.mxu0 %v192
  %289 = vmatmul.bf16.gmra.mxu0 %v76
  %v290 = vpop.f32.mrf.mxu0
  %v291 = vadd.f32 %v277, %v290
  %v292 = vpop.f32.mrf.mxu0
  %v293 = vadd.f32 %v279, %v292
  %294 = vdwg.mxu0
  %v295 = vadd.f32 %v31, %v263
  %v296 = vadd.f32 %v32, %v291
  %v297 = vadd.f32 %v33, %v265
  %v298 = vadd.f32 %v34, %v293
  %299 = vst [vmem:[#allocation2] sm:$0xff] %v295
  %300 = vst [vmem:[#allocation2 + $0x8] sm:$0xff] %v296
  %301 = vst [vmem:[#allocation2 + $0x10] sm:$0xff] %v297
  %302 = vst [vmem:[#allocation2 + $0x18] sm:$0xff] %v298
  // Predicated region
  $region30: #{bert_forward.14} parent=0 // pred_check
    %p303 = pneg %p23
  $region31: #{bert_forward.14} parent=0 // pred_check_branch
    %305 = sbr.rel (%p303) target = $region33
  $region32: #{bert_forward.14} parent=0 // pred_region
    %v306 = vld [vmem:[#allocation2] sm:$0xff]
    %v307 = vld [vmem:[#allocation2 + $0x8] sm:$0xff]
    %v308 = vld [vmem:[#allocation2 + $0x10] sm:$0xff]
    %v309 = vld [vmem:[#allocation2 + $0x18] sm:$0xff]
    %v310 = vld [vmem:[%s2] sm:$0x3]
    %v312 = vperm.slane %v310, 0
    %v313 = vperm.slane %v310, 1
    %v316 = vadd.f32 %v306, %v312
    %v317 = vadd.f32 %v307, %v313
    %v318 = vadd.f32 %v308, %v312
    %v319 = vadd.f32 %v309, %v313
    %v320 = vld [vmem:[%s3] sm:$0xff]
    %v321 = vld [vmem:[%s3 + $0x8] sm:$0xff]
    %v322 = vunpack.c.l.bf16 %v320
    %v323 = vunpack.c.h.bf16 %v320
    %v324 = vunpack.c.l.bf16 %v321
    %v325 = vunpack.c.h.bf16 %v321
    %v326 = vadd.f32 %v316, %v322
    %v327 = vadd.f32 %v317, %v323
    %v328 = vadd.f32 %v318, %v324
    %v329 = vadd.f32 %v319, %v325
    %v330 = vadd.f32 %v326, %v327
    %331 = vadd.xlane.f32.xlu0 %v330
    %v332 = vpop.xlane.xlu0 %331
    %v333 = vadd.f32 %v328, %v329
    %334 = vadd.xlane.f32.xlu0 %v333
    %v335 = vpop.xlane.xlu0 %334
    %v336 = vrcp.pop 256.0
    %v337 = vmul.f32 256.0, %v336
    %v338 = vsub.f32 1.0, %v337
    %v339 = vmul.f32 %v336, %v338
    %v340 = vadd.f32 %v336, %v339
    %vm341 = vweird.f32 %v336
    %v342 = vsel %vm341, %v336, %v340
    %v343 = vmul.f32 %v332, %v342
    %v344 = vmul.f32 %v335, %v342
    %v345 = vsub.f32 %v326, %v343
    %v346 = vsub.f32 %v327, %v343
    %v347 = vsub.f32 %v328, %v344
    %v348 = vsub.f32 %v329, %v344
    %v349 = vmul.f32 %v345, %v345
    %v350 = vmul.f32 %v346, %v346
    %v351 = vmul.f32 %v347, %v347
    %v352 = vmul.f32 %v348, %v348
    %v353 = vadd.f32 %v349, %v350
    %354 = vadd.xlane.f32.xlu0 %v353
    %v355 = vpop.xlane.xlu0 %354
    %v356 = vadd.f32 %v351, %v352
    %357 = vadd.xlane.f32.xlu0 %v356
    %v358 = vpop.xlane.xlu0 %357
    %v359 = vmul.f32 %v355, %v342
    %v360 = vmul.f32 %v358, %v342
    %v361 = vadd.f32 %v359, 1e-12
    %v362 = vadd.f32 %v360, 1e-12
    %v363 = vrsqrt.pop %v361
    %v364 = vmul.f32 %v363, %v361
    %v365 = vmul.f32 %v364, %v363
    %v366 = vmul.f32 0.5, %v365
    %v367 = vsub.f32 1.5, %v366
    %v368 = vmul.f32 %v363, %v367
    %vm369 = vweird.f32 %v361
    %vm370 = vweird.f32 %v363
    %vm371 = vmor %vm369, %vm370
    %v372 = vsel %vm371, %v363, %v368
    %v373 = vrsqrt.pop %v362
    %v374 = vmul.f32 %v373, %v362
    %v375 = vmul.f32 %v374, %v373
    %v376 = vmul.f32 0.5, %v375
    %v377 = vsub.f32 1.5, %v376
    %v378 = vmul.f32 %v373, %v377
    %vm379 = vweird.f32 %v362
    %vm380 = vweird.f32 %v373
    %vm381 = vmor %vm379, %vm380
    %v382 = vsel %vm381, %v373, %v378
    %v383 = vmul.f32 %v345, %v372
    %v384 = vmul.f32 %v346, %v372
    %v385 = vmul.f32 %v347, %v382
    %v386 = vmul.f32 %v348, %v382
    %v387 = vld [vmem:[%s4] sm:$0x3]
    %v389 = vperm.slane %v387, 0
    %v390 = vperm.slane %v387, 1
    %v393 = vmul.f32 %v383, %v389
    %v394 = vmul.f32 %v384, %v390
    %v395 = vmul.f32 %v385, %v389
    %v396 = vmul.f32 %v386, %v390
    %v397 = vld [vmem:[%s5] sm:$0x3]
    %v399 = vperm.slane %v397, 0
    %v400 = vperm.slane %v397, 1
    %v403 = vadd.f32 %v393, %v399
    %v404 = vadd.f32 %v394, %v400
    %v405 = vadd.f32 %v395, %v399
    %v406 = vadd.f32 %v396, %v400
    %v407 = vpack.c.bf16 %v404, %v403
    %v408 = vpack.c.bf16 %v406, %v405
    %409 = vst [vmem:[%s6] sm:$0xff] %v407
    %410 = vst [vmem:[%s6 + $0x8] sm:$0xff] %v408
  $region33: #{bert_forward.14} parent=0 // pred_fallthru
    _
  // Predicated region
  $region34: #{bert_forward.14} parent=0 // pred_check
    _
  $region35: #{bert_forward.14} parent=0 // pred_check_branch
    %412 = sbr.rel (0) target = $region37
  $region36: #{bert_forward.14} parent=0 // pred_region
    _
  $region37: #{bert_forward.14} parent=0 // pred_fallthru
    _
  // Predicated region
  $region38: #{bert_forward.14} parent=0 // pred_check
    _
  $region39: #{bert_forward.14} parent=0 // pred_check_branch
    %414 = sbr.rel (0) target = $region41
  $region40: #{bert_forward.14} parent=0 // pred_region
    _
  $region41: #{bert_forward.14} parent=0 // pred_fallthru
    _

// kernel: bert_forward.15
$region0: #{bert_forward.15}
  #allocation0 [shape = 'u32[]', space=smem, size = 0x4, offset = 0x4, fixed_abs, tag = 'smem constant byte address 0x4 - core index']
  #allocation1 [shape = 'u32[72,128]{1,0:T(1,128)}', space=vmem, size = 0x9000, scoped, tag = 'internal scratch']
  #allocation2 [shape = 'f32[16,512]{1,0:T(8,128)}', space=vmem, size = 0x8000, scoped, tag = 'scratch operand']
  %s0 = inlined_call_operand.vmem [shape: bf16[16,256], index: 0, kind: input, shape index: {}]
  %s1 = inlined_call_operand.hbm [shape: bf16[256,512], index: 1, kind: input, shape index: {}]
  %s2 = inlined_call_operand.vmem [shape: f32[1,512], index: 2, kind: input, shape index: {}]
  %s3 = inlined_call_operand.vmem [shape: bf16[16,512], index: 3, kind: output, shape index: {}]
  %s4 = sld [smem:[#allocation0]]
  $region34: #{bert_forward.15} parent=0
    _
  %s6 = ssub.s32 1, %s4
  %s7 = scalar_select 0, %s6, %s4
  $region1: #{bert_forward.15} parent=0
    #allocation3 [shape = 'u8[262144]{0}', space=vmem, size = 0x40000, scoped, tag = 'input window, operand 1, single buffered']
    #allocation4 [shape = 's32[1]{0}', space=sflag, size = 0x4, scoped, tag = 'scoped memory for bert_forward.15']
    %8 = vsyncpa [#allocation4], 0
    // Predicated region
    $region2: #{bert_forward.15} parent=1 // pred_check
      _
    $region3: #{bert_forward.15} parent=1 // pred_check_branch
      %10 = sbr.rel (0) target = $region5
    $region4: #{bert_forward.15} parent=1 // pred_region
      _
    $region5: #{bert_forward.15} parent=1 // pred_fallthru
      _
    // Predicated region
    $region6: #{bert_forward.15} parent=1 // pred_check
      _
    $region7: #{bert_forward.15} parent=1 // pred_check_branch
      %12 = sbr.rel (0) target = $region9
    $region8: #{bert_forward.15} parent=1 // pred_region
      %14 = vsyncadd [#allocation4], 0
      %s15 = sshll.u32 %s1, 4
      %s16 = int_to_ptr.hbm [resolvable:$true] %s15
      %s17 = sshll.u32 [#allocation3], 4
      %s18 = int_to_ptr.vmem [resolvable:$true] %s17
      %23 = dma.hbm_to_vmem [thread:$0]  %s16, 8192, %s18, [#allocation4], 256, 256, 16
    $region9: #{bert_forward.15} parent=1 // pred_fallthru
      _
    // Predicated region
    $region10: #{bert_forward.15} parent=1 // pred_check
      _
    $region11: #{bert_forward.15} parent=1 // pred_check_branch
      %25 = sbr.rel (0) target = $region13
    $region12: #{bert_forward.15} parent=1 // pred_region
      _
    $region13: #{bert_forward.15} parent=1 // pred_fallthru
      _
    // Predicated region
    $region14: #{bert_forward.15} parent=1 // pred_check
      _
    $region15: #{bert_forward.15} parent=1 // pred_check_branch
      %27 = sbr.rel (0) target = $region17
    $region16: #{bert_forward.15} parent=1 // pred_region
      %29 = dma.done [#allocation4], 8192
    $region17: #{bert_forward.15} parent=1 // pred_fallthru
      _
    %p30 = scmp.eq.s32.totalorder 0, 0
    // Predicated region
    $region18: #{bert_forward.15} parent=1 // pred_check
      %p31 = pneg %p30
    $region19: #{bert_forward.15} parent=1 // pred_check_branch
      %33 = sbr.rel (%p31) target = $region21
    $region20: #{bert_forward.15} parent=1 // pred_region
      %34 = vst [vmem:[#allocation2] sm:$0xff] 0.0
      %35 = vst [vmem:[#allocation2 + $0x8] sm:$0xff] 0.0
      %36 = vst [vmem:[#allocation2 + $0x10] sm:$0xff] 0.0
      %37 = vst [vmem:[#allocation2 + $0x18] sm:$0xff] 0.0
      %38 = vst [vmem:[#allocation2 + $0x20] sm:$0xff] 0.0
      %39 = vst [vmem:[#allocation2 + $0x28] sm:$0xff] 0.0
      %40 = vst [vmem:[#allocation2 + $0x30] sm:$0xff] 0.0
      %41 = vst [vmem:[#allocation2 + $0x38] sm:$0xff] 0.0
    $region21: #{bert_forward.15} parent=1 // pred_fallthru
      _
    %v42 = vld [vmem:[#allocation2] sm:$0xff]
    %v43 = vld [vmem:[#allocation2 + $0x8] sm:$0xff]
    %v44 = vld [vmem:[#allocation2 + $0x10] sm:$0xff]
    %v45 = vld [vmem:[#allocation2 + $0x18] sm:$0xff]
    %v46 = vld [vmem:[#allocation2 + $0x20] sm:$0xff]
    %v47 = vld [vmem:[#allocation2 + $0x28] sm:$0xff]
    %v48 = vld [vmem:[#allocation2 + $0x30] sm:$0xff]
    %v49 = vld [vmem:[#allocation2 + $0x38] sm:$0xff]
    %v50 = vld [vmem:[%s0] sm:$0xff]
    %v51 = vld [vmem:[%s0 + $0x8] sm:$0xff]
    %v52 = vld [vmem:[#allocation3] sm:$0xff]
    %v53 = vld [vmem:[#allocation3 + $0x8] sm:$0xff]
    %v54 = vld [vmem:[#allocation3 + $0x10] sm:$0xff]
    %v55 = vld [vmem:[#allocation3 + $0x18] sm:$0xff]
    %v56 = vld [vmem:[#allocation3 + $0x20] sm:$0xff]
    %v57 = vld [vmem:[#allocation3 + $0x28] sm:$0xff]
    %v58 = vld [vmem:[#allocation3 + $0x30] sm:$0xff]
    %v59 = vld [vmem:[#allocation3 + $0x38] sm:$0xff]
    %v60 = vld [vmem:[#allocation3 + $0x40] sm:$0xff]
    %v61 = vld [vmem:[#allocation3 + $0x48] sm:$0xff]
    %v62 = vld [vmem:[#allocation3 + $0x50] sm:$0xff]
    %v63 = vld [vmem:[#allocation3 + $0x58] sm:$0xff]
    %v64 = vld [vmem:[#allocation3 + $0x60] sm:$0xff]
    %v65 = vld [vmem:[#allocation3 + $0x68] sm:$0xff]
    %v66 = vld [vmem:[#allocation3 + $0x70] sm:$0xff]
    %v67 = vld [vmem:[#allocation3 + $0x78] sm:$0xff]
    %v68 = vld [vmem:[#allocation3 + $0x80] sm:$0xff]
    %v69 = vld [vmem:[#allocation3 + $0x88] sm:$0xff]
    %v70 = vld [vmem:[#allocation3 + $0x90] sm:$0xff]
    %v71 = vld [vmem:[#allocation3 + $0x98] sm:$0xff]
    %v72 = vld [vmem:[#allocation3 + $0xa0] sm:$0xff]
    %v73 = vld [vmem:[#allocation3 + $0xa8] sm:$0xff]
    %v74 = vld [vmem:[#allocation3 + $0xb0] sm:$0xff]
    %v75 = vld [vmem:[#allocation3 + $0xb8] sm:$0xff]
    %v76 = vld [vmem:[#allocation3 + $0xc0] sm:$0xff]
    %v77 = vld [vmem:[#allocation3 + $0xc8] sm:$0xff]
    %v78 = vld [vmem:[#allocation3 + $0xd0] sm:$0xff]
    %v79 = vld [vmem:[#allocation3 + $0xd8] sm:$0xff]
    %v80 = vld [vmem:[#allocation3 + $0xe0] sm:$0xff]
    %v81 = vld [vmem:[#allocation3 + $0xe8] sm:$0xff]
    %v82 = vld [vmem:[#allocation3 + $0xf0] sm:$0xff]
    %v83 = vld [vmem:[#allocation3 + $0xf8] sm:$0xff]
    %v84 = vld [vmem:[#allocation3 + $0x100] sm:$0xff]
    %v85 = vld [vmem:[#allocation3 + $0x108] sm:$0xff]
    %v86 = vld [vmem:[#allocation3 + $0x110] sm:$0xff]
    %v87 = vld [vmem:[#allocation3 + $0x118] sm:$0xff]
    %v88 = vld [vmem:[#allocation3 + $0x120] sm:$0xff]
    %v89 = vld [vmem:[#allocation3 + $0x128] sm:$0xff]
    %v90 = vld [vmem:[#allocation3 + $0x130] sm:$0xff]
    %v91 = vld [vmem:[#allocation3 + $0x138] sm:$0xff]
    %v92 = vld [vmem:[#allocation3 + $0x140] sm:$0xff]
    %v93 = vld [vmem:[#allocation3 + $0x148] sm:$0xff]
    %v94 = vld [vmem:[#allocation3 + $0x150] sm:$0xff]
    %v95 = vld [vmem:[#allocation3 + $0x158] sm:$0xff]
    %v96 = vld [vmem:[#allocation3 + $0x160] sm:$0xff]
    %v97 = vld [vmem:[#allocation3 + $0x168] sm:$0xff]
    %v98 = vld [vmem:[#allocation3 + $0x170] sm:$0xff]
    %v99 = vld [vmem:[#allocation3 + $0x178] sm:$0xff]
    %v100 = vld [vmem:[#allocation3 + $0x180] sm:$0xff]
    %v101 = vld [vmem:[#allocation3 + $0x188] sm:$0xff]
    %v102 = vld [vmem:[#allocation3 + $0x190] sm:$0xff]
    %v103 = vld [vmem:[#allocation3 + $0x198] sm:$0xff]
    %v104 = vld [vmem:[#allocation3 + $0x1a0] sm:$0xff]
    %v105 = vld [vmem:[#allocation3 + $0x1a8] sm:$0xff]
    %v106 = vld [vmem:[#allocation3 + $0x1b0] sm:$0xff]
    %v107 = vld [vmem:[#allocation3 + $0x1b8] sm:$0xff]
    %v108 = vld [vmem:[#allocation3 + $0x1c0] sm:$0xff]
    %v109 = vld [vmem:[#allocation3 + $0x1c8] sm:$0xff]
    %v110 = vld [vmem:[#allocation3 + $0x1d0] sm:$0xff]
    %v111 = vld [vmem:[#allocation3 + $0x1d8] sm:$0xff]
    %v112 = vld [vmem:[#allocation3 + $0x1e0] sm:$0xff]
    %v113 = vld [vmem:[#allocation3 + $0x1e8] sm:$0xff]
    %v114 = vld [vmem:[#allocation3 + $0x1f0] sm:$0xff]
    %v115 = vld [vmem:[#allocation3 + $0x1f8] sm:$0xff]
    %v118 = vunpack.c.l.b16 %v50
    %v119 = vunpack.c.h.b16 %v50
    %v120 = vunpack.c.l.b16 %v51
    %v121 = vunpack.c.h.b16 %v51
    %v122 = vpack.c.b16 %v120, %v118
    %v123 = vpack.c.b16 %v121, %v119
    %v190 = vunpack.c.l.b16 %v52
    %v191 = vunpack.c.h.b16 %v52
    %v192 = vunpack.c.l.b16 %v53
    %v193 = vunpack.c.h.b16 %v53
    %v194 = vunpack.c.l.b16 %v54
    %v195 = vunpack.c.h.b16 %v54
    %v196 = vunpack.c.l.b16 %v55
    %v197 = vunpack.c.h.b16 %v55
    %v198 = vunpack.c.l.b16 %v56
    %v199 = vunpack.c.h.b16 %v56
    %v200 = vunpack.c.l.b16 %v57
    %v201 = vunpack.c.h.b16 %v57
    %v202 = vunpack.c.l.b16 %v58
    %v203 = vunpack.c.h.b16 %v58
    %v204 = vunpack.c.l.b16 %v59
    %v205 = vunpack.c.h.b16 %v59
    %v206 = vunpack.c.l.b16 %v60
    %v207 = vunpack.c.h.b16 %v60
    %v208 = vunpack.c.l.b16 %v61
    %v209 = vunpack.c.h.b16 %v61
    %v210 = vunpack.c.l.b16 %v62
    %v211 = vunpack.c.h.b16 %v62
    %v212 = vunpack.c.l.b16 %v63
    %v213 = vunpack.c.h.b16 %v63
    %v214 = vunpack.c.l.b16 %v64
    %v215 = vunpack.c.h.b16 %v64
    %v216 = vunpack.c.l.b16 %v65
    %v217 = vunpack.c.h.b16 %v65
    %v218 = vunpack.c.l.b16 %v66
    %v219 = vunpack.c.h.b16 %v66
    %v220 = vunpack.c.l.b16 %v67
    %v221 = vunpack.c.h.b16 %v67
    %v222 = vunpack.c.l.b16 %v68
    %v223 = vunpack.c.h.b16 %v68
    %v224 = vunpack.c.l.b16 %v69
    %v225 = vunpack.c.h.b16 %v69
    %v226 = vunpack.c.l.b16 %v70
    %v227 = vunpack.c.h.b16 %v70
    %v228 = vunpack.c.l.b16 %v71
    %v229 = vunpack.c.h.b16 %v71
    %v230 = vunpack.c.l.b16 %v72
    %v231 = vunpack.c.h.b16 %v72
    %v232 = vunpack.c.l.b16 %v73
    %v233 = vunpack.c.h.b16 %v73
    %v234 = vunpack.c.l.b16 %v74
    %v235 = vunpack.c.h.b16 %v74
    %v236 = vunpack.c.l.b16 %v75
    %v237 = vunpack.c.h.b16 %v75
    %v238 = vunpack.c.l.b16 %v76
    %v239 = vunpack.c.h.b16 %v76
    %v240 = vunpack.c.l.b16 %v77
    %v241 = vunpack.c.h.b16 %v77
    %v242 = vunpack.c.l.b16 %v78
    %v243 = vunpack.c.h.b16 %v78
    %v244 = vunpack.c.l.b16 %v79
    %v245 = vunpack.c.h.b16 %v79
    %v246 = vunpack.c.l.b16 %v80
    %v247 = vunpack.c.h.b16 %v80
    %v248 = vunpack.c.l.b16 %v81
    %v249 = vunpack.c.h.b16 %v81
    %v250 = vunpack.c.l.b16 %v82
    %v251 = vunpack.c.h.b16 %v82
    %v252 = vunpack.c.l.b16 %v83
    %v253 = vunpack.c.h.b16 %v83
    %v254 = vunpack.c.l.b16 %v84
    %v255 = vunpack.c.h.b16 %v84
    %v256 = vunpack.c.l.b16 %v85
    %v257 = vunpack.c.h.b16 %v85
    %v258 = vunpack.c.l.b16 %v86
    %v259 = vunpack.c.h.b16 %v86
    %v260 = vunpack.c.l.b16 %v87
    %v261 = vunpack.c.h.b16 %v87
    %v262 = vunpack.c.l.b16 %v88
    %v263 = vunpack.c.h.b16 %v88
    %v264 = vunpack.c.l.b16 %v89
    %v265 = vunpack.c.h.b16 %v89
    %v266 = vunpack.c.l.b16 %v90
    %v267 = vunpack.c.h.b16 %v90
    %v268 = vunpack.c.l.b16 %v91
    %v269 = vunpack.c.h.b16 %v91
    %v270 = vunpack.c.l.b16 %v92
    %v271 = vunpack.c.h.b16 %v92
    %v272 = vunpack.c.l.b16 %v93
    %v273 = vunpack.c.h.b16 %v93
    %v274 = vunpack.c.l.b16 %v94
    %v275 = vunpack.c.h.b16 %v94
    %v276 = vunpack.c.l.b16 %v95
    %v277 = vunpack.c.h.b16 %v95
    %v278 = vunpack.c.l.b16 %v96
    %v279 = vunpack.c.h.b16 %v96
    %v280 = vunpack.c.l.b16 %v97
    %v281 = vunpack.c.h.b16 %v97
    %v282 = vunpack.c.l.b16 %v98
    %v283 = vunpack.c.h.b16 %v98
    %v284 = vunpack.c.l.b16 %v99
    %v285 = vunpack.c.h.b16 %v99
    %v286 = vunpack.c.l.b16 %v100
    %v287 = vunpack.c.h.b16 %v100
    %v288 = vunpack.c.l.b16 %v101
    %v289 = vunpack.c.h.b16 %v101
    %v290 = vunpack.c.l.b16 %v102
    %v291 = vunpack.c.h.b16 %v102
    %v292 = vunpack.c.l.b16 %v103
    %v293 = vunpack.c.h.b16 %v103
    %v294 = vunpack.c.l.b16 %v104
    %v295 = vunpack.c.h.b16 %v104
    %v296 = vunpack.c.l.b16 %v105
    %v297 = vunpack.c.h.b16 %v105
    %v298 = vunpack.c.l.b16 %v106
    %v299 = vunpack.c.h.b16 %v106
    %v300 = vunpack.c.l.b16 %v107
    %v301 = vunpack.c.h.b16 %v107
    %v302 = vunpack.c.l.b16 %v108
    %v303 = vunpack.c.h.b16 %v108
    %v304 = vunpack.c.l.b16 %v109
    %v305 = vunpack.c.h.b16 %v109
    %v306 = vunpack.c.l.b16 %v110
    %v307 = vunpack.c.h.b16 %v110
    %v308 = vunpack.c.l.b16 %v111
    %v309 = vunpack.c.h.b16 %v111
    %v310 = vunpack.c.l.b16 %v112
    %v311 = vunpack.c.h.b16 %v112
    %v312 = vunpack.c.l.b16 %v113
    %v313 = vunpack.c.h.b16 %v113
    %v314 = vunpack.c.l.b16 %v114
    %v315 = vunpack.c.h.b16 %v114
    %v316 = vunpack.c.l.b16 %v115
    %v317 = vunpack.c.h.b16 %v115
    %v318 = vpack.c.b16 %v194, %v190
    %v319 = vpack.c.b16 %v195, %v191
    %v320 = vpack.c.b16 %v196, %v192
    %v321 = vpack.c.b16 %v197, %v193
    %v322 = vpack.c.b16 %v202, %v198
    %v323 = vpack.c.b16 %v203, %v199
    %v324 = vpack.c.b16 %v204, %v200
    %v325 = vpack.c.b16 %v205, %v201
    %v326 = vpack.c.b16 %v210, %v206
    %v327 = vpack.c.b16 %v211, %v207
    %v328 = vpack.c.b16 %v212, %v208
    %v329 = vpack.c.b16 %v213, %v209
    %v330 = vpack.c.b16 %v218, %v214
    %v331 = vpack.c.b16 %v219, %v215
    %v332 = vpack.c.b16 %v220, %v216
    %v333 = vpack.c.b16 %v221, %v217
    %v334 = vpack.c.b16 %v226, %v222
    %v335 = vpack.c.b16 %v227, %v223
    %v336 = vpack.c.b16 %v228, %v224
    %v337 = vpack.c.b16 %v229, %v225
    %v338 = vpack.c.b16 %v234, %v230
    %v339 = vpack.c.b16 %v235, %v231
    %v340 = vpack.c.b16 %v236, %v232
    %v341 = vpack.c.b16 %v237, %v233
    %v342 = vpack.c.b16 %v242, %v238
    %v343 = vpack.c.b16 %v243, %v239
    %v344 = vpack.c.b16 %v244, %v240
    %v345 = vpack.c.b16 %v245, %v241
    %v346 = vpack.c.b16 %v250, %v246
    %v347 = vpack.c.b16 %v251, %v247
    %v348 = vpack.c.b16 %v252, %v248
    %v349 = vpack.c.b16 %v253, %v249
    %v350 = vpack.c.b16 %v258, %v254
    %v351 = vpack.c.b16 %v259, %v255
    %v352 = vpack.c.b16 %v260, %v256
    %v353 = vpack.c.b16 %v261, %v257
    %v354 = vpack.c.b16 %v266, %v262
    %v355 = vpack.c.b16 %v267, %v263
    %v356 = vpack.c.b16 %v268, %v264
    %v357 = vpack.c.b16 %v269, %v265
    %v358 = vpack.c.b16 %v274, %v270
    %v359 = vpack.c.b16 %v275, %v271
    %v360 = vpack.c.b16 %v276, %v272
    %v361 = vpack.c.b16 %v277, %v273
    %v362 = vpack.c.b16 %v282, %v278
    %v363 = vpack.c.b16 %v283, %v279
    %v364 = vpack.c.b16 %v284, %v280
    %v365 = vpack.c.b16 %v285, %v281
    %v366 = vpack.c.b16 %v290, %v286
    %v367 = vpack.c.b16 %v291, %v287
    %v368 = vpack.c.b16 %v292, %v288
    %v369 = vpack.c.b16 %v293, %v289
    %v370 = vpack.c.b16 %v298, %v294
    %v371 = vpack.c.b16 %v299, %v295
    %v372 = vpack.c.b16 %v300, %v296
    %v373 = vpack.c.b16 %v301, %v297
    %v374 = vpack.c.b16 %v306, %v302
    %v375 = vpack.c.b16 %v307, %v303
    %v376 = vpack.c.b16 %v308, %v304
    %v377 = vpack.c.b16 %v309, %v305
    %v378 = vpack.c.b16 %v314, %v310
    %v379 = vpack.c.b16 %v315, %v311
    %v380 = vpack.c.b16 %v316, %v312
    %v381 = vpack.c.b16 %v317, %v313
    %446 = vmatpush.bf16.msra.mxu0 %v346
    %447 = vmatpush.bf16.msra.mxu0 %v342
    %448 = vmatpush.bf16.msra.mxu0 %v338
    %449 = vmatpush.bf16.msra.mxu0 %v334
    %450 = vmatpush.bf16.msra.mxu0 %v330
    %451 = vmatpush.bf16.msra.mxu0 %v326
    %452 = vmatpush.bf16.msra.mxu0 %v322
    %453 = vmatpush.bf16.msra.mxu0 %v318
    %454 = vmatmul.bf16.gmra.mxu0 %v122
    %v455 = vpop.f32.mrf.mxu0
    %v456 = vadd.f32 0.0, %v455
    %v457 = vpop.f32.mrf.mxu0
    %v458 = vadd.f32 0.0, %v457
    %459 = vdwg.mxu0
    %460 = vmatpush.bf16.msra.mxu0 %v378
    %461 = vmatpush.bf16.msra.mxu0 %v374
    %462 = vmatpush.bf16.msra.mxu0 %v370
    %463 = vmatpush.bf16.msra.mxu0 %v366
    %464 = vmatpush.bf16.msra.mxu0 %v362
    %465 = vmatpush.bf16.msra.mxu0 %v358
    %466 = vmatpush.bf16.msra.mxu0 %v354
    %467 = vmatpush.bf16.msra.mxu0 %v350
    %468 = vmatmul.bf16.gmra.mxu0 %v123
    %v469 = vpop.f32.mrf.mxu0
    %v470 = vadd.f32 %v456, %v469
    %v471 = vpop.f32.mrf.mxu0
    %v472 = vadd.f32 %v458, %v471
    %473 = vdwg.mxu0
    %474 = vmatpush.bf16.msra.mxu0 %v347
    %475 = vmatpush.bf16.msra.mxu0 %v343
    %476 = vmatpush.bf16.msra.mxu0 %v339
    %477 = vmatpush.bf16.msra.mxu0 %v335
    %478 = vmatpush.bf16.msra.mxu0 %v331
    %479 = vmatpush.bf16.msra.mxu0 %v327
    %480 = vmatpush.bf16.msra.mxu0 %v323
    %481 = vmatpush.bf16.msra.mxu0 %v319
    %482 = vmatmul.bf16.gmra.mxu0 %v122
    %v483 = vpop.f32.mrf.mxu0
    %v484 = vadd.f32 0.0, %v483
    %v485 = vpop.f32.mrf.mxu0
    %v486 = vadd.f32 0.0, %v485
    %487 = vdwg.mxu0
    %488 = vmatpush.bf16.msra.mxu0 %v379
    %489 = vmatpush.bf16.msra.mxu0 %v375
    %490 = vmatpush.bf16.msra.mxu0 %v371
    %491 = vmatpush.bf16.msra.mxu0 %v367
    %492 = vmatpush.bf16.msra.mxu0 %v363
    %493 = vmatpush.bf16.msra.mxu0 %v359
    %494 = vmatpush.bf16.msra.mxu0 %v355
    %495 = vmatpush.bf16.msra.mxu0 %v351
    %496 = vmatmul.bf16.gmra.mxu0 %v123
    %v497 = vpop.f32.mrf.mxu0
    %v498 = vadd.f32 %v484, %v497
    %v499 = vpop.f32.mrf.mxu0
    %v500 = vadd.f32 %v486, %v499
    %501 = vdwg.mxu0
    %502 = vmatpush.bf16.msra.mxu0 %v348
    %503 = vmatpush.bf16.msra.mxu0 %v344
    %504 = vmatpush.bf16.msra.mxu0 %v340
    %505 = vmatpush.bf16.msra.mxu0 %v336
    %506 = vmatpush.bf16.msra.mxu0 %v332
    %507 = vmatpush.bf16.msra.mxu0 %v328
    %508 = vmatpush.bf16.msra.mxu0 %v324
    %509 = vmatpush.bf16.msra.mxu0 %v320
    %510 = vmatmul.bf16.gmra.mxu0 %v122
    %v511 = vpop.f32.mrf.mxu0
    %v512 = vadd.f32 0.0, %v511
    %v513 = vpop.f32.mrf.mxu0
    %v514 = vadd.f32 0.0, %v513
    %515 = vdwg.mxu0
    %516 = vmatpush.bf16.msra.mxu0 %v380
    %517 = vmatpush.bf16.msra.mxu0 %v376
    %518 = vmatpush.bf16.msra.mxu0 %v372
    %519 = vmatpush.bf16.msra.mxu0 %v368
    %520 = vmatpush.bf16.msra.mxu0 %v364
    %521 = vmatpush.bf16.msra.mxu0 %v360
    %522 = vmatpush.bf16.msra.mxu0 %v356
    %523 = vmatpush.bf16.msra.mxu0 %v352
    %524 = vmatmul.bf16.gmra.mxu0 %v123
    %v525 = vpop.f32.mrf.mxu0
    %v526 = vadd.f32 %v512, %v525
    %v527 = vpop.f32.mrf.mxu0
    %v528 = vadd.f32 %v514, %v527
    %529 = vdwg.mxu0
    %530 = vmatpush.bf16.msra.mxu0 %v349
    %531 = vmatpush.bf16.msra.mxu0 %v345
    %532 = vmatpush.bf16.msra.mxu0 %v341
    %533 = vmatpush.bf16.msra.mxu0 %v337
    %534 = vmatpush.bf16.msra.mxu0 %v333
    %535 = vmatpush.bf16.msra.mxu0 %v329
    %536 = vmatpush.bf16.msra.mxu0 %v325
    %537 = vmatpush.bf16.msra.mxu0 %v321
    %538 = vmatmul.bf16.gmra.mxu0 %v122
    %v539 = vpop.f32.mrf.mxu0
    %v540 = vadd.f32 0.0, %v539
    %v541 = vpop.f32.mrf.mxu0
    %v542 = vadd.f32 0.0, %v541
    %543 = vdwg.mxu0
    %544 = vmatpush.bf16.msra.mxu0 %v381
    %545 = vmatpush.bf16.msra.mxu0 %v377
    %546 = vmatpush.bf16.msra.mxu0 %v373
    %547 = vmatpush.bf16.msra.mxu0 %v369
    %548 = vmatpush.bf16.msra.mxu0 %v365
    %549 = vmatpush.bf16.msra.mxu0 %v361
    %550 = vmatpush.bf16.msra.mxu0 %v357
    %551 = vmatpush.bf16.msra.mxu0 %v353
    %552 = vmatmul.bf16.gmra.mxu0 %v123
    %v553 = vpop.f32.mrf.mxu0
    %v554 = vadd.f32 %v540, %v553
    %v555 = vpop.f32.mrf.mxu0
    %v556 = vadd.f32 %v542, %v555
    %557 = vdwg.mxu0
    %v558 = vadd.f32 %v42, %v470
    %v559 = vadd.f32 %v43, %v498
    %v560 = vadd.f32 %v44, %v526
    %v561 = vadd.f32 %v45, %v554
    %v562 = vadd.f32 %v46, %v472
    %v563 = vadd.f32 %v47, %v500
    %v564 = vadd.f32 %v48, %v528
    %v565 = vadd.f32 %v49, %v556
    %566 = vst [vmem:[#allocation2] sm:$0xff] %v558
    %567 = vst [vmem:[#allocation2 + $0x8] sm:$0xff] %v559
    %568 = vst [vmem:[#allocation2 + $0x10] sm:$0xff] %v560
    %569 = vst [vmem:[#allocation2 + $0x18] sm:$0xff] %v561
    %570 = vst [vmem:[#allocation2 + $0x20] sm:$0xff] %v562
    %571 = vst [vmem:[#allocation2 + $0x28] sm:$0xff] %v563
    %572 = vst [vmem:[#allocation2 + $0x30] sm:$0xff] %v564
    %573 = vst [vmem:[#allocation2 + $0x38] sm:$0xff] %v565
    // Predicated region
    $region22: #{bert_forward.15} parent=1 // pred_check
      %p574 = pneg %p30
    $region23: #{bert_forward.15} parent=1 // pred_check_branch
      %576 = sbr.rel (%p574) target = $region25
    $region24: #{bert_forward.15} parent=1 // pred_region
      %v577 = vld [vmem:[#allocation2] sm:$0xff]
      %v578 = vld [vmem:[#allocation2 + $0x8] sm:$0xff]
      %v579 = vld [vmem:[#allocation2 + $0x10] sm:$0xff]
      %v580 = vld [vmem:[#allocation2 + $0x18] sm:$0xff]
      %v581 = vld [vmem:[#allocation2 + $0x20] sm:$0xff]
      %v582 = vld [vmem:[#allocation2 + $0x28] sm:$0xff]
      %v583 = vld [vmem:[#allocation2 + $0x30] sm:$0xff]
      %v584 = vld [vmem:[#allocation2 + $0x38] sm:$0xff]
      %v585 = vld [vmem:[%s2] sm:$0xf]
      %v587 = vperm.slane %v585, 0
      %v588 = vperm.slane %v585, 1
      %v589 = vperm.slane %v585, 2
      %v590 = vperm.slane %v585, 3
      %v595 = vadd.f32 %v577, %v587
      %v596 = vadd.f32 %v578, %v588
      %v597 = vadd.f32 %v579, %v589
      %v598 = vadd.f32 %v580, %v590
      %v599 = vadd.f32 %v581, %v587
      %v600 = vadd.f32 %v582, %v588
      %v601 = vadd.f32 %v583, %v589
      %v602 = vadd.f32 %v584, %v590
      %v603 = vmul.f32 %v595, 0.5
      %v604 = vmul.f32 %v596, 0.5
      %v605 = vmul.f32 %v597, 0.5
      %v606 = vmul.f32 %v598, 0.5
      %v607 = vmul.f32 %v599, 0.5
      %v608 = vmul.f32 %v600, 0.5
      %v609 = vmul.f32 %v601, 0.5
      %v610 = vmul.f32 %v602, 0.5
      %v611 = vmul.f32 %v595, 0.70710677
      %v612 = vmul.f32 %v596, 0.70710677
      %v613 = vmul.f32 %v597, 0.70710677
      %v614 = vmul.f32 %v598, 0.70710677
      %v615 = vmul.f32 %v599, 0.70710677
      %v616 = vmul.f32 %v600, 0.70710677
      %v617 = vmul.f32 %v601, 0.70710677
      %v618 = vmul.f32 %v602, 0.70710677
      %v619 = vand.u32 2147483647, %v611
      %v620 = vand.u32 2147483647, %v612
      %v621 = vand.u32 2147483647, %v613
      %v622 = vand.u32 2147483647, %v614
      %v623 = vand.u32 2147483647, %v615
      %v624 = vand.u32 2147483647, %v616
      %v625 = vand.u32 2147483647, %v617
      %v626 = vand.u32 2147483647, %v618
      %v627 = vmul.f32 %v619, 0.3275911
      %v628 = vmul.f32 %v620, 0.3275911
      %v629 = vmul.f32 %v621, 0.3275911
      %v630 = vmul.f32 %v622, 0.3275911
      %v631 = vmul.f32 %v623, 0.3275911
      %v632 = vmul.f32 %v624, 0.3275911
      %v633 = vmul.f32 %v625, 0.3275911
      %v634 = vmul.f32 %v626, 0.3275911
      %v635 = vadd.f32 %v627, 1.0
      %v636 = vadd.f32 %v628, 1.0
      %v637 = vadd.f32 %v629, 1.0
      %v638 = vadd.f32 %v630, 1.0
      %v639 = vadd.f32 %v631, 1.0
      %v640 = vadd.f32 %v632, 1.0
      %v641 = vadd.f32 %v633, 1.0
      %v642 = vadd.f32 %v634, 1.0
      %v643 = vrcp.pop %v635
      %v644 = vrcp.pop %v636
      %v645 = vrcp.pop %v637
      %v646 = vrcp.pop %v638
      %v647 = vrcp.pop %v639
      %v648 = vrcp.pop %v640
      %v649 = vrcp.pop %v641
      %v650 = vrcp.pop %v642
      %v651 = vmul.f32 %v643, 1.0614054
      %v652 = vmul.f32 %v644, 1.0614054
      %v653 = vmul.f32 %v645, 1.0614054
      %v654 = vmul.f32 %v646, 1.0614054
      %v655 = vmul.f32 %v647, 1.0614054
      %v656 = vmul.f32 %v648, 1.0614054
      %v657 = vmul.f32 %v649, 1.0614054
      %v658 = vmul.f32 %v650, 1.0614054
      %v659 = vadd.f32 %v651, -1.4531521
      %v660 = vadd.f32 %v652, -1.4531521
      %v661 = vadd.f32 %v653, -1.4531521
      %v662 = vadd.f32 %v654, -1.4531521
      %v663 = vadd.f32 %v655, -1.4531521
      %v664 = vadd.f32 %v656, -1.4531521
      %v665 = vadd.f32 %v657, -1.4531521
      %v666 = vadd.f32 %v658, -1.4531521
      %v667 = vmul.f32 %v659, %v643
      %v668 = vmul.f32 %v660, %v644
      %v669 = vmul.f32 %v661, %v645
      %v670 = vmul.f32 %v662, %v646
      %v671 = vmul.f32 %v663, %v647
      %v672 = vmul.f32 %v664, %v648
      %v673 = vmul.f32 %v665, %v649
      %v674 = vmul.f32 %v666, %v650
      %v675 = vadd.f32 %v667, 1.4214138
      %v676 = vadd.f32 %v668, 1.4214138
      %v677 = vadd.f32 %v669, 1.4214138
      %v678 = vadd.f32 %v670, 1.4214138
      %v679 = vadd.f32 %v671, 1.4214138
      %v680 = vadd.f32 %v672, 1.4214138
      %v681 = vadd.f32 %v673, 1.4214138
      %v682 = vadd.f32 %v674, 1.4214138
      %v683 = vmul.f32 %v675, %v643
      %v684 = vmul.f32 %v676, %v644
      %v685 = vmul.f32 %v677, %v645
      %v686 = vmul.f32 %v678, %v646
      %v687 = vmul.f32 %v679, %v647
      %v688 = vmul.f32 %v680, %v648
      %v689 = vmul.f32 %v681, %v649
      %v690 = vmul.f32 %v682, %v650
      %v691 = vadd.f32 %v683, -0.28449672
      %v692 = vadd.f32 %v684, -0.28449672
      %v693 = vadd.f32 %v685, -0.28449672
      %v694 = vadd.f32 %v686, -0.28449672
      %v695 = vadd.f32 %v687, -0.28449672
      %v696 = vadd.f32 %v688, -0.28449672
      %v697 = vadd.f32 %v689, -0.28449672
      %v698 = vadd.f32 %v690, -0.28449672
      %v699 = vmul.f32 %v691, %v643
      %v700 = vmul.f32 %v692, %v644
      %v701 = vmul.f32 %v693, %v645
      %v702 = vmul.f32 %v694, %v646
      %v703 = vmul.f32 %v695, %v647
      %v704 = vmul.f32 %v696, %v648
      %v705 = vmul.f32 %v697, %v649
      %v706 = vmul.f32 %v698, %v650
      %v707 = vadd.f32 %v699, 0.2548296
      %v708 = vadd.f32 %v700, 0.2548296
      %v709 = vadd.f32 %v701, 0.2548296
      %v710 = vadd.f32 %v702, 0.2548296
      %v711 = vadd.f32 %v703, 0.2548296
      %v712 = vadd.f32 %v704, 0.2548296
      %v713 = vadd.f32 %v705, 0.2548296
      %v714 = vadd.f32 %v706, 0.2548296
      %v715 = vmul.f32 %v707, %v643
      %v716 = vmul.f32 %v708, %v644
      %v717 = vmul.f32 %v709, %v645
      %v718 = vmul.f32 %v710, %v646
      %v719 = vmul.f32 %v711, %v647
      %v720 = vmul.f32 %v712, %v648
      %v721 = vmul.f32 %v713, %v649
      %v722 = vmul.f32 %v714, %v650
      %v723 = vsub.f32 0.0, %v619
      %v724 = vsub.f32 0.0, %v620
      %v725 = vsub.f32 0.0, %v621
      %v726 = vsub.f32 0.0, %v622
      %v727 = vsub.f32 0.0, %v623
      %v728 = vsub.f32 0.0, %v624
      %v729 = vsub.f32 0.0, %v625
      %v730 = vsub.f32 0.0, %v626
      %v731 = vmul.f32 %v723, %v619
      %v732 = vmul.f32 %v724, %v620
      %v733 = vmul.f32 %v725, %v621
      %v734 = vmul.f32 %v726, %v622
      %v735 = vmul.f32 %v727, %v623
      %v736 = vmul.f32 %v728, %v624
      %v737 = vmul.f32 %v729, %v625
      %v738 = vmul.f32 %v730, %v626
      %v739 = vmul.f32 %v731, 1.442695
      %v740 = vpow.pop %v739
      %v741 = vmul.f32 %v732, 1.442695
      %v742 = vpow.pop %v741
      %v743 = vmul.f32 %v733, 1.442695
      %v744 = vpow.pop %v743
      %v745 = vmul.f32 %v734, 1.442695
      %v746 = vpow.pop %v745
      %v747 = vmul.f32 %v735, 1.442695
      %v748 = vpow.pop %v747
      %v749 = vmul.f32 %v736, 1.442695
      %v750 = vpow.pop %v749
      %v751 = vmul.f32 %v737, 1.442695
      %v752 = vpow.pop %v751
      %v753 = vmul.f32 %v738, 1.442695
      %v754 = vpow.pop %v753
      %v755 = vmul.f32 %v715, %v740
      %v756 = vmul.f32 %v716, %v742
      %v757 = vmul.f32 %v717, %v744
      %v758 = vmul.f32 %v718, %v746
      %v759 = vmul.f32 %v719, %v748
      %v760 = vmul.f32 %v720, %v750
      %v761 = vmul.f32 %v721, %v752
      %v762 = vmul.f32 %v722, %v754
      %v763 = vsub.f32 1.0, %v755
      %v764 = vsub.f32 1.0, %v756
      %v765 = vsub.f32 1.0, %v757
      %v766 = vsub.f32 1.0, %v758
      %v767 = vsub.f32 1.0, %v759
      %v768 = vsub.f32 1.0, %v760
      %v769 = vsub.f32 1.0, %v761
      %v770 = vsub.f32 1.0, %v762
      %vm771 = vcmp.lt.f32.partialorder %v611, 0.0
      %vm772 = vcmp.lt.f32.partialorder %v612, 0.0
      %vm773 = vcmp.lt.f32.partialorder %v613, 0.0
      %vm774 = vcmp.lt.f32.partialorder %v614, 0.0
      %vm775 = vcmp.lt.f32.partialorder %v615, 0.0
      %vm776 = vcmp.lt.f32.partialorder %v616, 0.0
      %vm777 = vcmp.lt.f32.partialorder %v617, 0.0
      %vm778 = vcmp.lt.f32.partialorder %v618, 0.0
      %v779 = vsub.f32 0.0, %v763
      %v780 = vsub.f32 0.0, %v764
      %v781 = vsub.f32 0.0, %v765
      %v782 = vsub.f32 0.0, %v766
      %v783 = vsub.f32 0.0, %v767
      %v784 = vsub.f32 0.0, %v768
      %v785 = vsub.f32 0.0, %v769
      %v786 = vsub.f32 0.0, %v770
      %v787 = vsel %vm771, %v779, %v763
      %v788 = vsel %vm772, %v780, %v764
      %v789 = vsel %vm773, %v781, %v765
      %v790 = vsel %vm774, %v782, %v766
      %v791 = vsel %vm775, %v783, %v767
      %v792 = vsel %vm776, %v784, %v768
      %v793 = vsel %vm777, %v785, %v769
      %v794 = vsel %vm778, %v786, %v770
      %v795 = vadd.f32 %v787, 1.0
      %v796 = vadd.f32 %v788, 1.0
      %v797 = vadd.f32 %v789, 1.0
      %v798 = vadd.f32 %v790, 1.0
      %v799 = vadd.f32 %v791, 1.0
      %v800 = vadd.f32 %v792, 1.0
      %v801 = vadd.f32 %v793, 1.0
      %v802 = vadd.f32 %v794, 1.0
      %v803 = vmul.f32 %v603, %v795
      %v804 = vmul.f32 %v604, %v796
      %v805 = vmul.f32 %v605, %v797
      %v806 = vmul.f32 %v606, %v798
      %v807 = vmul.f32 %v607, %v799
      %v808 = vmul.f32 %v608, %v800
      %v809 = vmul.f32 %v609, %v801
      %v810 = vmul.f32 %v610, %v802
      %v811 = vpack.c.bf16 %v804, %v803
      %v812 = vpack.c.bf16 %v806, %v805
      %v813 = vpack.c.bf16 %v808, %v807
      %v814 = vpack.c.bf16 %v810, %v809
      %815 = vst [vmem:[%s3] sm:$0xff] %v811
      %816 = vst [vmem:[%s3 + $0x8] sm:$0xff] %v812
      %817 = vst [vmem:[%s3 + $0x10] sm:$0xff] %v813
      %818 = vst [vmem:[%s3 + $0x18] sm:$0xff] %v814
    $region25: #{bert_forward.15} parent=1 // pred_fallthru
      _
    // Predicated region
    $region26: #{bert_forward.15} parent=1 // pred_check
      _
    $region27: #{bert_forward.15} parent=1 // pred_check_branch
      %820 = sbr.rel (0) target = $region29
    $region28: #{bert_forward.15} parent=1 // pred_region
      _
    $region29: #{bert_forward.15} parent=1 // pred_fallthru
      _
    // Predicated region
    $region30: #{bert_forward.15} parent=1 // pred_check
      _
    $region31: #{bert_forward.15} parent=1 // pred_check_branch
      %822 = sbr.rel (0) target = $region33
    $region32: #{bert_forward.15} parent=1 // pred_region
      _
    $region33: #{bert_forward.15} parent=1 // pred_fallthru
      _
    %823 = vsyncpa [#allocation4], 1

// kernel: bert_forward.16
$region0: #{bert_forward.16}
  #allocation0 [shape = 'u32[]', space=smem, size = 0x4, offset = 0x4, fixed_abs, tag = 'smem constant byte address 0x4 - core index']
  #allocation1 [shape = 'u32[72,128]{1,0:T(1,128)}', space=vmem, size = 0x9000, scoped, tag = 'internal scratch']
  #allocation2 [shape = 'f32[16,256]{1,0:T(8,128)}', space=vmem, size = 0x4000, scoped, tag = 'scratch operand']
  %s0 = inlined_call_operand.vmem [shape: bf16[16,512], index: 0, kind: input, shape index: {}]
  %s1 = inlined_call_operand.hbm [shape: bf16[512,256], index: 1, kind: input, shape index: {}]
  %s2 = inlined_call_operand.vmem [shape: f32[1,256], index: 2, kind: input, shape index: {}]
  %s3 = inlined_call_operand.vmem [shape: bf16[16,256], index: 3, kind: input, shape index: {}]
  %s4 = inlined_call_operand.vmem [shape: f32[1,256], index: 4, kind: input, shape index: {}]
  %s5 = inlined_call_operand.vmem [shape: f32[1,256], index: 5, kind: input, shape index: {}]
  %s6 = inlined_call_operand.vmem [shape: bf16[16,256], index: 6, kind: output, shape index: {}]
  %s7 = sld [smem:[#allocation0]]
  $region46: #{bert_forward.16} parent=0
    _
  %s9 = ssub.s32 1, %s7
  %s10 = scalar_select 0, %s9, %s7
  $region1: #{bert_forward.16} parent=0
    #allocation3 [shape = 'u8[262144]{0}', space=vmem, size = 0x40000, scoped, tag = 'input window, operand 1, single buffered']
    #allocation4 [shape = 's32[1]{0}', space=sflag, size = 0x4, scoped, tag = 'scoped memory for bert_forward.16']
    %11 = vsyncpa [#allocation4], 0
    // Predicated region
    $region2: #{bert_forward.16} parent=1 // pred_check
      _
    $region3: #{bert_forward.16} parent=1 // pred_check_branch
      %13 = sbr.rel (0) target = $region5
    $region4: #{bert_forward.16} parent=1 // pred_region
      _
    $region5: #{bert_forward.16} parent=1 // pred_fallthru
      _
    // Predicated region
    $region6: #{bert_forward.16} parent=1 // pred_check
      _
    $region7: #{bert_forward.16} parent=1 // pred_check_branch
      %15 = sbr.rel (0) target = $region9
    $region8: #{bert_forward.16} parent=1 // pred_region
      %17 = vsyncadd [#allocation4], 0
      %s18 = sshll.u32 %s1, 4
      %s19 = int_to_ptr.hbm [resolvable:$true] %s18
      %s20 = sshll.u32 [#allocation3], 4
      %s21 = int_to_ptr.vmem [resolvable:$true] %s20
      %26 = dma.hbm_to_vmem [thread:$0]  %s19, 8192, %s21, [#allocation4], 128, 128, 8
    $region9: #{bert_forward.16} parent=1 // pred_fallthru
      _
    // Predicated region
    $region10: #{bert_forward.16} parent=1 // pred_check
      _
    $region11: #{bert_forward.16} parent=1 // pred_check_branch
      %28 = sbr.rel (0) target = $region13
    $region12: #{bert_forward.16} parent=1 // pred_region
      _
    $region13: #{bert_forward.16} parent=1 // pred_fallthru
      _
    // Predicated region
    $region14: #{bert_forward.16} parent=1 // pred_check
      _
    $region15: #{bert_forward.16} parent=1 // pred_check_branch
      %30 = sbr.rel (0) target = $region17
    $region16: #{bert_forward.16} parent=1 // pred_region
      _
    $region17: #{bert_forward.16} parent=1 // pred_fallthru
      _
    // Predicated region
    $region18: #{bert_forward.16} parent=1 // pred_check
      _
    $region19: #{bert_forward.16} parent=1 // pred_check_branch
      %32 = sbr.rel (0) target = $region21
    $region20: #{bert_forward.16} parent=1 // pred_region
      _
    $region21: #{bert_forward.16} parent=1 // pred_fallthru
      _
    // Predicated region
    $region22: #{bert_forward.16} parent=1 // pred_check
      _
    $region23: #{bert_forward.16} parent=1 // pred_check_branch
      %34 = sbr.rel (0) target = $region25
    $region24: #{bert_forward.16} parent=1 // pred_region
      _
    $region25: #{bert_forward.16} parent=1 // pred_fallthru
      _
    // Predicated region
    $region26: #{bert_forward.16} parent=1 // pred_check
      _
    $region27: #{bert_forward.16} parent=1 // pred_check_branch
      %36 = sbr.rel (0) target = $region29
    $region28: #{bert_forward.16} parent=1 // pred_region
      %38 = dma.done [#allocation4], 8192
    $region29: #{bert_forward.16} parent=1 // pred_fallthru
      _
    %p39 = scmp.eq.s32.totalorder 0, 0
    // Predicated region
    $region30: #{bert_forward.16} parent=1 // pred_check
      %p40 = pneg %p39
    $region31: #{bert_forward.16} parent=1 // pred_check_branch
      %42 = sbr.rel (%p40) target = $region33
    $region32: #{bert_forward.16} parent=1 // pred_region
      %43 = vst [vmem:[#allocation2] sm:$0xff] 0.0
      %44 = vst [vmem:[#allocation2 + $0x8] sm:$0xff] 0.0
      %45 = vst [vmem:[#allocation2 + $0x10] sm:$0xff] 0.0
      %46 = vst [vmem:[#allocation2 + $0x18] sm:$0xff] 0.0
    $region33: #{bert_forward.16} parent=1 // pred_fallthru
      _
    %v47 = vld [vmem:[#allocation2] sm:$0xff]
    %v48 = vld [vmem:[#allocation2 + $0x8] sm:$0xff]
    %v49 = vld [vmem:[#allocation2 + $0x10] sm:$0xff]
    %v50 = vld [vmem:[#allocation2 + $0x18] sm:$0xff]
    %v51 = vld [vmem:[%s0] sm:$0xff]
    %v52 = vld [vmem:[%s0 + $0x8] sm:$0xff]
    %v53 = vld [vmem:[%s0 + $0x10] sm:$0xff]
    %v54 = vld [vmem:[%s0 + $0x18] sm:$0xff]
    %v55 = vld [vmem:[#allocation3] sm:$0xff]
    %v56 = vld [vmem:[#allocation3 + $0x8] sm:$0xff]
    %v57 = vld [vmem:[#allocation3 + $0x10] sm:$0xff]
    %v58 = vld [vmem:[#allocation3 + $0x18] sm:$0xff]
    %v59 = vld [vmem:[#allocation3 + $0x20] sm:$0xff]
    %v60 = vld [vmem:[#allocation3 + $0x28] sm:$0xff]
    %v61 = vld [vmem:[#allocation3 + $0x30] sm:$0xff]
    %v62 = vld [vmem:[#allocation3 + $0x38] sm:$0xff]
    %v63 = vld [vmem:[#allocation3 + $0x40] sm:$0xff]
    %v64 = vld [vmem:[#allocation3 + $0x48] sm:$0xff]
    %v65 = vld [vmem:[#allocation3 + $0x50] sm:$0xff]
    %v66 = vld [vmem:[#allocation3 + $0x58] sm:$0xff]
    %v67 = vld [vmem:[#allocation3 + $0x60] sm:$0xff]
    %v68 = vld [vmem:[#allocation3 + $0x68] sm:$0xff]
    %v69 = vld [vmem:[#allocation3 + $0x70] sm:$0xff]
    %v70 = vld [vmem:[#allocation3 + $0x78] sm:$0xff]
    %v71 = vld [vmem:[#allocation3 + $0x80] sm:$0xff]
    %v72 = vld [vmem:[#allocation3 + $0x88] sm:$0xff]
    %v73 = vld [vmem:[#allocation3 + $0x90] sm:$0xff]
    %v74 = vld [vmem:[#allocation3 + $0x98] sm:$0xff]
    %v75 = vld [vmem:[#allocation3 + $0xa0] sm:$0xff]
    %v76 = vld [vmem:[#allocation3 + $0xa8] sm:$0xff]
    %v77 = vld [vmem:[#allocation3 + $0xb0] sm:$0xff]
    %v78 = vld [vmem:[#allocation3 + $0xb8] sm:$0xff]
    %v79 = vld [vmem:[#allocation3 + $0xc0] sm:$0xff]
    %v80 = vld [vmem:[#allocation3 + $0xc8] sm:$0xff]
    %v81 = vld [vmem:[#allocation3 + $0xd0] sm:$0xff]
    %v82 = vld [vmem:[#allocation3 + $0xd8] sm:$0xff]
    %v83 = vld [vmem:[#allocation3 + $0xe0] sm:$0xff]
    %v84 = vld [vmem:[#allocation3 + $0xe8] sm:$0xff]
    %v85 = vld [vmem:[#allocation3 + $0xf0] sm:$0xff]
    %v86 = vld [vmem:[#allocation3 + $0xf8] sm:$0xff]
    %v87 = vld [vmem:[#allocation3 + $0x100] sm:$0xff]
    %v88 = vld [vmem:[#allocation3 + $0x108] sm:$0xff]
    %v89 = vld [vmem:[#allocation3 + $0x110] sm:$0xff]
    %v90 = vld [vmem:[#allocation3 + $0x118] sm:$0xff]
    %v91 = vld [vmem:[#allocation3 + $0x120] sm:$0xff]
    %v92 = vld [vmem:[#allocation3 + $0x128] sm:$0xff]
    %v93 = vld [vmem:[#allocation3 + $0x130] sm:$0xff]
    %v94 = vld [vmem:[#allocation3 + $0x138] sm:$0xff]
    %v95 = vld [vmem:[#allocation3 + $0x140] sm:$0xff]
    %v96 = vld [vmem:[#allocation3 + $0x148] sm:$0xff]
    %v97 = vld [vmem:[#allocation3 + $0x150] sm:$0xff]
    %v98 = vld [vmem:[#allocation3 + $0x158] sm:$0xff]
    %v99 = vld [vmem:[#allocation3 + $0x160] sm:$0xff]
    %v100 = vld [vmem:[#allocation3 + $0x168] sm:$0xff]
    %v101 = vld [vmem:[#allocation3 + $0x170] sm:$0xff]
    %v102 = vld [vmem:[#allocation3 + $0x178] sm:$0xff]
    %v103 = vld [vmem:[#allocation3 + $0x180] sm:$0xff]
    %v104 = vld [vmem:[#allocation3 + $0x188] sm:$0xff]
    %v105 = vld [vmem:[#allocation3 + $0x190] sm:$0xff]
    %v106 = vld [vmem:[#allocation3 + $0x198] sm:$0xff]
    %v107 = vld [vmem:[#allocation3 + $0x1a0] sm:$0xff]
    %v108 = vld [vmem:[#allocation3 + $0x1a8] sm:$0xff]
    %v109 = vld [vmem:[#allocation3 + $0x1b0] sm:$0xff]
    %v110 = vld [vmem:[#allocation3 + $0x1b8] sm:$0xff]
    %v111 = vld [vmem:[#allocation3 + $0x1c0] sm:$0xff]
    %v112 = vld [vmem:[#allocation3 + $0x1c8] sm:$0xff]
    %v113 = vld [vmem:[#allocation3 + $0x1d0] sm:$0xff]
    %v114 = vld [vmem:[#allocation3 + $0x1d8] sm:$0xff]
    %v115 = vld [vmem:[#allocation3 + $0x1e0] sm:$0xff]
    %v116 = vld [vmem:[#allocation3 + $0x1e8] sm:$0xff]
    %v117 = vld [vmem:[#allocation3 + $0x1f0] sm:$0xff]
    %v118 = vld [vmem:[#allocation3 + $0x1f8] sm:$0xff]
    %v123 = vunpack.c.l.b16 %v51
    %v124 = vunpack.c.h.b16 %v51
    %v125 = vunpack.c.l.b16 %v52
    %v126 = vunpack.c.h.b16 %v52
    %v127 = vunpack.c.l.b16 %v53
    %v128 = vunpack.c.h.b16 %v53
    %v129 = vunpack.c.l.b16 %v54
    %v130 = vunpack.c.h.b16 %v54
    %v131 = vpack.c.b16 %v127, %v123
    %v132 = vpack.c.b16 %v128, %v124
    %v133 = vpack.c.b16 %v129, %v125
    %v134 = vpack.c.b16 %v130, %v126
    %v203 = vunpack.c.l.b16 %v55
    %v204 = vunpack.c.h.b16 %v55
    %v205 = vunpack.c.l.b16 %v56
    %v206 = vunpack.c.h.b16 %v56
    %v207 = vunpack.c.l.b16 %v57
    %v208 = vunpack.c.h.b16 %v57
    %v209 = vunpack.c.l.b16 %v58
    %v210 = vunpack.c.h.b16 %v58
    %v211 = vunpack.c.l.b16 %v59
    %v212 = vunpack.c.h.b16 %v59
    %v213 = vunpack.c.l.b16 %v60
    %v214 = vunpack.c.h.b16 %v60
    %v215 = vunpack.c.l.b16 %v61
    %v216 = vunpack.c.h.b16 %v61
    %v217 = vunpack.c.l.b16 %v62
    %v218 = vunpack.c.h.b16 %v62
    %v219 = vunpack.c.l.b16 %v63
    %v220 = vunpack.c.h.b16 %v63
    %v221 = vunpack.c.l.b16 %v64
    %v222 = vunpack.c.h.b16 %v64
    %v223 = vunpack.c.l.b16 %v65
    %v224 = vunpack.c.h.b16 %v65
    %v225 = vunpack.c.l.b16 %v66
    %v226 = vunpack.c.h.b16 %v66
    %v227 = vunpack.c.l.b16 %v67
    %v228 = vunpack.c.h.b16 %v67
    %v229 = vunpack.c.l.b16 %v68
    %v230 = vunpack.c.h.b16 %v68
    %v231 = vunpack.c.l.b16 %v69
    %v232 = vunpack.c.h.b16 %v69
    %v233 = vunpack.c.l.b16 %v70
    %v234 = vunpack.c.h.b16 %v70
    %v235 = vunpack.c.l.b16 %v71
    %v236 = vunpack.c.h.b16 %v71
    %v237 = vunpack.c.l.b16 %v72
    %v238 = vunpack.c.h.b16 %v72
    %v239 = vunpack.c.l.b16 %v73
    %v240 = vunpack.c.h.b16 %v73
    %v241 = vunpack.c.l.b16 %v74
    %v242 = vunpack.c.h.b16 %v74
    %v243 = vunpack.c.l.b16 %v75
    %v244 = vunpack.c.h.b16 %v75
    %v245 = vunpack.c.l.b16 %v76
    %v246 = vunpack.c.h.b16 %v76
    %v247 = vunpack.c.l.b16 %v77
    %v248 = vunpack.c.h.b16 %v77
    %v249 = vunpack.c.l.b16 %v78
    %v250 = vunpack.c.h.b16 %v78
    %v251 = vunpack.c.l.b16 %v79
    %v252 = vunpack.c.h.b16 %v79
    %v253 = vunpack.c.l.b16 %v80
    %v254 = vunpack.c.h.b16 %v80
    %v255 = vunpack.c.l.b16 %v81
    %v256 = vunpack.c.h.b16 %v81
    %v257 = vunpack.c.l.b16 %v82
    %v258 = vunpack.c.h.b16 %v82
    %v259 = vunpack.c.l.b16 %v83
    %v260 = vunpack.c.h.b16 %v83
    %v261 = vunpack.c.l.b16 %v84
    %v262 = vunpack.c.h.b16 %v84
    %v263 = vunpack.c.l.b16 %v85
    %v264 = vunpack.c.h.b16 %v85
    %v265 = vunpack.c.l.b16 %v86
    %v266 = vunpack.c.h.b16 %v86
    %v267 = vunpack.c.l.b16 %v87
    %v268 = vunpack.c.h.b16 %v87
    %v269 = vunpack.c.l.b16 %v88
    %v270 = vunpack.c.h.b16 %v88
    %v271 = vunpack.c.l.b16 %v89
    %v272 = vunpack.c.h.b16 %v89
    %v273 = vunpack.c.l.b16 %v90
    %v274 = vunpack.c.h.b16 %v90
    %v275 = vunpack.c.l.b16 %v91
    %v276 = vunpack.c.h.b16 %v91
    %v277 = vunpack.c.l.b16 %v92
    %v278 = vunpack.c.h.b16 %v92
    %v279 = vunpack.c.l.b16 %v93
    %v280 = vunpack.c.h.b16 %v93
    %v281 = vunpack.c.l.b16 %v94
    %v282 = vunpack.c.h.b16 %v94
    %v283 = vunpack.c.l.b16 %v95
    %v284 = vunpack.c.h.b16 %v95
    %v285 = vunpack.c.l.b16 %v96
    %v286 = vunpack.c.h.b16 %v96
    %v287 = vunpack.c.l.b16 %v97
    %v288 = vunpack.c.h.b16 %v97
    %v289 = vunpack.c.l.b16 %v98
    %v290 = vunpack.c.h.b16 %v98
    %v291 = vunpack.c.l.b16 %v99
    %v292 = vunpack.c.h.b16 %v99
    %v293 = vunpack.c.l.b16 %v100
    %v294 = vunpack.c.h.b16 %v100
    %v295 = vunpack.c.l.b16 %v101
    %v296 = vunpack.c.h.b16 %v101
    %v297 = vunpack.c.l.b16 %v102
    %v298 = vunpack.c.h.b16 %v102
    %v299 = vunpack.c.l.b16 %v103
    %v300 = vunpack.c.h.b16 %v103
    %v301 = vunpack.c.l.b16 %v104
    %v302 = vunpack.c.h.b16 %v104
    %v303 = vunpack.c.l.b16 %v105
    %v304 = vunpack.c.h.b16 %v105
    %v305 = vunpack.c.l.b16 %v106
    %v306 = vunpack.c.h.b16 %v106
    %v307 = vunpack.c.l.b16 %v107
    %v308 = vunpack.c.h.b16 %v107
    %v309 = vunpack.c.l.b16 %v108
    %v310 = vunpack.c.h.b16 %v108
    %v311 = vunpack.c.l.b16 %v109
    %v312 = vunpack.c.h.b16 %v109
    %v313 = vunpack.c.l.b16 %v110
    %v314 = vunpack.c.h.b16 %v110
    %v315 = vunpack.c.l.b16 %v111
    %v316 = vunpack.c.h.b16 %v111
    %v317 = vunpack.c.l.b16 %v112
    %v318 = vunpack.c.h.b16 %v112
    %v319 = vunpack.c.l.b16 %v113
    %v320 = vunpack.c.h.b16 %v113
    %v321 = vunpack.c.l.b16 %v114
    %v322 = vunpack.c.h.b16 %v114
    %v323 = vunpack.c.l.b16 %v115
    %v324 = vunpack.c.h.b16 %v115
    %v325 = vunpack.c.l.b16 %v116
    %v326 = vunpack.c.h.b16 %v116
    %v327 = vunpack.c.l.b16 %v117
    %v328 = vunpack.c.h.b16 %v117
    %v329 = vunpack.c.l.b16 %v118
    %v330 = vunpack.c.h.b16 %v118
    %v331 = vpack.c.b16 %v205, %v203
    %v332 = vpack.c.b16 %v206, %v204
    %v333 = vpack.c.b16 %v209, %v207
    %v334 = vpack.c.b16 %v210, %v208
    %v335 = vpack.c.b16 %v213, %v211
    %v336 = vpack.c.b16 %v214, %v212
    %v337 = vpack.c.b16 %v217, %v215
    %v338 = vpack.c.b16 %v218, %v216
    %v339 = vpack.c.b16 %v221, %v219
    %v340 = vpack.c.b16 %v222, %v220
    %v341 = vpack.c.b16 %v225, %v223
    %v342 = vpack.c.b16 %v226, %v224
    %v343 = vpack.c.b16 %v229, %v227
    %v344 = vpack.c.b16 %v230, %v228
    %v345 = vpack.c.b16 %v233, %v231
    %v346 = vpack.c.b16 %v234, %v232
    %v347 = vpack.c.b16 %v237, %v235
    %v348 = vpack.c.b16 %v238, %v236
    %v349 = vpack.c.b16 %v241, %v239
    %v350 = vpack.c.b16 %v242, %v240
    %v351 = vpack.c.b16 %v245, %v243
    %v352 = vpack.c.b16 %v246, %v244
    %v353 = vpack.c.b16 %v249, %v247
    %v354 = vpack.c.b16 %v250, %v248
    %v355 = vpack.c.b16 %v253, %v251
    %v356 = vpack.c.b16 %v254, %v252
    %v357 = vpack.c.b16 %v257, %v255
    %v358 = vpack.c.b16 %v258, %v256
    %v359 = vpack.c.b16 %v261, %v259
    %v360 = vpack.c.b16 %v262, %v260
    %v361 = vpack.c.b16 %v265, %v263
    %v362 = vpack.c.b16 %v266, %v264
    %v363 = vpack.c.b16 %v269, %v267
    %v364 = vpack.c.b16 %v270, %v268
    %v365 = vpack.c.b16 %v273, %v271
    %v366 = vpack.c.b16 %v274, %v272
    %v367 = vpack.c.b16 %v277, %v275
    %v368 = vpack.c.b16 %v278, %v276
    %v369 = vpack.c.b16 %v281, %v279
    %v370 = vpack.c.b16 %v282, %v280
    %v371 = vpack.c.b16 %v285, %v283
    %v372 = vpack.c.b16 %v286, %v284
    %v373 = vpack.c.b16 %v289, %v287
    %v374 = vpack.c.b16 %v290, %v288
    %v375 = vpack.c.b16 %v293, %v291
    %v376 = vpack.c.b16 %v294, %v292
    %v377 = vpack.c.b16 %v297, %v295
    %v378 = vpack.c.b16 %v298, %v296
    %v379 = vpack.c.b16 %v301, %v299
    %v380 = vpack.c.b16 %v302, %v300
    %v381 = vpack.c.b16 %v305, %v303
    %v382 = vpack.c.b16 %v306, %v304
    %v383 = vpack.c.b16 %v309, %v307
    %v384 = vpack.c.b16 %v310, %v308
    %v385 = vpack.c.b16 %v313, %v311
    %v386 = vpack.c.b16 %v314, %v312
    %v387 = vpack.c.b16 %v317, %v315
    %v388 = vpack.c.b16 %v318, %v316
    %v389 = vpack.c.b16 %v321, %v319
    %v390 = vpack.c.b16 %v322, %v320
    %v391 = vpack.c.b16 %v325, %v323
    %v392 = vpack.c.b16 %v326, %v324
    %v393 = vpack.c.b16 %v329, %v327
    %v394 = vpack.c.b16 %v330, %v328
    %459 = vmatpush.bf16.msra.mxu0 %v345
    %460 = vmatpush.bf16.msra.mxu0 %v343
    %461 = vmatpush.bf16.msra.mxu0 %v341
    %462 = vmatpush.bf16.msra.mxu0 %v339
    %463 = vmatpush.bf16.msra.mxu0 %v337
    %464 = vmatpush.bf16.msra.mxu0 %v335
    %465 = vmatpush.bf16.msra.mxu0 %v333
    %466 = vmatpush.bf16.msra.mxu0 %v331
    %467 = vmatmul.bf16.gmra.mxu0 %v131
    %v468 = vpop.f32.mrf.mxu0
    %v469 = vadd.f32 0.0, %v468
    %v470 = vpop.f32.mrf.mxu0
    %v471 = vadd.f32 0.0, %v470
    %472 = vdwg.mxu0
    %473 = vmatpush.bf16.msra.mxu0 %v361
    %474 = vmatpush.bf16.msra.mxu0 %v359
    %475 = vmatpush.bf16.msra.mxu0 %v357
    %476 = vmatpush.bf16.msra.mxu0 %v355
    %477 = vmatpush.bf16.msra.mxu0 %v353
    %478 = vmatpush.bf16.msra.mxu0 %v351
    %479 = vmatpush.bf16.msra.mxu0 %v349
    %480 = vmatpush.bf16.msra.mxu0 %v347
    %481 = vmatmul.bf16.gmra.mxu0 %v132
    %v482 = vpop.f32.mrf.mxu0
    %v483 = vadd.f32 %v469, %v482
    %v484 = vpop.f32.mrf.mxu0
    %v485 = vadd.f32 %v471, %v484
    %486 = vdwg.mxu0
    %487 = vmatpush.bf16.msra.mxu0 %v377
    %488 = vmatpush.bf16.msra.mxu0 %v375
    %489 = vmatpush.bf16.msra.mxu0 %v373
    %490 = vmatpush.bf16.msra.mxu0 %v371
    %491 = vmatpush.bf16.msra.mxu0 %v369
    %492 = vmatpush.bf16.msra.mxu0 %v367
    %493 = vmatpush.bf16.msra.mxu0 %v365
    %494 = vmatpush.bf16.msra.mxu0 %v363
    %495 = vmatmul.bf16.gmra.mxu0 %v133
    %v496 = vpop.f32.mrf.mxu0
    %v497 = vadd.f32 %v483, %v496
    %v498 = vpop.f32.mrf.mxu0
    %v499 = vadd.f32 %v485, %v498
    %500 = vdwg.mxu0
    %501 = vmatpush.bf16.msra.mxu0 %v393
    %502 = vmatpush.bf16.msra.mxu0 %v391
    %503 = vmatpush.bf16.msra.mxu0 %v389
    %504 = vmatpush.bf16.msra.mxu0 %v387
    %505 = vmatpush.bf16.msra.mxu0 %v385
    %506 = vmatpush.bf16.msra.mxu0 %v383
    %507 = vmatpush.bf16.msra.mxu0 %v381
    %508 = vmatpush.bf16.msra.mxu0 %v379
    %509 = vmatmul.bf16.gmra.mxu0 %v134
    %v510 = vpop.f32.mrf.mxu0
    %v511 = vadd.f32 %v497, %v510
    %v512 = vpop.f32.mrf.mxu0
    %v513 = vadd.f32 %v499, %v512
    %514 = vdwg.mxu0
    %515 = vmatpush.bf16.msra.mxu0 %v346
    %516 = vmatpush.bf16.msra.mxu0 %v344
    %517 = vmatpush.bf16.msra.mxu0 %v342
    %518 = vmatpush.bf16.msra.mxu0 %v340
    %519 = vmatpush.bf16.msra.mxu0 %v338
    %520 = vmatpush.bf16.msra.mxu0 %v336
    %521 = vmatpush.bf16.msra.mxu0 %v334
    %522 = vmatpush.bf16.msra.mxu0 %v332
    %523 = vmatmul.bf16.gmra.mxu0 %v131
    %v524 = vpop.f32.mrf.mxu0
    %v525 = vadd.f32 0.0, %v524
    %v526 = vpop.f32.mrf.mxu0
    %v527 = vadd.f32 0.0, %v526
    %528 = vdwg.mxu0
    %529 = vmatpush.bf16.msra.mxu0 %v362
    %530 = vmatpush.bf16.msra.mxu0 %v360
    %531 = vmatpush.bf16.msra.mxu0 %v358
    %532 = vmatpush.bf16.msra.mxu0 %v356
    %533 = vmatpush.bf16.msra.mxu0 %v354
    %534 = vmatpush.bf16.msra.mxu0 %v352
    %535 = vmatpush.bf16.msra.mxu0 %v350
    %536 = vmatpush.bf16.msra.mxu0 %v348
    %537 = vmatmul.bf16.gmra.mxu0 %v132
    %v538 = vpop.f32.mrf.mxu0
    %v539 = vadd.f32 %v525, %v538
    %v540 = vpop.f32.mrf.mxu0
    %v541 = vadd.f32 %v527, %v540
    %542 = vdwg.mxu0
    %543 = vmatpush.bf16.msra.mxu0 %v378
    %544 = vmatpush.bf16.msra.mxu0 %v376
    %545 = vmatpush.bf16.msra.mxu0 %v374
    %546 = vmatpush.bf16.msra.mxu0 %v372
    %547 = vmatpush.bf16.msra.mxu0 %v370
    %548 = vmatpush.bf16.msra.mxu0 %v368
    %549 = vmatpush.bf16.msra.mxu0 %v366
    %550 = vmatpush.bf16.msra.mxu0 %v364
    %551 = vmatmul.bf16.gmra.mxu0 %v133
    %v552 = vpop.f32.mrf.mxu0
    %v553 = vadd.f32 %v539, %v552
    %v554 = vpop.f32.mrf.mxu0
    %v555 = vadd.f32 %v541, %v554
    %556 = vdwg.mxu0
    %557 = vmatpush.bf16.msra.mxu0 %v394
    %558 = vmatpush.bf16.msra.mxu0 %v392
    %559 = vmatpush.bf16.msra.mxu0 %v390
    %560 = vmatpush.bf16.msra.mxu0 %v388
    %561 = vmatpush.bf16.msra.mxu0 %v386
    %562 = vmatpush.bf16.msra.mxu0 %v384
    %563 = vmatpush.bf16.msra.mxu0 %v382
    %564 = vmatpush.bf16.msra.mxu0 %v380
    %565 = vmatmul.bf16.gmra.mxu0 %v134
    %v566 = vpop.f32.mrf.mxu0
    %v567 = vadd.f32 %v553, %v566
    %v568 = vpop.f32.mrf.mxu0
    %v569 = vadd.f32 %v555, %v568
    %570 = vdwg.mxu0
    %v571 = vadd.f32 %v47, %v511
    %v572 = vadd.f32 %v48, %v567
    %v573 = vadd.f32 %v49, %v513
    %v574 = vadd.f32 %v50, %v569
    %575 = vst [vmem:[#allocation2] sm:$0xff] %v571
    %576 = vst [vmem:[#allocation2 + $0x8] sm:$0xff] %v572
    %577 = vst [vmem:[#allocation2 + $0x10] sm:$0xff] %v573
    %578 = vst [vmem:[#allocation2 + $0x18] sm:$0xff] %v574
    // Predicated region
    $region34: #{bert_forward.16} parent=1 // pred_check
      %p579 = pneg %p39
    $region35: #{bert_forward.16} parent=1 // pred_check_branch
      %581 = sbr.rel (%p579) target = $region37
    $region36: #{bert_forward.16} parent=1 // pred_region
      %v582 = vld [vmem:[#allocation2] sm:$0xff]
      %v583 = vld [vmem:[#allocation2 + $0x8] sm:$0xff]
      %v584 = vld [vmem:[#allocation2 + $0x10] sm:$0xff]
      %v585 = vld [vmem:[#allocation2 + $0x18] sm:$0xff]
      %v586 = vld [vmem:[%s2] sm:$0x3]
      %v588 = vperm.slane %v586, 0
      %v589 = vperm.slane %v586, 1
      %v592 = vadd.f32 %v582, %v588
      %v593 = vadd.f32 %v583, %v589
      %v594 = vadd.f32 %v584, %v588
      %v595 = vadd.f32 %v585, %v589
      %v596 = vld [vmem:[%s3] sm:$0xff]
      %v597 = vld [vmem:[%s3 + $0x8] sm:$0xff]
      %v598 = vunpack.c.l.bf16 %v596
      %v599 = vunpack.c.h.bf16 %v596
      %v600 = vunpack.c.l.bf16 %v597
      %v601 = vunpack.c.h.bf16 %v597
      %v602 = vadd.f32 %v592, %v598
      %v603 = vadd.f32 %v593, %v599
      %v604 = vadd.f32 %v594, %v600
      %v605 = vadd.f32 %v595, %v601
      %v606 = vadd.f32 %v602, %v603
      %607 = vadd.xlane.f32.xlu0 %v606
      %v608 = vpop.xlane.xlu0 %607
      %v609 = vadd.f32 %v604, %v605
      %610 = vadd.xlane.f32.xlu0 %v609
      %v611 = vpop.xlane.xlu0 %610
      %v612 = vrcp.pop 256.0
      %v613 = vmul.f32 256.0, %v612
      %v614 = vsub.f32 1.0, %v613
      %v615 = vmul.f32 %v612, %v614
      %v616 = vadd.f32 %v612, %v615
      %vm617 = vweird.f32 %v612
      %v618 = vsel %vm617, %v612, %v616
      %v619 = vmul.f32 %v608, %v618
      %v620 = vmul.f32 %v611, %v618
      %v621 = vsub.f32 %v602, %v619
      %v622 = vsub.f32 %v603, %v619
      %v623 = vsub.f32 %v604, %v620
      %v624 = vsub.f32 %v605, %v620
      %v625 = vmul.f32 %v621, %v621
      %v626 = vmul.f32 %v622, %v622
      %v627 = vmul.f32 %v623, %v623
      %v628 = vmul.f32 %v624, %v624
      %v629 = vadd.f32 %v625, %v626
      %630 = vadd.xlane.f32.xlu0 %v629
      %v631 = vpop.xlane.xlu0 %630
      %v632 = vadd.f32 %v627, %v628
      %633 = vadd.xlane.f32.xlu0 %v632
      %v634 = vpop.xlane.xlu0 %633
      %v635 = vmul.f32 %v631, %v618
      %v636 = vmul.f32 %v634, %v618
      %v637 = vadd.f32 %v635, 1e-12
      %v638 = vadd.f32 %v636, 1e-12
      %v639 = vrsqrt.pop %v637
      %v640 = vmul.f32 %v639, %v637
      %v641 = vmul.f32 %v640, %v639
      %v642 = vmul.f32 0.5, %v641
      %v643 = vsub.f32 1.5, %v642
      %v644 = vmul.f32 %v639, %v643
      %vm645 = vweird.f32 %v637
      %vm646 = vweird.f32 %v639
      %vm647 = vmor %vm645, %vm646
      %v648 = vsel %vm647, %v639, %v644
      %v649 = vrsqrt.pop %v638
      %v650 = vmul.f32 %v649, %v638
      %v651 = vmul.f32 %v650, %v649
      %v652 = vmul.f32 0.5, %v651
      %v653 = vsub.f32 1.5, %v652
      %v654 = vmul.f32 %v649, %v653
      %vm655 = vweird.f32 %v638
      %vm656 = vweird.f32 %v649
      %vm657 = vmor %vm655, %vm656
      %v658 = vsel %vm657, %v649, %v654
      %v659 = vmul.f32 %v621, %v648
      %v660 = vmul.f32 %v622, %v648
      %v661 = vmul.f32 %v623, %v658
      %v662 = vmul.f32 %v624, %v658
      %v663 = vld [vmem:[%s4] sm:$0x3]
      %v665 = vperm.slane %v663, 0
      %v666 = vperm.slane %v663, 1
      %v669 = vmul.f32 %v659, %v665
      %v670 = vmul.f32 %v660, %v666
      %v671 = vmul.f32 %v661, %v665
      %v672 = vmul.f32 %v662, %v666
      %v673 = vld [vmem:[%s5] sm:$0x3]
      %v675 = vperm.slane %v673, 0
      %v676 = vperm.slane %v673, 1
      %v679 = vadd.f32 %v669, %v675
      %v680 = vadd.f32 %v670, %v676
      %v681 = vadd.f32 %v671, %v675
      %v682 = vadd.f32 %v672, %v676
      %v683 = vpack.c.bf16 %v680, %v679
      %v684 = vpack.c.bf16 %v682, %v681
      %685 = vst [vmem:[%s6] sm:$0xff] %v683
      %686 = vst [vmem:[%s6 + $0x8] sm:$0xff] %v684
    $region37: #{bert_forward.16} parent=1 // pred_fallthru
      _
    // Predicated region
    $region38: #{bert_forward.16} parent=1 // pred_check
      _
    $region39: #{bert_forward.16} parent=1 // pred_check_branch
      %688 = sbr.rel (0) target = $region41
    $region40: #{bert_forward.16} parent=1 // pred_region
      _
    $region41: #{bert_forward.16} parent=1 // pred_fallthru
      _
    // Predicated region
    $region42: #{bert_forward.16} parent=1 // pred_check
      _
    $region43: #{bert_forward.16} parent=1 // pred_check_branch
      %690 = sbr.rel (0) target = $region45
    $region44: #{bert_forward.16} parent=1 // pred_region
      _
    $region45: #{bert_forward.16} parent=1 // pred_fallthru
      _
    %691 = vsyncpa [#allocation4], 1

</llo_original>
